<compile_context>
chip_gen: v7x
topology: tpu7x:2x2x1
jax: 0.10.0
libtpu: 0.0.40
codegen_flags: <defaults>
</compile_context>

<pallas_src>
import functools

import jax
import jax.numpy as jnp
from jax import lax
from jax.experimental import pallas as pl
from jax.experimental.pallas import tpu as pltpu

DILATIONS = (5, 7, 9, 11)
MAXPAD = max(DILATIONS)  # 11


def _round_up(x, m):
    return ((x + m - 1) // m) * m


def _cdcm_kernel(x_ref, w1_ref, w2f_ref, o_ref, ypad_ref, patches_ref,
                 *, wp, guard):
    # x_ref:      (Cin+1, Ntot)      padded+flattened input, last row = interior
    #                                mask (ReLU applied in-kernel; mask is 0/1
    #                                so ReLU is identity on it)
    # w1_ref:     (Cout, Cin+1)      1x1 conv weight with bias folded in as the
    #                                last column
    # w2f_ref:    (4, Cout, 9*Cout)  fused dilated-conv weights
    # o_ref:      (Cout, Nout)       Nout = round_up(H*Wp, 128); garbage cols
    #                                dropped by the wrapper
    # ypad_ref:   (Cout, Ntot)       VMEM scratch: padded y plane
    # patches_ref:(9*Cout, Nout)     VMEM scratch: stacked shifted taps
    cout = o_ref.shape[0]
    nout = o_ref.shape[1]

    # ReLU + 1x1 conv + (masked) bias in a single lane-dense MXU matmul.
    # Padding/guard columns of x are zero and the mask row is zero there, so
    # the border of y is exactly zero with no explicit zeroing.
    x = jnp.maximum(x_ref[...], 0)
    y = jnp.dot(w1_ref[...], x, preferred_element_type=jnp.float32)
    ypad_ref[...] = y.astype(ypad_ref.dtype)

    # Four fused dilated 3x3 convs: per dilation, stack the 9 shifted copies
    # of y along the contraction dim and do one (Cout, 9*Cout)@(9*Cout, Nout)
    # matmul; accumulate into the resident output block.
    for di, d in enumerate(DILATIONS):
        for kh in range(3):
            for kw in range(3):
                t = kh * 3 + kw
                s = guard + (MAXPAD + (kh - 1) * d) * wp + (kw - 1) * d
                patches_ref[t * cout:(t + 1) * cout, :] = ypad_ref[:, s:s + nout]
        contrib = jnp.dot(w2f_ref[di], patches_ref[...],
                          preferred_element_type=jnp.float32)
        if di == 0:
            o_ref[...] = contrib.astype(o_ref.dtype)
        else:
            o_ref[...] = o_ref[...] + contrib.astype(o_ref.dtype)


def cdcm_forward(x, w1, b1, w2, *, compute_dtype=jnp.float32):
    """CDCM forward, NCHW in / NCHW out (like the PyTorch module).

    x:  (N, Cin, H, W)
    w1: (Cout, Cin)               conv1 weight (1x1)
    b1: (Cout,)                   conv1 bias
    w2: (4, Cout, Cout, 3, 3)     conv2_{1..4} weights (OIHW), dil = 5,7,9,11

    compute_dtype controls the padded-y / patch scratch (pass jnp.bfloat16 to
    halve VMEM and feed the MXU at bf16 rate; f32 keeps exact numerics).
    """
    N, Cin, H, W = x.shape
    Cout = w1.shape[0]
    P = MAXPAD
    Hp, Wp = H + 2 * P, W + 2 * P

    Nout_raw = H * Wp                         # valid output cols (incl. gaps)
    Nout = _round_up(Nout_raw, 128)           # lane-dense output width
    extra = Nout - Nout_raw

    G = 16                                    # front lane guard (>= P)
    back_min = MAXPAD + extra                 # back guard: worst tap + padding
    Ntot = _round_up(G + Hp * Wp + back_min, 128)
    back = Ntot - G - Hp * Wp                 # >= back_min

    # ---------------- host-side (XLA) layout glue ----------------
    xp = jnp.pad(x, ((0, 0), (0, 0), (P, P), (P, P))).reshape(N, Cin, Hp * Wp)
    xp = jnp.pad(xp, ((0, 0), (0, 0), (G, back)))                # (N, Cin, Ntot)

    # Interior mask as an extra input row; bias as an extra weight column.
    mask2d = jnp.zeros((Hp, Wp), x.dtype).at[P:P + H, P:P + W].set(1)
    mask = jnp.pad(mask2d.reshape(1, Hp * Wp), ((0, 0), (G, back)))  # (1, Ntot)
    mask_b = jnp.broadcast_to(mask[None], (N, 1, Ntot)).astype(x.dtype)
    xa = jnp.concatenate([xp, mask_b], axis=1)                   # (N, Cin+1, Ntot)
    w1a = jnp.concatenate([w1, b1.reshape(Cout, 1)], axis=1)     # (Cout, Cin+1)

    # Fused dilated-conv weight: w2f[d, co, (kh*3+kw)*Cout + ci] = w2[d,co,ci,kh,kw]
    w2f = jnp.transpose(w2, (0, 3, 4, 2, 1)).reshape(4, 9 * Cout, Cout)
    w2f = jnp.transpose(w2f, (0, 2, 1))                          # (4, Cout, 9*Cout)

    kernel = functools.partial(_cdcm_kernel, wp=Wp, guard=G)

    # Explicit VMEM budget: scratch + double-buffered in/out blocks + weights.
    vmem_need = 4 * (Cout * Ntot + 9 * Cout * Nout
                     + 2 * ((Cin + 1) * Ntot + Cout * Nout)
                     + 2 * (Cout * (Cin + 1) + 36 * Cout * Cout))
    vmem_limit = int(min(max(2 * vmem_need, 32 * 2 ** 20), 100 * 2 ** 20))

    out_flat = pl.pallas_call(
        kernel,
        out_shape=jax.ShapeDtypeStruct((N, Cout, Nout), x.dtype),
        grid=(N,),
        in_specs=[
            pl.BlockSpec((None, Cin + 1, Ntot), lambda n: (n, 0, 0)),
            pl.BlockSpec((Cout, Cin + 1), lambda n: (0, 0)),
            pl.BlockSpec((4, Cout, 9 * Cout), lambda n: (0, 0, 0)),
        ],
        out_specs=pl.BlockSpec((None, Cout, Nout), lambda n: (n, 0, 0)),
        scratch_shapes=[
            pltpu.VMEM((Cout, Ntot), compute_dtype),
            pltpu.VMEM((9 * Cout, Nout), compute_dtype),
        ],
        compiler_params=pltpu.CompilerParams(
            dimension_semantics=("parallel",),
            vmem_limit_bytes=vmem_limit),
    )(xa, w1a, w2f)

    # Drop the garbage gap columns (width padding) -> (N, Cout, H, W), NCHW.
    out = out_flat[:, :, :Nout_raw].reshape(N, Cout, H, Wp)
    return out[:, :, :, P:P + W]


def cdcm_reference(x, w1, b1, w2):
    """Pure-JAX reference (lax.conv_general_dilated), NCHW."""
    y = jnp.maximum(x, 0.0)
    y = jnp.einsum("oc,nchw->nohw", w1, y) + b1.reshape(1, -1, 1, 1)
    out = jnp.zeros((x.shape[0], w1.shape[0], x.shape[2], x.shape[3]), jnp.float32)
    for di, d in enumerate(DILATIONS):
        out = out + lax.conv_general_dilated(
            y, w2[di],
            window_strides=(1, 1),
            padding=((d, d), (d, d)),
            rhs_dilation=(d, d),
            dimension_numbers=("NCHW", "OIHW", "NCHW"))
    return out


if __name__ == "__main__":
    # Small, deterministic example shapes.
    N, Cin, Cout, H, W = 2, 8, 16, 16, 16

    key = jax.random.PRNGKey(0)
    k_x, k_w1, k_b1, k_w2 = jax.random.split(key, 4)

    x = jax.random.normal(k_x, (N, Cin, H, W), jnp.float32)
    w1 = jax.random.normal(k_w1, (Cout, Cin), jnp.float32) * 0.1
    # PyTorch inits conv1.bias to 0; keep it nonzero to prove the (masked)
    # bias path is wired correctly.
    b1 = jax.random.normal(k_b1, (Cout,), jnp.float32) * 0.05
    w2 = jax.random.normal(k_w2, (4, Cout, Cout, 3, 3), jnp.float32) * 0.05

    out = jax.block_until_ready(cdcm_forward(x, w1, b1, w2))

    ref = cdcm_reference(x, w1, b1, w2)
    assert out.shape == (N, Cout, H, W), out.shape
    max_err = float(jnp.max(jnp.abs(out - ref)))
    assert jnp.allclose(out, ref, atol=5e-4, rtol=5e-4), max_err

    print("KERNEL_OK")
</pallas_src>

<mosaic_0001>
module attributes {stable_mosaic.version = 11 : i64} {
  func.func @_cdcm_kernel(%arg0: i32, %arg1: memref<1x9x1536xf32, #tpu.memory_space<vmem>>, %arg2: memref<16x9xf32, #tpu.memory_space<vmem>>, %arg3: memref<4x16x144xf32, #tpu.memory_space<vmem>>, %arg4: memref<1x16x640xf32, #tpu.memory_space<vmem>>, %arg5: memref<16x1536xf32, #tpu.memory_space<vmem>>, %arg6: memref<144x640xf32, #tpu.memory_space<vmem>>) attributes {dimension_semantics = [#tpu.dimension_semantics<parallel>], iteration_bounds = array<i64: 2>, scalar_prefetch = 0 : i64, scratch_operands = 2 : i64, tpu.core_type = #tpu.core_type<tc>, window_params = [{transform_indices = @transform_0, window_bounds = array<i64: 1, 9, 1536>}, {pipeline_mode = #tpu.pipeline_mode<synchronous>, transform_indices = @transform_1, window_bounds = array<i64: 16, 9>}, {pipeline_mode = #tpu.pipeline_mode<synchronous>, transform_indices = @transform_2, window_bounds = array<i64: 4, 16, 144>}, {transform_indices = @transform_3, window_bounds = array<i64: 1, 16, 640>}]} {
    %c0 = arith.constant 0 : index
    %c0_0 = arith.constant 0 : index
    %c0_1 = arith.constant 0 : index
    %0 = vector.load %arg1[%c0, %c0_0, %c0_1] : memref<1x9x1536xf32, #tpu.memory_space<vmem>>, vector<1x9x1536xf32>
    %1 = vector.shape_cast %0 : vector<1x9x1536xf32> to vector<9x1536xf32>
    %cst = arith.constant 0.000000e+00 : f32
    %2 = vector.broadcast %cst : f32 to vector<9x1536xf32>
    %3 = arith.maximumf %1, %2 : vector<9x1536xf32>
    %c0_2 = arith.constant 0 : index
    %c0_3 = arith.constant 0 : index
    %4 = vector.load %arg2[%c0_2, %c0_3] : memref<16x9xf32, #tpu.memory_space<vmem>>, vector<16x9xf32>
    %cst_4 = arith.constant dense<0.000000e+00> : vector<16x1536xf32>
    %5 = tpu.matmul %4, %3, %cst_4 {dimension_numbers = #tpu.dot_dimension_numbers<[1], [0], [0], [1], [0, 0, 1, 1], [], []>} : vector<16x9xf32>, vector<9x1536xf32>, vector<16x1536xf32> -> vector<16x1536xf32>
    %c0_5 = arith.constant 0 : index
    %c0_6 = arith.constant 0 : index
    %6 = vector.load %arg5[%c0_5, %c0_6] : memref<16x1536xf32, #tpu.memory_space<vmem>>, vector<16x1536xf32>
    tpu.vector_store %arg5[%c0_5, %c0_6], %5 {strides = array<i32>} : memref<16x1536xf32, #tpu.memory_space<vmem>>, vector<16x1536xf32>,
    %c0_7 = arith.constant 0 : index
    %c239 = arith.constant 239 : index
    %7 = vector.load %arg5[%c0_7, %c239] : memref<16x1536xf32, #tpu.memory_space<vmem>>, vector<16x640xf32>
    %c0_8 = arith.constant 0 : index
    %c0_9 = arith.constant 0 : index
    %8 = vector.load %arg6[%c0_8, %c0_9] : memref<144x640xf32, #tpu.memory_space<vmem>>, vector<16x640xf32>
    tpu.vector_store %arg6[%c0_8, %c0_9], %7 {strides = array<i32>} : memref<144x640xf32, #tpu.memory_space<vmem>>, vector<16x640xf32>,
    %c0_10 = arith.constant 0 : index
    %c244 = arith.constant 244 : index
    %9 = vector.load %arg5[%c0_10, %c244] : memref<16x1536xf32, #tpu.memory_space<vmem>>, vector<16x640xf32>
    %c16 = arith.constant 16 : index
    %c0_11 = arith.constant 0 : index
    %10 = vector.load %arg6[%c16, %c0_11] : memref<144x640xf32, #tpu.memory_space<vmem>>, vector<16x640xf32>
    tpu.vector_store %arg6[%c16, %c0_11], %9 {strides = array<i32>} : memref<144x640xf32, #tpu.memory_space<vmem>>, vector<16x640xf32>,
    %c0_12 = arith.constant 0 : index
    %c249 = arith.constant 249 : index
    %11 = vector.load %arg5[%c0_12, %c249] : memref<16x1536xf32, #tpu.memory_space<vmem>>, vector<16x640xf32>
    %c32 = arith.constant 32 : index
    %c0_13 = arith.constant 0 : index
    %12 = vector.load %arg6[%c32, %c0_13] : memref<144x640xf32, #tpu.memory_space<vmem>>, vector<16x640xf32>
    tpu.vector_store %arg6[%c32, %c0_13], %11 {strides = array<i32>} : memref<144x640xf32, #tpu.memory_space<vmem>>, vector<16x640xf32>,
    %c0_14 = arith.constant 0 : index
    %c429 = arith.constant 429 : index
    %13 = vector.load %arg5[%c0_14, %c429] : memref<16x1536xf32, #tpu.memory_space<vmem>>, vector<16x640xf32>
    %c48 = arith.constant 48 : index
    %c0_15 = arith.constant 0 : index
    %14 = vector.load %arg6[%c48, %c0_15] : memref<144x640xf32, #tpu.memory_space<vmem>>, vector<16x640xf32>
    tpu.vector_store %arg6[%c48, %c0_15], %13 {strides = array<i32>} : memref<144x640xf32, #tpu.memory_space<vmem>>, vector<16x640xf32>,
    %c0_16 = arith.constant 0 : index
    %c434 = arith.constant 434 : index
    %15 = vector.load %arg5[%c0_16, %c434] : memref<16x1536xf32, #tpu.memory_space<vmem>>, vector<16x640xf32>
    %c64 = arith.constant 64 : index
    %c0_17 = arith.constant 0 : index
    %16 = vector.load %arg6[%c64, %c0_17] : memref<144x640xf32, #tpu.memory_space<vmem>>, vector<16x640xf32>
    tpu.vector_store %arg6[%c64, %c0_17], %15 {strides = array<i32>} : memref<144x640xf32, #tpu.memory_space<vmem>>, vector<16x640xf32>,
    %c0_18 = arith.constant 0 : index
    %c439 = arith.constant 439 : index
    %17 = vector.load %arg5[%c0_18, %c439] : memref<16x1536xf32, #tpu.memory_space<vmem>>, vector<16x640xf32>
    %c80 = arith.constant 80 : index
    %c0_19 = arith.constant 0 : index
    %18 = vector.load %arg6[%c80, %c0_19] : memref<144x640xf32, #tpu.memory_space<vmem>>, vector<16x640xf32>
    tpu.vector_store %arg6[%c80, %c0_19], %17 {strides = array<i32>} : memref<144x640xf32, #tpu.memory_space<vmem>>, vector<16x640xf32>,
    %c0_20 = arith.constant 0 : index
    %c619 = arith.constant 619 : index
    %19 = vector.load %arg5[%c0_20, %c619] : memref<16x1536xf32, #tpu.memory_space<vmem>>, vector<16x640xf32>
    %c96 = arith.constant 96 : index
    %c0_21 = arith.constant 0 : index
    %20 = vector.load %arg6[%c96, %c0_21] : memref<144x640xf32, #tpu.memory_space<vmem>>, vector<16x640xf32>
    tpu.vector_store %arg6[%c96, %c0_21], %19 {strides = array<i32>} : memref<144x640xf32, #tpu.memory_space<vmem>>, vector<16x640xf32>,
    %c0_22 = arith.constant 0 : index
    %c624 = arith.constant 624 : index
    %21 = vector.load %arg5[%c0_22, %c624] : memref<16x1536xf32, #tpu.memory_space<vmem>>, vector<16x640xf32>
    %c112 = arith.constant 112 : index
    %c0_23 = arith.constant 0 : index
    %22 = vector.load %arg6[%c112, %c0_23] : memref<144x640xf32, #tpu.memory_space<vmem>>, vector<16x640xf32>
    tpu.vector_store %arg6[%c112, %c0_23], %21 {strides = array<i32>} : memref<144x640xf32, #tpu.memory_space<vmem>>, vector<16x640xf32>,
    %c0_24 = arith.constant 0 : index
    %c629 = arith.constant 629 : index
    %23 = vector.load %arg5[%c0_24, %c629] : memref<16x1536xf32, #tpu.memory_space<vmem>>, vector<16x640xf32>
    %c128 = arith.constant 128 : index
    %c0_25 = arith.constant 0 : index
    %24 = vector.load %arg6[%c128, %c0_25] : memref<144x640xf32, #tpu.memory_space<vmem>>, vector<16x640xf32>
    tpu.vector_store %arg6[%c128, %c0_25], %23 {strides = array<i32>} : memref<144x640xf32, #tpu.memory_space<vmem>>, vector<16x640xf32>,
    %c0_26 = arith.constant 0 : index
    %c0_27 = arith.constant 0 : index
    %c0_28 = arith.constant 0 : index
    %25 = vector.load %arg3[%c0_26, %c0_27, %c0_28] : memref<4x16x144xf32, #tpu.memory_space<vmem>>, vector<1x16x144xf32>
    %26 = vector.shape_cast %25 : vector<1x16x144xf32> to vector<16x144xf32>
    %c0_29 = arith.constant 0 : index
    %c0_30 = arith.constant 0 : index
    %27 = vector.load %arg6[%c0_29, %c0_30] : memref<144x640xf32, #tpu.memory_space<vmem>>, vector<144x640xf32>
    %cst_31 = arith.constant dense<0.000000e+00> : vector<16x640xf32>
    %28 = tpu.matmul %26, %27, %cst_31 {dimension_numbers = #tpu.dot_dimension_numbers<[1], [0], [0], [1], [0, 0, 1, 1], [], []>} : vector<16x144xf32>, vector<144x640xf32>, vector<16x640xf32> -> vector<16x640xf32>
    %c0_32 = arith.constant 0 : index
    %c0_33 = arith.constant 0 : index
    %c0_34 = arith.constant 0 : index
    %29 = vector.load %arg4[%c0_32, %c0_33, %c0_34] : memref<1x16x640xf32, #tpu.memory_space<vmem>>, vector<1x16x640xf32>
    %30 = vector.shape_cast %29 : vector<1x16x640xf32> to vector<16x640xf32>
    %31 = vector.shape_cast %28 : vector<16x640xf32> to vector<1x16x640xf32>
    tpu.vector_store %arg4[%c0_32, %c0_33, %c0_34], %31 {strides = array<i32>} : memref<1x16x640xf32, #tpu.memory_space<vmem>>, vector<1x16x640xf32>,
    %c0_35 = arith.constant 0 : index
    %c161 = arith.constant 161 : index
    %32 = vector.load %arg5[%c0_35, %c161] : memref<16x1536xf32, #tpu.memory_space<vmem>>, vector<16x640xf32>
    %c0_36 = arith.constant 0 : index
    %c0_37 = arith.constant 0 : index
    %33 = vector.load %arg6[%c0_36, %c0_37] : memref<144x640xf32, #tpu.memory_space<vmem>>, vector<16x640xf32>
    tpu.vector_store %arg6[%c0_36, %c0_37], %32 {strides = array<i32>} : memref<144x640xf32, #tpu.memory_space<vmem>>, vector<16x640xf32>,
    %c0_38 = arith.constant 0 : index
    %c168 = arith.constant 168 : index
    %34 = vector.load %arg5[%c0_38, %c168] : memref<16x1536xf32, #tpu.memory_space<vmem>>, vector<16x640xf32>
    %c16_39 = arith.constant 16 : index
    %c0_40 = arith.constant 0 : index
    %35 = vector.load %arg6[%c16_39, %c0_40] : memref<144x640xf32, #tpu.memory_space<vmem>>, vector<16x640xf32>
    tpu.vector_store %arg6[%c16_39, %c0_40], %34 {strides = array<i32>} : memref<144x640xf32, #tpu.memory_space<vmem>>, vector<16x640xf32>,
    %c0_41 = arith.constant 0 : index
    %c175 = arith.constant 175 : index
    %36 = vector.load %arg5[%c0_41, %c175] : memref<16x1536xf32, #tpu.memory_space<vmem>>, vector<16x640xf32>
    %c32_42 = arith.constant 32 : index
    %c0_43 = arith.constant 0 : index
    %37 = vector.load %arg6[%c32_42, %c0_43] : memref<144x640xf32, #tpu.memory_space<vmem>>, vector<16x640xf32>
    tpu.vector_store %arg6[%c32_42, %c0_43], %36 {strides = array<i32>} : memref<144x640xf32, #tpu.memory_space<vmem>>, vector<16x640xf32>,
    %c0_44 = arith.constant 0 : index
    %c427 = arith.constant 427 : index
    %38 = vector.load %arg5[%c0_44, %c427] : memref<16x1536xf32, #tpu.memory_space<vmem>>, vector<16x640xf32>
    %c48_45 = arith.constant 48 : index
    %c0_46 = arith.constant 0 : index
    %39 = vector.load %arg6[%c48_45, %c0_46] : memref<144x640xf32, #tpu.memory_space<vmem>>, vector<16x640xf32>
    tpu.vector_store %arg6[%c48_45, %c0_46], %38 {strides = array<i32>} : memref<144x640xf32, #tpu.memory_space<vmem>>, vector<16x640xf32>,
    %c0_47 = arith.constant 0 : index
    %c434_48 = arith.constant 434 : index
    %40 = vector.load %arg5[%c0_47, %c434_48] : memref<16x1536xf32, #tpu.memory_space<vmem>>, vector<16x640xf32>
    %c64_49 = arith.constant 64 : index
    %c0_50 = arith.constant 0 : index
    %41 = vector.load %arg6[%c64_49, %c0_50] : memref<144x640xf32, #tpu.memory_space<vmem>>, vector<16x640xf32>
    tpu.vector_store %arg6[%c64_49, %c0_50], %40 {strides = array<i32>} : memref<144x640xf32, #tpu.memory_space<vmem>>, vector<16x640xf32>,
    %c0_51 = arith.constant 0 : index
    %c441 = arith.constant 441 : index
    %42 = vector.load %arg5[%c0_51, %c441] : memref<16x1536xf32, #tpu.memory_space<vmem>>, vector<16x640xf32>
    %c80_52 = arith.constant 80 : index
    %c0_53 = arith.constant 0 : index
    %43 = vector.load %arg6[%c80_52, %c0_53] : memref<144x640xf32, #tpu.memory_space<vmem>>, vector<16x640xf32>
    tpu.vector_store %arg6[%c80_52, %c0_53], %42 {strides = array<i32>} : memref<144x640xf32, #tpu.memory_space<vmem>>, vector<16x640xf32>,
    %c0_54 = arith.constant 0 : index
    %c693 = arith.constant 693 : index
    %44 = vector.load %arg5[%c0_54, %c693] : memref<16x1536xf32, #tpu.memory_space<vmem>>, vector<16x640xf32>
    %c96_55 = arith.constant 96 : index
    %c0_56 = arith.constant 0 : index
    %45 = vector.load %arg6[%c96_55, %c0_56] : memref<144x640xf32, #tpu.memory_space<vmem>>, vector<16x640xf32>
    tpu.vector_store %arg6[%c96_55, %c0_56], %44 {strides = array<i32>} : memref<144x640xf32, #tpu.memory_space<vmem>>, vector<16x640xf32>,
    %c0_57 = arith.constant 0 : index
    %c700 = arith.constant 700 : index
    %46 = vector.load %arg5[%c0_57, %c700] : memref<16x1536xf32, #tpu.memory_space<vmem>>, vector<16x640xf32>
    %c112_58 = arith.constant 112 : index
    %c0_59 = arith.constant 0 : index
    %47 = vector.load %arg6[%c112_58, %c0_59] : memref<144x640xf32, #tpu.memory_space<vmem>>, vector<16x640xf32>
    tpu.vector_store %arg6[%c112_58, %c0_59], %46 {strides = array<i32>} : memref<144x640xf32, #tpu.memory_space<vmem>>, vector<16x640xf32>,
    %c0_60 = arith.constant 0 : index
    %c707 = arith.constant 707 : index
    %48 = vector.load %arg5[%c0_60, %c707] : memref<16x1536xf32, #tpu.memory_space<vmem>>, vector<16x640xf32>
    %c128_61 = arith.constant 128 : index
    %c0_62 = arith.constant 0 : index
    %49 = vector.load %arg6[%c128_61, %c0_62] : memref<144x640xf32, #tpu.memory_space<vmem>>, vector<16x640xf32>
    tpu.vector_store %arg6[%c128_61, %c0_62], %48 {strides = array<i32>} : memref<144x640xf32, #tpu.memory_space<vmem>>, vector<16x640xf32>,
    %c1 = arith.constant 1 : index
    %c0_63 = arith.constant 0 : index
    %c0_64 = arith.constant 0 : index
    %50 = vector.load %arg3[%c1, %c0_63, %c0_64] : memref<4x16x144xf32, #tpu.memory_space<vmem>>, vector<1x16x144xf32>
    %51 = vector.shape_cast %50 : vector<1x16x144xf32> to vector<16x144xf32>
    %c0_65 = arith.constant 0 : index
    %c0_66 = arith.constant 0 : index
    %52 = vector.load %arg6[%c0_65, %c0_66] : memref<144x640xf32, #tpu.memory_space<vmem>>, vector<144x640xf32>
    %cst_67 = arith.constant dense<0.000000e+00> : vector<16x640xf32>
    %53 = tpu.matmul %51, %52, %cst_67 {dimension_numbers = #tpu.dot_dimension_numbers<[1], [0], [0], [1], [0, 0, 1, 1], [], []>} : vector<16x144xf32>, vector<144x640xf32>, vector<16x640xf32> -> vector<16x640xf32>
    %c0_68 = arith.constant 0 : index
    %c0_69 = arith.constant 0 : index
    %c0_70 = arith.constant 0 : index
    %54 = vector.load %arg4[%c0_68, %c0_69, %c0_70] : memref<1x16x640xf32, #tpu.memory_space<vmem>>, vector<1x16x640xf32>
    %55 = vector.shape_cast %54 : vector<1x16x640xf32> to vector<16x640xf32>
    %56 = arith.addf %55, %53 : vector<16x640xf32>
    %c0_71 = arith.constant 0 : index
    %c0_72 = arith.constant 0 : index
    %c0_73 = arith.constant 0 : index
    %57 = vector.load %arg4[%c0_71, %c0_72, %c0_73] : memref<1x16x640xf32, #tpu.memory_space<vmem>>, vector<1x16x640xf32>
    %58 = vector.shape_cast %57 : vector<1x16x640xf32> to vector<16x640xf32>
    %59 = vector.shape_cast %56 : vector<16x640xf32> to vector<1x16x640xf32>
    tpu.vector_store %arg4[%c0_71, %c0_72, %c0_73], %59 {strides = array<i32>} : memref<1x16x640xf32, #tpu.memory_space<vmem>>, vector<1x16x640xf32>,
    %c0_74 = arith.constant 0 : index
    %c83 = arith.constant 83 : index
    %60 = vector.load %arg5[%c0_74, %c83] : memref<16x1536xf32, #tpu.memory_space<vmem>>, vector<16x640xf32>
    %c0_75 = arith.constant 0 : index
    %c0_76 = arith.constant 0 : index
    %61 = vector.load %arg6[%c0_75, %c0_76] : memref<144x640xf32, #tpu.memory_space<vmem>>, vector<16x640xf32>
    tpu.vector_store %arg6[%c0_75, %c0_76], %60 {strides = array<i32>} : memref<144x640xf32, #tpu.memory_space<vmem>>, vector<16x640xf32>,
    %c0_77 = arith.constant 0 : index
    %c92 = arith.constant 92 : index
    %62 = vector.load %arg5[%c0_77, %c92] : memref<16x1536xf32, #tpu.memory_space<vmem>>, vector<16x640xf32>
    %c16_78 = arith.constant 16 : index
    %c0_79 = arith.constant 0 : index
    %63 = vector.load %arg6[%c16_78, %c0_79] : memref<144x640xf32, #tpu.memory_space<vmem>>, vector<16x640xf32>
    tpu.vector_store %arg6[%c16_78, %c0_79], %62 {strides = array<i32>} : memref<144x640xf32, #tpu.memory_space<vmem>>, vector<16x640xf32>,
    %c0_80 = arith.constant 0 : index
    %c101 = arith.constant 101 : index
    %64 = vector.load %arg5[%c0_80, %c101] : memref<16x1536xf32, #tpu.memory_space<vmem>>, vector<16x640xf32>
    %c32_81 = arith.constant 32 : index
    %c0_82 = arith.constant 0 : index
    %65 = vector.load %arg6[%c32_81, %c0_82] : memref<144x640xf32, #tpu.memory_space<vmem>>, vector<16x640xf32>
    tpu.vector_store %arg6[%c32_81, %c0_82], %64 {strides = array<i32>} : memref<144x640xf32, #tpu.memory_space<vmem>>, vector<16x640xf32>,
    %c0_83 = arith.constant 0 : index
    %c425 = arith.constant 425 : index
    %66 = vector.load %arg5[%c0_83, %c425] : memref<16x1536xf32, #tpu.memory_space<vmem>>, vector<16x640xf32>
    %c48_84 = arith.constant 48 : index
    %c0_85 = arith.constant 0 : index
    %67 = vector.load %arg6[%c48_84, %c0_85] : memref<144x640xf32, #tpu.memory_space<vmem>>, vector<16x640xf32>
    tpu.vector_store %arg6[%c48_84, %c0_85], %66 {strides = array<i32>} : memref<144x640xf32, #tpu.memory_space<vmem>>, vector<16x640xf32>,
    %c0_86 = arith.constant 0 : index
    %c434_87 = arith.constant 434 : index
    %68 = vector.load %arg5[%c0_86, %c434_87] : memref<16x1536xf32, #tpu.memory_space<vmem>>, vector<16x640xf32>
    %c64_88 = arith.constant 64 : index
    %c0_89 = arith.constant 0 : index
    %69 = vector.load %arg6[%c64_88, %c0_89] : memref<144x640xf32, #tpu.memory_space<vmem>>, vector<16x640xf32>
    tpu.vector_store %arg6[%c64_88, %c0_89], %68 {strides = array<i32>} : memref<144x640xf32, #tpu.memory_space<vmem>>, vector<16x640xf32>,
    %c0_90 = arith.constant 0 : index
    %c443 = arith.constant 443 : index
    %70 = vector.load %arg5[%c0_90, %c443] : memref<16x1536xf32, #tpu.memory_space<vmem>>, vector<16x640xf32>
    %c80_91 = arith.constant 80 : index
    %c0_92 = arith.constant 0 : index
    %71 = vector.load %arg6[%c80_91, %c0_92] : memref<144x640xf32, #tpu.memory_space<vmem>>, vector<16x640xf32>
    tpu.vector_store %arg6[%c80_91, %c0_92], %70 {strides = array<i32>} : memref<144x640xf32, #tpu.memory_space<vmem>>, vector<16x640xf32>,
    %c0_93 = arith.constant 0 : index
    %c767 = arith.constant 767 : index
    %72 = vector.load %arg5[%c0_93, %c767] : memref<16x1536xf32, #tpu.memory_space<vmem>>, vector<16x640xf32>
    %c96_94 = arith.constant 96 : index
    %c0_95 = arith.constant 0 : index
    %73 = vector.load %arg6[%c96_94, %c0_95] : memref<144x640xf32, #tpu.memory_space<vmem>>, vector<16x640xf32>
    tpu.vector_store %arg6[%c96_94, %c0_95], %72 {strides = array<i32>} : memref<144x640xf32, #tpu.memory_space<vmem>>, vector<16x640xf32>,
    %c0_96 = arith.constant 0 : index
    %c776 = arith.constant 776 : index
    %74 = vector.load %arg5[%c0_96, %c776] : memref<16x1536xf32, #tpu.memory_space<vmem>>, vector<16x640xf32>
    %c112_97 = arith.constant 112 : index
    %c0_98 = arith.constant 0 : index
    %75 = vector.load %arg6[%c112_97, %c0_98] : memref<144x640xf32, #tpu.memory_space<vmem>>, vector<16x640xf32>
    tpu.vector_store %arg6[%c112_97, %c0_98], %74 {strides = array<i32>} : memref<144x640xf32, #tpu.memory_space<vmem>>, vector<16x640xf32>,
    %c0_99 = arith.constant 0 : index
    %c785 = arith.constant 785 : index
    %76 = vector.load %arg5[%c0_99, %c785] : memref<16x1536xf32, #tpu.memory_space<vmem>>, vector<16x640xf32>
    %c128_100 = arith.constant 128 : index
    %c0_101 = arith.constant 0 : index
    %77 = vector.load %arg6[%c128_100, %c0_101] : memref<144x640xf32, #tpu.memory_space<vmem>>, vector<16x640xf32>
    tpu.vector_store %arg6[%c128_100, %c0_101], %76 {strides = array<i32>} : memref<144x640xf32, #tpu.memory_space<vmem>>, vector<16x640xf32>,
    %c2 = arith.constant 2 : index
    %c0_102 = arith.constant 0 : index
    %c0_103 = arith.constant 0 : index
    %78 = vector.load %arg3[%c2, %c0_102, %c0_103] : memref<4x16x144xf32, #tpu.memory_space<vmem>>, vector<1x16x144xf32>
    %79 = vector.shape_cast %78 : vector<1x16x144xf32> to vector<16x144xf32>
    %c0_104 = arith.constant 0 : index
    %c0_105 = arith.constant 0 : index
    %80 = vector.load %arg6[%c0_104, %c0_105] : memref<144x640xf32, #tpu.memory_space<vmem>>, vector<144x640xf32>
    %cst_106 = arith.constant dense<0.000000e+00> : vector<16x640xf32>
    %81 = tpu.matmul %79, %80, %cst_106 {dimension_numbers = #tpu.dot_dimension_numbers<[1], [0], [0], [1], [0, 0, 1, 1], [], []>} : vector<16x144xf32>, vector<144x640xf32>, vector<16x640xf32> -> vector<16x640xf32>
    %c0_107 = arith.constant 0 : index
    %c0_108 = arith.constant 0 : index
    %c0_109 = arith.constant 0 : index
    %82 = vector.load %arg4[%c0_107, %c0_108, %c0_109] : memref<1x16x640xf32, #tpu.memory_space<vmem>>, vector<1x16x640xf32>
    %83 = vector.shape_cast %82 : vector<1x16x640xf32> to vector<16x640xf32>
    %84 = arith.addf %83, %81 : vector<16x640xf32>
    %c0_110 = arith.constant 0 : index
    %c0_111 = arith.constant 0 : index
    %c0_112 = arith.constant 0 : index
    %85 = vector.load %arg4[%c0_110, %c0_111, %c0_112] : memref<1x16x640xf32, #tpu.memory_space<vmem>>, vector<1x16x640xf32>
    %86 = vector.shape_cast %85 : vector<1x16x640xf32> to vector<16x640xf32>
    %87 = vector.shape_cast %84 : vector<16x640xf32> to vector<1x16x640xf32>
    tpu.vector_store %arg4[%c0_110, %c0_111, %c0_112], %87 {strides = array<i32>} : memref<1x16x640xf32, #tpu.memory_space<vmem>>, vector<1x16x640xf32>,
    %c0_113 = arith.constant 0 : index
    %c5 = arith.constant 5 : index
    %88 = vector.load %arg5[%c0_113, %c5] : memref<16x1536xf32, #tpu.memory_space<vmem>>, vector<16x640xf32>
    %c0_114 = arith.constant 0 : index
    %c0_115 = arith.constant 0 : index
    %89 = vector.load %arg6[%c0_114, %c0_115] : memref<144x640xf32, #tpu.memory_space<vmem>>, vector<16x640xf32>
    tpu.vector_store %arg6[%c0_114, %c0_115], %88 {strides = array<i32>} : memref<144x640xf32, #tpu.memory_space<vmem>>, vector<16x640xf32>,
    %c0_116 = arith.constant 0 : index
    %c16_117 = arith.constant 16 : index
    %90 = vector.load %arg5[%c0_116, %c16_117] : memref<16x1536xf32, #tpu.memory_space<vmem>>, vector<16x640xf32>
    %c16_118 = arith.constant 16 : index
    %c0_119 = arith.constant 0 : index
    %91 = vector.load %arg6[%c16_118, %c0_119] : memref<144x640xf32, #tpu.memory_space<vmem>>, vector<16x640xf32>
    tpu.vector_store %arg6[%c16_118, %c0_119], %90 {strides = array<i32>} : memref<144x640xf32, #tpu.memory_space<vmem>>, vector<16x640xf32>,
    %c0_120 = arith.constant 0 : index
    %c27 = arith.constant 27 : index
    %92 = vector.load %arg5[%c0_120, %c27] : memref<16x1536xf32, #tpu.memory_space<vmem>>, vector<16x640xf32>
    %c32_121 = arith.constant 32 : index
    %c0_122 = arith.constant 0 : index
    %93 = vector.load %arg6[%c32_121, %c0_122] : memref<144x640xf32, #tpu.memory_space<vmem>>, vector<16x640xf32>
    tpu.vector_store %arg6[%c32_121, %c0_122], %92 {strides = array<i32>} : memref<144x640xf32, #tpu.memory_space<vmem>>, vector<16x640xf32>,
    %c0_123 = arith.constant 0 : index
    %c423 = arith.constant 423 : index
    %94 = vector.load %arg5[%c0_123, %c423] : memref<16x1536xf32, #tpu.memory_space<vmem>>, vector<16x640xf32>
    %c48_124 = arith.constant 48 : index
    %c0_125 = arith.constant 0 : index
    %95 = vector.load %arg6[%c48_124, %c0_125] : memref<144x640xf32, #tpu.memory_space<vmem>>, vector<16x640xf32>
    tpu.vector_store %arg6[%c48_124, %c0_125], %94 {strides = array<i32>} : memref<144x640xf32, #tpu.memory_space<vmem>>, vector<16x640xf32>,
    %c0_126 = arith.constant 0 : index
    %c434_127 = arith.constant 434 : index
    %96 = vector.load %arg5[%c0_126, %c434_127] : memref<16x1536xf32, #tpu.memory_space<vmem>>, vector<16x640xf32>
    %c64_128 = arith.constant 64 : index
    %c0_129 = arith.constant 0 : index
    %97 = vector.load %arg6[%c64_128, %c0_129] : memref<144x640xf32, #tpu.memory_space<vmem>>, vector<16x640xf32>
    tpu.vector_store %arg6[%c64_128, %c0_129], %96 {strides = array<i32>} : memref<144x640xf32, #tpu.memory_space<vmem>>, vector<16x640xf32>,
    %c0_130 = arith.constant 0 : index
    %c445 = arith.constant 445 : index
    %98 = vector.load %arg5[%c0_130, %c445] : memref<16x1536xf32, #tpu.memory_space<vmem>>, vector<16x640xf32>
    %c80_131 = arith.constant 80 : index
    %c0_132 = arith.constant 0 : index
    %99 = vector.load %arg6[%c80_131, %c0_132] : memref<144x640xf32, #tpu.memory_space<vmem>>, vector<16x640xf32>
    tpu.vector_store %arg6[%c80_131, %c0_132], %98 {strides = array<i32>} : memref<144x640xf32, #tpu.memory_space<vmem>>, vector<16x640xf32>,
    %c0_133 = arith.constant 0 : index
    %c841 = arith.constant 841 : index
    %100 = vector.load %arg5[%c0_133, %c841] : memref<16x1536xf32, #tpu.memory_space<vmem>>, vector<16x640xf32>
    %c96_134 = arith.constant 96 : index
    %c0_135 = arith.constant 0 : index
    %101 = vector.load %arg6[%c96_134, %c0_135] : memref<144x640xf32, #tpu.memory_space<vmem>>, vector<16x640xf32>
    tpu.vector_store %arg6[%c96_134, %c0_135], %100 {strides = array<i32>} : memref<144x640xf32, #tpu.memory_space<vmem>>, vector<16x640xf32>,
    %c0_136 = arith.constant 0 : index
    %c852 = arith.constant 852 : index
    %102 = vector.load %arg5[%c0_136, %c852] : memref<16x1536xf32, #tpu.memory_space<vmem>>, vector<16x640xf32>
    %c112_137 = arith.constant 112 : index
    %c0_138 = arith.constant 0 : index
    %103 = vector.load %arg6[%c112_137, %c0_138] : memref<144x640xf32, #tpu.memory_space<vmem>>, vector<16x640xf32>
    tpu.vector_store %arg6[%c112_137, %c0_138], %102 {strides = array<i32>} : memref<144x640xf32, #tpu.memory_space<vmem>>, vector<16x640xf32>,
    %c0_139 = arith.constant 0 : index
    %c863 = arith.constant 863 : index
    %104 = vector.load %arg5[%c0_139, %c863] : memref<16x1536xf32, #tpu.memory_space<vmem>>, vector<16x640xf32>
    %c128_140 = arith.constant 128 : index
    %c0_141 = arith.constant 0 : index
    %105 = vector.load %arg6[%c128_140, %c0_141] : memref<144x640xf32, #tpu.memory_space<vmem>>, vector<16x640xf32>
    tpu.vector_store %arg6[%c128_140, %c0_141], %104 {strides = array<i32>} : memref<144x640xf32, #tpu.memory_space<vmem>>, vector<16x640xf32>,
    %c3 = arith.constant 3 : index
    %c0_142 = arith.constant 0 : index
    %c0_143 = arith.constant 0 : index
    %106 = vector.load %arg3[%c3, %c0_142, %c0_143] : memref<4x16x144xf32, #tpu.memory_space<vmem>>, vector<1x16x144xf32>
    %107 = vector.shape_cast %106 : vector<1x16x144xf32> to vector<16x144xf32>
    %c0_144 = arith.constant 0 : index
    %c0_145 = arith.constant 0 : index
    %108 = vector.load %arg6[%c0_144, %c0_145] : memref<144x640xf32, #tpu.memory_space<vmem>>, vector<144x640xf32>
    %cst_146 = arith.constant dense<0.000000e+00> : vector<16x640xf32>
    %109 = tpu.matmul %107, %108, %cst_146 {dimension_numbers = #tpu.dot_dimension_numbers<[1], [0], [0], [1], [0, 0, 1, 1], [], []>} : vector<16x144xf32>, vector<144x640xf32>, vector<16x640xf32> -> vector<16x640xf32>
    %c0_147 = arith.constant 0 : index
    %c0_148 = arith.constant 0 : index
    %c0_149 = arith.constant 0 : index
    %110 = vector.load %arg4[%c0_147, %c0_148, %c0_149] : memref<1x16x640xf32, #tpu.memory_space<vmem>>, vector<1x16x640xf32>
    %111 = vector.shape_cast %110 : vector<1x16x640xf32> to vector<16x640xf32>
    %112 = arith.addf %111, %109 : vector<16x640xf32>
    %c0_150 = arith.constant 0 : index
    %c0_151 = arith.constant 0 : index
    %c0_152 = arith.constant 0 : index
    %113 = vector.load %arg4[%c0_150, %c0_151, %c0_152] : memref<1x16x640xf32, #tpu.memory_space<vmem>>, vector<1x16x640xf32>
    %114 = vector.shape_cast %113 : vector<1x16x640xf32> to vector<16x640xf32>
    %115 = vector.shape_cast %112 : vector<16x640xf32> to vector<1x16x640xf32>
    tpu.vector_store %arg4[%c0_150, %c0_151, %c0_152], %115 {strides = array<i32>} : memref<1x16x640xf32, #tpu.memory_space<vmem>>, vector<1x16x640xf32>,
    return
  }
  func.func @transform_0(%arg0: i32) -> (i32, i32, i32) {
    %c0_i32 = arith.constant 0 : i32
    %c0_i32_0 = arith.constant 0 : i32
    %c0_i32_1 = arith.constant 0 : i32
    return %arg0, %c0_i32, %c0_i32_0 : i32, i32, i32
  }
  func.func @transform_1(%arg0: i32) -> (i32, i32) {
    %c0_i32 = arith.constant 0 : i32
    %c0_i32_0 = arith.constant 0 : i32
    %c0_i32_1 = arith.constant 0 : i32
    return %c0_i32, %c0_i32_0 : i32, i32
  }
  func.func @transform_2(%arg0: i32) -> (i32, i32, i32) {
    %c0_i32 = arith.constant 0 : i32
    %c0_i32_0 = arith.constant 0 : i32
    %c0_i32_1 = arith.constant 0 : i32
    %c0_i32_2 = arith.constant 0 : i32
    return %c0_i32, %c0_i32_0, %c0_i32_1 : i32, i32, i32
  }
  func.func @transform_3(%arg0: i32) -> (i32, i32, i32) {
    %c0_i32 = arith.constant 0 : i32
    %c0_i32_0 = arith.constant 0 : i32
    %c0_i32_1 = arith.constant 0 : i32
    return %arg0, %c0_i32, %c0_i32_0 : i32, i32, i32
  }
}

</mosaic_0001>

<llo_original>
// kernel: tpu_custom_call.1
$region0: #{tpu_custom_call.1}
  #allocation0 [shape = 'u32[]', space=smem, size = 0x4, offset = 0x4, fixed_abs, tag = 'smem constant byte address 0x4 - core index']
  #allocation1 [shape = 'u32[144,128]{1,0:T(1,128)}', space=vmem, size = 0x12000, scoped, tag = 'internal scratch']
  #allocation2 [shape = 'f32[16,1536]{1,0:T(8,128)}', space=vmem, size = 0x18000, scoped, tag = 'scratch operand']
  #allocation3 [shape = 'f32[144,640]{1,0:T(8,128)}', space=vmem, size = 0x5a000, scoped, tag = 'scratch operand']
  %s0 = inlined_call_operand.vmem [shape: f32[2,9,1536], index: 0, kind: input, shape index: {}]
  %s1 = inlined_call_operand.vmem [shape: f32[16,9], index: 1, kind: input, shape index: {}]
  %s2 = inlined_call_operand.vmem [shape: f32[4,16,144], index: 2, kind: input, shape index: {}]
  %s3 = inlined_call_operand.hbm [shape: f32[2,16,640], index: 3, kind: output, shape index: {}]
  %s4 = sld [smem:[#allocation0]]
  $region45: #{tpu_custom_call.1} parent=0
    _
  %s6 = ssub.s32 1, %s4
  %s7 = scalar_select 0, %s6, %s4
  $region1: #{tpu_custom_call.1} parent=0
    #allocation4 [shape = 'u8[81920]{0}', space=vmem, size = 0x14000, scoped, tag = 'output window, operand 0']
    #allocation5 [shape = 's32[2]{0}', space=sflag, size = 0x8, scoped, tag = 'scoped memory for tpu_custom_call.1']
    %8 = vsyncpa [#allocation5], 0
    %s9 = scalar_lea.sflag [#allocation5], 1
    %10 = vsyncpa %s9, 0
    loop: start=0, step=1, limit=4
    $region2: #{tpu_custom_call.1} parent=1 // loop_pre_header
      _
    $region3: #{tpu_custom_call.1} parent=1 // loop_header
      %s12 = sphi 0, %s16
      %p13 = scmp.ge.s32.totalorder %s12, 4
      %s22 = sphi 0, %s24
      %s25 = sphi 0, %s22
      %s26 = sphi 0, %s25
      %s42 = sphi 0, %s26
      %s46 = sphi 0, %s46
      %s48 = sphi 0, %s46
      %s49 = sphi 0, %s48
      %s63 = sphi 0, %s49
      %s67 = sphi 0, %s67
      %s69 = sphi 0, %s67
      %s70 = sphi 0, %s69
      %s84 = sphi 0, %s70
      %s90 = sphi 0, %s92
      %s93 = sphi 0, %s90
      %s94 = sphi 0, %s93
      %s110 = sphi 0, %s94
    $region4: #{tpu_custom_call.1} parent=1 // loop_header_branch
      %15 = sbr.rel (%p13) target = $region8
    $region5: #{tpu_custom_call.1} parent=1 // loop_body
      %s17 = ssub.s32 %s12, 1
      %s18 = ssub.s32 %s12, 2
      %s19 = sadd.s32 %s12, 1
      %s20 = ssub.s32 %s12, %s19
      %p21 = scmp.eq.s32.totalorder %s20, 0
      %s23 = sadd.s32 %s22, 1
      %s24 = scalar_select %p21, %s22, %s23
      %p27 = pneg %p21
      %p28 = scmp.eq.s32.totalorder %s12, 1
      %p29 = por %p27, %p28
      %p30 = scmp.ne.s32.totalorder %s22, %s25
      %p31 = scmp.eq.s32.totalorder %s12, 0
      %p32 = por %p30, %p31
      %p33 = scmp.ne.s32.totalorder %s22, %s25
      %p34 = scmp.eq.s32.totalorder %s17, 1
      %p35 = por %p33, %p34
      %p36 = scmp.ne.s32.totalorder %s25, %s26
      %p37 = scmp.eq.s32.totalorder %s17, 0
      %p38 = por %p36, %p37
      %p39 = scmp.ne.s32.totalorder %s25, %s26
      %p40 = scmp.eq.s32.totalorder %s18, 1
      %p41 = por %p39, %p40
      %p43 = scmp.ne.s32.totalorder %s26, %s42
      %p44 = scmp.eq.s32.totalorder %s18, 0
      %p45 = por %p43, %p44
      %s47 = sadd.s32 %s46, 1
      %p50 = scmp.eq.s32.totalorder %s12, 1
      %p51 = scmp.ne.s32.totalorder %s46, %s48
      %p52 = scmp.eq.s32.totalorder %s12, 0
      %p53 = por %p51, %p52
      %p54 = scmp.ne.s32.totalorder %s46, %s48
      %p55 = scmp.eq.s32.totalorder %s17, 1
      %p56 = por %p54, %p55
      %p57 = scmp.ne.s32.totalorder %s48, %s49
      %p58 = scmp.eq.s32.totalorder %s17, 0
      %p59 = por %p57, %p58
      %p60 = scmp.ne.s32.totalorder %s48, %s49
      %p61 = scmp.eq.s32.totalorder %s18, 1
      %p62 = por %p60, %p61
      %p64 = scmp.ne.s32.totalorder %s49, %s63
      %p65 = scmp.eq.s32.totalorder %s18, 0
      %p66 = por %p64, %p65
      %s68 = sadd.s32 %s67, 1
      %p71 = scmp.eq.s32.totalorder %s12, 1
      %p72 = scmp.ne.s32.totalorder %s67, %s69
      %p73 = scmp.eq.s32.totalorder %s12, 0
      %p74 = por %p72, %p73
      %p75 = scmp.ne.s32.totalorder %s67, %s69
      %p76 = scmp.eq.s32.totalorder %s17, 1
      %p77 = por %p75, %p76
      %p78 = scmp.ne.s32.totalorder %s69, %s70
      %p79 = scmp.eq.s32.totalorder %s17, 0
      %p80 = por %p78, %p79
      %p81 = scmp.ne.s32.totalorder %s69, %s70
      %p82 = scmp.eq.s32.totalorder %s18, 1
      %p83 = por %p81, %p82
      %p85 = scmp.ne.s32.totalorder %s70, %s84
      %p86 = scmp.eq.s32.totalorder %s18, 0
      %p87 = por %p85, %p86
      %s88 = ssub.s32 %s12, %s19
      %p89 = scmp.eq.s32.totalorder %s88, 0
      %s91 = sadd.s32 %s90, 1
      %s92 = scalar_select %p89, %s90, %s91
      %p95 = pneg %p89
      %p96 = scmp.eq.s32.totalorder %s12, 1
      %p97 = por %p95, %p96
      %p98 = scmp.ne.s32.totalorder %s90, %s93
      %p99 = scmp.eq.s32.totalorder %s12, 0
      %p100 = por %p98, %p99
      %p101 = scmp.ne.s32.totalorder %s90, %s93
      %p102 = scmp.eq.s32.totalorder %s17, 1
      %p103 = por %p101, %p102
      %p104 = scmp.ne.s32.totalorder %s93, %s94
      %p105 = scmp.eq.s32.totalorder %s17, 0
      %p106 = por %p104, %p105
      %p107 = scmp.ne.s32.totalorder %s93, %s94
      %p108 = scmp.eq.s32.totalorder %s18, 1
      %p109 = por %p107, %p108
      %p111 = scmp.ne.s32.totalorder %s94, %s110
      %p112 = scmp.eq.s32.totalorder %s18, 0
      %p113 = por %p111, %p112
      %p114 = scmp.le.s32.totalorder 1, %s12
      %p115 = scmp.lt.s32.totalorder %s12, 3
      %p116 = pnand %p114, %p115
      %p117 = pneg %p116
      // Predicated region
      $region9: #{tpu_custom_call.1} parent=5 // pred_check
        _
      $region10: #{tpu_custom_call.1} parent=5 // pred_check_branch
        %119 = sbr.rel (%p116) target = $region12
      $region11: #{tpu_custom_call.1} parent=5 // pred_region
        %s120 = ssub.s32 %s12, 1
        // Predicated region
        $region13: #{tpu_custom_call.1} parent=11 // pred_check
          %p121 = pneg %p59
        $region14: #{tpu_custom_call.1} parent=11 // pred_check_branch
          %123 = sbr.rel (%p121) target = $region16
        $region15: #{tpu_custom_call.1} parent=11 // pred_region
          _
        $region16: #{tpu_custom_call.1} parent=11 // pred_fallthru
          _
        // Predicated region
        $region17: #{tpu_custom_call.1} parent=11 // pred_check
          %p124 = pneg %p80
        $region18: #{tpu_custom_call.1} parent=11 // pred_check_branch
          %126 = sbr.rel (%p124) target = $region20
        $region19: #{tpu_custom_call.1} parent=11 // pred_region
          _
        $region20: #{tpu_custom_call.1} parent=11 // pred_fallthru
          _
      $region12: #{tpu_custom_call.1} parent=5 // pred_fallthru
        _
      %p127 = scmp.lt.s32.totalorder %s12, 2
      // Predicated region
      $region21: #{tpu_custom_call.1} parent=5 // pred_check
        %p128 = pneg %p127
      $region22: #{tpu_custom_call.1} parent=5 // pred_check_branch
        %130 = sbr.rel (%p128) target = $region24
      $region23: #{tpu_custom_call.1} parent=5 // pred_region
        // Predicated region
        $region25: #{tpu_custom_call.1} parent=23 // pred_check
          %p131 = pneg %p32
        $region26: #{tpu_custom_call.1} parent=23 // pred_check_branch
          %133 = sbr.rel (%p131) target = $region28
        $region27: #{tpu_custom_call.1} parent=23 // pred_region
          %p134 = scmp.lt.s32.totalorder %s12, 1
          %s135 = scalar_select %p134, %s12, 1
          %s136 = smul.addr %s135, 24
          %s137 = smul.addr %s136, 8
          %s138 = scalar_lea.vmem %s0, %s137
        $region28: #{tpu_custom_call.1} parent=23 // pred_fallthru
          _
      $region24: #{tpu_custom_call.1} parent=5 // pred_fallthru
        _
      %p139 = scmp.le.s32.totalorder 1, %s12
      %p140 = scmp.lt.s32.totalorder %s12, 3
      %p141 = pnand %p139, %p140
      %p142 = pneg %p141
      // Predicated region
      $region29: #{tpu_custom_call.1} parent=5 // pred_check
        _
      $region30: #{tpu_custom_call.1} parent=5 // pred_check_branch
        %144 = sbr.rel (%p141) target = $region32
      $region31: #{tpu_custom_call.1} parent=5 // pred_region
        %s145 = ssub.s32 %s12, 1
        %p146 = scmp.lt.s32.totalorder %s17, 1
        %s147 = scalar_select %p146, %s17, 1
        %s148 = smul.addr %s147, 24
        %s149 = smul.addr %s148, 8
        %s150 = scalar_lea.vmem %s0, %s149
        %p151 = pneg %p38
        %p152 = pneg %p35
        %p153 = pneg %p59
        %p154 = pneg %p56
        %p155 = pneg %p80
        %p156 = pneg %p77
        %p157 = pneg %p106
        %p158 = pneg %p103
        %s159 = sand.u32 %s93, 1
        %s160 = scalar_lea.sflag [#allocation5], %s159
        %s161 = sand.u32 %s93, 1
        %s162 = smul.addr %s161, 80
        %s163 = scalar_lea.vmem [#allocation4], %s162
        %p164 = scmp.lt.s32.totalorder %s17, 1
        %s165 = scalar_select %p164, %s17, 1
        %s166 = smul.addr %s165, 24
        %s167 = smul.addr %s166, 8
        %s168 = scalar_lea.vmem %s0, %s167
        %v169 = vld [vmem:[%s168] sm:$0xff]
        %v170 = vld [vmem:[%s168 + $0x8] sm:$0xff]
        %v171 = vld [vmem:[%s168 + $0x10] sm:$0xff]
        %v172 = vld [vmem:[%s168 + $0x18] sm:$0xff]
        %v173 = vld [vmem:[%s168 + $0x20] sm:$0xff]
        %v174 = vld [vmem:[%s168 + $0x28] sm:$0xff]
        %v175 = vld [vmem:[%s168 + $0x30] sm:$0xff]
        %v176 = vld [vmem:[%s168 + $0x38] sm:$0xff]
        %v177 = vld [vmem:[%s168 + $0x40] sm:$0xff]
        %v178 = vld [vmem:[%s168 + $0x48] sm:$0xff]
        %v179 = vld [vmem:[%s168 + $0x50] sm:$0xff]
        %v180 = vld [vmem:[%s168 + $0x58] sm:$0xff]
        %v181 = vld [vmem:[%s168 + $0x60] sm:$0x1]
        %v182 = vld [vmem:[%s168 + $0x68] sm:$0x1]
        %v183 = vld [vmem:[%s168 + $0x70] sm:$0x1]
        %v184 = vld [vmem:[%s168 + $0x78] sm:$0x1]
        %v185 = vld [vmem:[%s168 + $0x80] sm:$0x1]
        %v186 = vld [vmem:[%s168 + $0x88] sm:$0x1]
        %v187 = vld [vmem:[%s168 + $0x90] sm:$0x1]
        %v188 = vld [vmem:[%s168 + $0x98] sm:$0x1]
        %v189 = vld [vmem:[%s168 + $0xa0] sm:$0x1]
        %v190 = vld [vmem:[%s168 + $0xa8] sm:$0x1]
        %v191 = vld [vmem:[%s168 + $0xb0] sm:$0x1]
        %v192 = vld [vmem:[%s168 + $0xb8] sm:$0x1]
        %v193 = vmax.f32 %v169, 0.0
        %v194 = vmax.f32 %v170, 0.0
        %v195 = vmax.f32 %v171, 0.0
        %v196 = vmax.f32 %v172, 0.0
        %v197 = vmax.f32 %v173, 0.0
        %v198 = vmax.f32 %v174, 0.0
        %v199 = vmax.f32 %v175, 0.0
        %v200 = vmax.f32 %v176, 0.0
        %v201 = vmax.f32 %v177, 0.0
        %v202 = vmax.f32 %v178, 0.0
        %v203 = vmax.f32 %v179, 0.0
        %v204 = vmax.f32 %v180, 0.0
        %v205 = vmax.f32 %v181, 0.0
        %v206 = vmax.f32 %v182, 0.0
        %v207 = vmax.f32 %v183, 0.0
        %v208 = vmax.f32 %v184, 0.0
        %v209 = vmax.f32 %v185, 0.0
        %v210 = vmax.f32 %v186, 0.0
        %v211 = vmax.f32 %v187, 0.0
        %v212 = vmax.f32 %v188, 0.0
        %v213 = vmax.f32 %v189, 0.0
        %v214 = vmax.f32 %v190, 0.0
        %v215 = vmax.f32 %v191, 0.0
        %v216 = vmax.f32 %v192, 0.0
        %v217 = vld [vmem:[%s1] sm:$0xff]
        %v218 = vld [vmem:[%s1 + $0x8] sm:$0xff]
        %vm219 = vcmask 72704
        %v221 = vsel %vm219, %v217, 0
        %v224 = vsel %vm219, %v218, 0
        %vm226 = vcmask 1040384
        %v228 = vsel %vm226, %v205, 0
        %v231 = vsel %vm226, %v206, 0
        %v234 = vsel %vm226, %v207, 0
        %v237 = vsel %vm226, %v208, 0
        %v240 = vsel %vm226, %v209, 0
        %v243 = vsel %vm226, %v210, 0
        %v246 = vsel %vm226, %v211, 0
        %v249 = vsel %vm226, %v212, 0
        %v252 = vsel %vm226, %v213, 0
        %v255 = vsel %vm226, %v214, 0
        %v258 = vsel %vm226, %v215, 0
        %v261 = vsel %vm226, %v216, 0
        %263 = vmatprep.subr.mxu0 %v194
        %264 = vmatpush1.msra.mxu0 %v193
        %265 = vmatprep.subr.mxu0 %v231
        %266 = vmatpush1.msra.mxu0 %v228
        %267 = vmatprep.subr.mxu0 0.0
        %268 = vmatpush1.msra.mxu0 0.0
        %269 = vmatprep.subr.mxu0 0.0
        %270 = vmatpush1.msra.mxu0 0.0
        %271 = vmatprep.subr.mxu0 0.0
        %272 = vmatpush1.msra.mxu0 0.0
        %273 = vmatprep.subr.mxu0 0.0
        %274 = vmatpush1.msra.mxu0 0.0
        %275 = vmatprep.subr.mxu0 0.0
        %276 = vmatpush1.msra.mxu0 0.0
        %277 = vmatprep.subr.mxu0 0.0
        %278 = vmatpush1.msra.mxu0 0.0
        %279 = vmatprep.subr.mxu0 0.0
        %280 = vmatpush1.msra.mxu0 0.0
        %281 = vmatprep.subr.mxu0 0.0
        %282 = vmatpush1.msra.mxu0 0.0
        %283 = vmatprep.subr.mxu0 0.0
        %284 = vmatpush1.msra.mxu0 0.0
        %285 = vmatprep.subr.mxu0 0.0
        %286 = vmatpush1.msra.mxu0 0.0
        %287 = vmatprep.subr.mxu0 0.0
        %288 = vmatpush1.msra.mxu0 0.0
        %289 = vmatprep.subr.mxu0 0.0
        %290 = vmatpush1.msra.mxu0 0.0
        %291 = vmatprep.subr.mxu0 0.0
        %292 = vmatpush1.msra.mxu0 0.0
        %293 = vmatprep.subr.mxu0 0.0
        %294 = vmatpush1.msra.mxu0 0.0
        %295 = vmatprep.subr.mxu0 0.0
        %296 = vmatpush1.msra.mxu0 0.0
        %297 = vmatprep.subr.mxu0 0.0
        %298 = vmatpush1.msra.mxu0 0.0
        %299 = vmatprep.subr.mxu0 0.0
        %300 = vmatpush1.msra.mxu0 0.0
        %301 = vmatprep.subr.mxu0 0.0
        %302 = vmatpush1.msra.mxu0 0.0
        %303 = vmatprep.subr.mxu0 0.0
        %304 = vmatpush1.msra.mxu0 0.0
        %305 = vmatprep.subr.mxu0 0.0
        %306 = vmatpush1.msra.mxu0 0.0
        %307 = vmatprep.subr.mxu0 0.0
        %308 = vmatpush1.msra.mxu0 0.0
        %309 = vmatprep.subr.mxu0 0.0
        %310 = vmatpush1.msra.mxu0 0.0
        %311 = vmatprep.subr.mxu0 0.0
        %312 = vmatpush1.msra.mxu0 0.0
        %313 = vmatprep.subr.mxu0 0.0
        %314 = vmatpush1.msra.mxu0 0.0
        %315 = vmatprep.subr.mxu0 0.0
        %316 = vmatpush1.msra.mxu0 0.0
        %317 = vmatprep.subr.mxu0 0.0
        %318 = vmatpush1.msra.mxu0 0.0
        %319 = vmatprep.subr.mxu0 0.0
        %320 = vmatpush1.msra.mxu0 0.0
        %321 = vmatprep.subr.mxu0 0.0
        %322 = vmatpush1.msra.mxu0 0.0
        %323 = vmatprep.subr.mxu0 0.0
        %324 = vmatpush1.msra.mxu0 0.0
        %325 = vmatprep.subr.mxu0 0.0
        %326 = vmatpush1.msra.mxu0 0.0
        %327 = vmatprep.mubr.f32.mxu0 0.0
        %328 = vmatmul.mubr.f32.gmra.mrb[0].mxu0 %v221
        %v329 = vpop.f32.mrb[0].mxu0
        %v330 = vadd.f32 0.0, %v329
        %v331 = vpop.f32.mrb[0].mxu0
        %v332 = vadd.f32 0.0, %v331
        %333 = vmatprep.mubr.f32.mxu0 0.0
        %334 = vmatmul.mubr.f32.gmra.mrb[0].mxu0 %v224
        %v335 = vpop.f32.mrb[0].mxu0
        %v336 = vadd.f32 0.0, %v335
        %v337 = vpop.f32.mrb[0].mxu0
        %v338 = vadd.f32 0.0, %v337
        %339 = vdwg.mxu0
        %340 = vmatprep.subr.mxu0 %v196
        %341 = vmatpush1.msra.mxu0 %v195
        %342 = vmatprep.subr.mxu0 %v237
        %343 = vmatpush1.msra.mxu0 %v234
        %344 = vmatprep.subr.mxu0 0.0
        %345 = vmatpush1.msra.mxu0 0.0
        %346 = vmatprep.subr.mxu0 0.0
        %347 = vmatpush1.msra.mxu0 0.0
        %348 = vmatprep.subr.mxu0 0.0
        %349 = vmatpush1.msra.mxu0 0.0
        %350 = vmatprep.subr.mxu0 0.0
        %351 = vmatpush1.msra.mxu0 0.0
        %352 = vmatprep.subr.mxu0 0.0
        %353 = vmatpush1.msra.mxu0 0.0
        %354 = vmatprep.subr.mxu0 0.0
        %355 = vmatpush1.msra.mxu0 0.0
        %356 = vmatprep.subr.mxu0 0.0
        %357 = vmatpush1.msra.mxu0 0.0
        %358 = vmatprep.subr.mxu0 0.0
        %359 = vmatpush1.msra.mxu0 0.0
        %360 = vmatprep.subr.mxu0 0.0
        %361 = vmatpush1.msra.mxu0 0.0
        %362 = vmatprep.subr.mxu0 0.0
        %363 = vmatpush1.msra.mxu0 0.0
        %364 = vmatprep.subr.mxu0 0.0
        %365 = vmatpush1.msra.mxu0 0.0
        %366 = vmatprep.subr.mxu0 0.0
        %367 = vmatpush1.msra.mxu0 0.0
        %368 = vmatprep.subr.mxu0 0.0
        %369 = vmatpush1.msra.mxu0 0.0
        %370 = vmatprep.subr.mxu0 0.0
        %371 = vmatpush1.msra.mxu0 0.0
        %372 = vmatprep.subr.mxu0 0.0
        %373 = vmatpush1.msra.mxu0 0.0
        %374 = vmatprep.subr.mxu0 0.0
        %375 = vmatpush1.msra.mxu0 0.0
        %376 = vmatprep.subr.mxu0 0.0
        %377 = vmatpush1.msra.mxu0 0.0
        %378 = vmatprep.subr.mxu0 0.0
        %379 = vmatpush1.msra.mxu0 0.0
        %380 = vmatprep.subr.mxu0 0.0
        %381 = vmatpush1.msra.mxu0 0.0
        %382 = vmatprep.subr.mxu0 0.0
        %383 = vmatpush1.msra.mxu0 0.0
        %384 = vmatprep.subr.mxu0 0.0
        %385 = vmatpush1.msra.mxu0 0.0
        %386 = vmatprep.subr.mxu0 0.0
        %387 = vmatpush1.msra.mxu0 0.0
        %388 = vmatprep.subr.mxu0 0.0
        %389 = vmatpush1.msra.mxu0 0.0
        %390 = vmatprep.subr.mxu0 0.0
        %391 = vmatpush1.msra.mxu0 0.0
        %392 = vmatprep.subr.mxu0 0.0
        %393 = vmatpush1.msra.mxu0 0.0
        %394 = vmatprep.subr.mxu0 0.0
        %395 = vmatpush1.msra.mxu0 0.0
        %396 = vmatprep.subr.mxu0 0.0
        %397 = vmatpush1.msra.mxu0 0.0
        %398 = vmatprep.subr.mxu0 0.0
        %399 = vmatpush1.msra.mxu0 0.0
        %400 = vmatprep.subr.mxu0 0.0
        %401 = vmatpush1.msra.mxu0 0.0
        %402 = vmatprep.subr.mxu0 0.0
        %403 = vmatpush1.msra.mxu0 0.0
        %404 = vmatprep.mubr.f32.mxu0 0.0
        %405 = vmatmul.mubr.f32.gmra.mrb[0].mxu0 %v221
        %v406 = vpop.f32.mrb[0].mxu0
        %v407 = vadd.f32 0.0, %v406
        %v408 = vpop.f32.mrb[0].mxu0
        %v409 = vadd.f32 0.0, %v408
        %410 = vmatprep.mubr.f32.mxu0 0.0
        %411 = vmatmul.mubr.f32.gmra.mrb[0].mxu0 %v224
        %v412 = vpop.f32.mrb[0].mxu0
        %v413 = vadd.f32 0.0, %v412
        %v414 = vpop.f32.mrb[0].mxu0
        %v415 = vadd.f32 0.0, %v414
        %416 = vdwg.mxu0
        %417 = vmatprep.subr.mxu0 %v198
        %418 = vmatpush1.msra.mxu0 %v197
        %419 = vmatprep.subr.mxu0 %v243
        %420 = vmatpush1.msra.mxu0 %v240
        %421 = vmatprep.subr.mxu0 0.0
        %422 = vmatpush1.msra.mxu0 0.0
        %423 = vmatprep.subr.mxu0 0.0
        %424 = vmatpush1.msra.mxu0 0.0
        %425 = vmatprep.subr.mxu0 0.0
        %426 = vmatpush1.msra.mxu0 0.0
        %427 = vmatprep.subr.mxu0 0.0
        %428 = vmatpush1.msra.mxu0 0.0
        %429 = vmatprep.subr.mxu0 0.0
        %430 = vmatpush1.msra.mxu0 0.0
        %431 = vmatprep.subr.mxu0 0.0
        %432 = vmatpush1.msra.mxu0 0.0
        %433 = vmatprep.subr.mxu0 0.0
        %434 = vmatpush1.msra.mxu0 0.0
        %435 = vmatprep.subr.mxu0 0.0
        %436 = vmatpush1.msra.mxu0 0.0
        %437 = vmatprep.subr.mxu0 0.0
        %438 = vmatpush1.msra.mxu0 0.0
        %439 = vmatprep.subr.mxu0 0.0
        %440 = vmatpush1.msra.mxu0 0.0
        %441 = vmatprep.subr.mxu0 0.0
        %442 = vmatpush1.msra.mxu0 0.0
        %443 = vmatprep.subr.mxu0 0.0
        %444 = vmatpush1.msra.mxu0 0.0
        %445 = vmatprep.subr.mxu0 0.0
        %446 = vmatpush1.msra.mxu0 0.0
        %447 = vmatprep.subr.mxu0 0.0
        %448 = vmatpush1.msra.mxu0 0.0
        %449 = vmatprep.subr.mxu0 0.0
        %450 = vmatpush1.msra.mxu0 0.0
        %451 = vmatprep.subr.mxu0 0.0
        %452 = vmatpush1.msra.mxu0 0.0
        %453 = vmatprep.subr.mxu0 0.0
        %454 = vmatpush1.msra.mxu0 0.0
        %455 = vmatprep.subr.mxu0 0.0
        %456 = vmatpush1.msra.mxu0 0.0
        %457 = vmatprep.subr.mxu0 0.0
        %458 = vmatpush1.msra.mxu0 0.0
        %459 = vmatprep.subr.mxu0 0.0
        %460 = vmatpush1.msra.mxu0 0.0
        %461 = vmatprep.subr.mxu0 0.0
        %462 = vmatpush1.msra.mxu0 0.0
        %463 = vmatprep.subr.mxu0 0.0
        %464 = vmatpush1.msra.mxu0 0.0
        %465 = vmatprep.subr.mxu0 0.0
        %466 = vmatpush1.msra.mxu0 0.0
        %467 = vmatprep.subr.mxu0 0.0
        %468 = vmatpush1.msra.mxu0 0.0
        %469 = vmatprep.subr.mxu0 0.0
        %470 = vmatpush1.msra.mxu0 0.0
        %471 = vmatprep.subr.mxu0 0.0
        %472 = vmatpush1.msra.mxu0 0.0
        %473 = vmatprep.subr.mxu0 0.0
        %474 = vmatpush1.msra.mxu0 0.0
        %475 = vmatprep.subr.mxu0 0.0
        %476 = vmatpush1.msra.mxu0 0.0
        %477 = vmatprep.subr.mxu0 0.0
        %478 = vmatpush1.msra.mxu0 0.0
        %479 = vmatprep.subr.mxu0 0.0
        %480 = vmatpush1.msra.mxu0 0.0
        %481 = vmatprep.mubr.f32.mxu0 0.0
        %482 = vmatmul.mubr.f32.gmra.mrb[0].mxu0 %v221
        %v483 = vpop.f32.mrb[0].mxu0
        %v484 = vadd.f32 0.0, %v483
        %v485 = vpop.f32.mrb[0].mxu0
        %v486 = vadd.f32 0.0, %v485
        %487 = vmatprep.mubr.f32.mxu0 0.0
        %488 = vmatmul.mubr.f32.gmra.mrb[0].mxu0 %v224
        %v489 = vpop.f32.mrb[0].mxu0
        %v490 = vadd.f32 0.0, %v489
        %v491 = vpop.f32.mrb[0].mxu0
        %v492 = vadd.f32 0.0, %v491
        %493 = vdwg.mxu0
        %494 = vmatprep.subr.mxu0 %v200
        %495 = vmatpush1.msra.mxu0 %v199
        %496 = vmatprep.subr.mxu0 %v249
        %497 = vmatpush1.msra.mxu0 %v246
        %498 = vmatprep.subr.mxu0 0.0
        %499 = vmatpush1.msra.mxu0 0.0
        %500 = vmatprep.subr.mxu0 0.0
        %501 = vmatpush1.msra.mxu0 0.0
        %502 = vmatprep.subr.mxu0 0.0
        %503 = vmatpush1.msra.mxu0 0.0
        %504 = vmatprep.subr.mxu0 0.0
        %505 = vmatpush1.msra.mxu0 0.0
        %506 = vmatprep.subr.mxu0 0.0
        %507 = vmatpush1.msra.mxu0 0.0
        %508 = vmatprep.subr.mxu0 0.0
        %509 = vmatpush1.msra.mxu0 0.0
        %510 = vmatprep.subr.mxu0 0.0
        %511 = vmatpush1.msra.mxu0 0.0
        %512 = vmatprep.subr.mxu0 0.0
        %513 = vmatpush1.msra.mxu0 0.0
        %514 = vmatprep.subr.mxu0 0.0
        %515 = vmatpush1.msra.mxu0 0.0
        %516 = vmatprep.subr.mxu0 0.0
        %517 = vmatpush1.msra.mxu0 0.0
        %518 = vmatprep.subr.mxu0 0.0
        %519 = vmatpush1.msra.mxu0 0.0
        %520 = vmatprep.subr.mxu0 0.0
        %521 = vmatpush1.msra.mxu0 0.0
        %522 = vmatprep.subr.mxu0 0.0
        %523 = vmatpush1.msra.mxu0 0.0
        %524 = vmatprep.subr.mxu0 0.0
        %525 = vmatpush1.msra.mxu0 0.0
        %526 = vmatprep.subr.mxu0 0.0
        %527 = vmatpush1.msra.mxu0 0.0
        %528 = vmatprep.subr.mxu0 0.0
        %529 = vmatpush1.msra.mxu0 0.0
        %530 = vmatprep.subr.mxu0 0.0
        %531 = vmatpush1.msra.mxu0 0.0
        %532 = vmatprep.subr.mxu0 0.0
        %533 = vmatpush1.msra.mxu0 0.0
        %534 = vmatprep.subr.mxu0 0.0
        %535 = vmatpush1.msra.mxu0 0.0
        %536 = vmatprep.subr.mxu0 0.0
        %537 = vmatpush1.msra.mxu0 0.0
        %538 = vmatprep.subr.mxu0 0.0
        %539 = vmatpush1.msra.mxu0 0.0
        %540 = vmatprep.subr.mxu0 0.0
        %541 = vmatpush1.msra.mxu0 0.0
        %542 = vmatprep.subr.mxu0 0.0
        %543 = vmatpush1.msra.mxu0 0.0
        %544 = vmatprep.subr.mxu0 0.0
        %545 = vmatpush1.msra.mxu0 0.0
        %546 = vmatprep.subr.mxu0 0.0
        %547 = vmatpush1.msra.mxu0 0.0
        %548 = vmatprep.subr.mxu0 0.0
        %549 = vmatpush1.msra.mxu0 0.0
        %550 = vmatprep.subr.mxu0 0.0
        %551 = vmatpush1.msra.mxu0 0.0
        %552 = vmatprep.subr.mxu0 0.0
        %553 = vmatpush1.msra.mxu0 0.0
        %554 = vmatprep.subr.mxu0 0.0
        %555 = vmatpush1.msra.mxu0 0.0
        %556 = vmatprep.subr.mxu0 0.0
        %557 = vmatpush1.msra.mxu0 0.0
        %558 = vmatprep.mubr.f32.mxu0 0.0
        %559 = vmatmul.mubr.f32.gmra.mrb[0].mxu0 %v221
        %v560 = vpop.f32.mrb[0].mxu0
        %v561 = vadd.f32 0.0, %v560
        %v562 = vpop.f32.mrb[0].mxu0
        %v563 = vadd.f32 0.0, %v562
        %564 = vmatprep.mubr.f32.mxu0 0.0
        %565 = vmatmul.mubr.f32.gmra.mrb[0].mxu0 %v224
        %v566 = vpop.f32.mrb[0].mxu0
        %v567 = vadd.f32 0.0, %v566
        %v568 = vpop.f32.mrb[0].mxu0
        %v569 = vadd.f32 0.0, %v568
        %570 = vdwg.mxu0
        %571 = vmatprep.subr.mxu0 %v202
        %572 = vmatpush1.msra.mxu0 %v201
        %573 = vmatprep.subr.mxu0 %v255
        %574 = vmatpush1.msra.mxu0 %v252
        %575 = vmatprep.subr.mxu0 0.0
        %576 = vmatpush1.msra.mxu0 0.0
        %577 = vmatprep.subr.mxu0 0.0
        %578 = vmatpush1.msra.mxu0 0.0
        %579 = vmatprep.subr.mxu0 0.0
        %580 = vmatpush1.msra.mxu0 0.0
        %581 = vmatprep.subr.mxu0 0.0
        %582 = vmatpush1.msra.mxu0 0.0
        %583 = vmatprep.subr.mxu0 0.0
        %584 = vmatpush1.msra.mxu0 0.0
        %585 = vmatprep.subr.mxu0 0.0
        %586 = vmatpush1.msra.mxu0 0.0
        %587 = vmatprep.subr.mxu0 0.0
        %588 = vmatpush1.msra.mxu0 0.0
        %589 = vmatprep.subr.mxu0 0.0
        %590 = vmatpush1.msra.mxu0 0.0
        %591 = vmatprep.subr.mxu0 0.0
        %592 = vmatpush1.msra.mxu0 0.0
        %593 = vmatprep.subr.mxu0 0.0
        %594 = vmatpush1.msra.mxu0 0.0
        %595 = vmatprep.subr.mxu0 0.0
        %596 = vmatpush1.msra.mxu0 0.0
        %597 = vmatprep.subr.mxu0 0.0
        %598 = vmatpush1.msra.mxu0 0.0
        %599 = vmatprep.subr.mxu0 0.0
        %600 = vmatpush1.msra.mxu0 0.0
        %601 = vmatprep.subr.mxu0 0.0
        %602 = vmatpush1.msra.mxu0 0.0
        %603 = vmatprep.subr.mxu0 0.0
        %604 = vmatpush1.msra.mxu0 0.0
        %605 = vmatprep.subr.mxu0 0.0
        %606 = vmatpush1.msra.mxu0 0.0
        %607 = vmatprep.subr.mxu0 0.0
        %608 = vmatpush1.msra.mxu0 0.0
        %609 = vmatprep.subr.mxu0 0.0
        %610 = vmatpush1.msra.mxu0 0.0
        %611 = vmatprep.subr.mxu0 0.0
        %612 = vmatpush1.msra.mxu0 0.0
        %613 = vmatprep.subr.mxu0 0.0
        %614 = vmatpush1.msra.mxu0 0.0
        %615 = vmatprep.subr.mxu0 0.0
        %616 = vmatpush1.msra.mxu0 0.0
        %617 = vmatprep.subr.mxu0 0.0
        %618 = vmatpush1.msra.mxu0 0.0
        %619 = vmatprep.subr.mxu0 0.0
        %620 = vmatpush1.msra.mxu0 0.0
        %621 = vmatprep.subr.mxu0 0.0
        %622 = vmatpush1.msra.mxu0 0.0
        %623 = vmatprep.subr.mxu0 0.0
        %624 = vmatpush1.msra.mxu0 0.0
        %625 = vmatprep.subr.mxu0 0.0
        %626 = vmatpush1.msra.mxu0 0.0
        %627 = vmatprep.subr.mxu0 0.0
        %628 = vmatpush1.msra.mxu0 0.0
        %629 = vmatprep.subr.mxu0 0.0
        %630 = vmatpush1.msra.mxu0 0.0
        %631 = vmatprep.subr.mxu0 0.0
        %632 = vmatpush1.msra.mxu0 0.0
        %633 = vmatprep.subr.mxu0 0.0
        %634 = vmatpush1.msra.mxu0 0.0
        %635 = vmatprep.mubr.f32.mxu0 0.0
        %636 = vmatmul.mubr.f32.gmra.mrb[0].mxu0 %v221
        %v637 = vpop.f32.mrb[0].mxu0
        %v638 = vadd.f32 0.0, %v637
        %v639 = vpop.f32.mrb[0].mxu0
        %v640 = vadd.f32 0.0, %v639
        %641 = vmatprep.mubr.f32.mxu0 0.0
        %642 = vmatmul.mubr.f32.gmra.mrb[0].mxu0 %v224
        %v643 = vpop.f32.mrb[0].mxu0
        %v644 = vadd.f32 0.0, %v643
        %v645 = vpop.f32.mrb[0].mxu0
        %v646 = vadd.f32 0.0, %v645
        %647 = vdwg.mxu0
        %648 = vmatprep.subr.mxu0 %v204
        %649 = vmatpush1.msra.mxu0 %v203
        %650 = vmatprep.subr.mxu0 %v261
        %651 = vmatpush1.msra.mxu0 %v258
        %652 = vmatprep.subr.mxu0 0.0
        %653 = vmatpush1.msra.mxu0 0.0
        %654 = vmatprep.subr.mxu0 0.0
        %655 = vmatpush1.msra.mxu0 0.0
        %656 = vmatprep.subr.mxu0 0.0
        %657 = vmatpush1.msra.mxu0 0.0
        %658 = vmatprep.subr.mxu0 0.0
        %659 = vmatpush1.msra.mxu0 0.0
        %660 = vmatprep.subr.mxu0 0.0
        %661 = vmatpush1.msra.mxu0 0.0
        %662 = vmatprep.subr.mxu0 0.0
        %663 = vmatpush1.msra.mxu0 0.0
        %664 = vmatprep.subr.mxu0 0.0
        %665 = vmatpush1.msra.mxu0 0.0
        %666 = vmatprep.subr.mxu0 0.0
        %667 = vmatpush1.msra.mxu0 0.0
        %668 = vmatprep.subr.mxu0 0.0
        %669 = vmatpush1.msra.mxu0 0.0
        %670 = vmatprep.subr.mxu0 0.0
        %671 = vmatpush1.msra.mxu0 0.0
        %672 = vmatprep.subr.mxu0 0.0
        %673 = vmatpush1.msra.mxu0 0.0
        %674 = vmatprep.subr.mxu0 0.0
        %675 = vmatpush1.msra.mxu0 0.0
        %676 = vmatprep.subr.mxu0 0.0
        %677 = vmatpush1.msra.mxu0 0.0
        %678 = vmatprep.subr.mxu0 0.0
        %679 = vmatpush1.msra.mxu0 0.0
        %680 = vmatprep.subr.mxu0 0.0
        %681 = vmatpush1.msra.mxu0 0.0
        %682 = vmatprep.subr.mxu0 0.0
        %683 = vmatpush1.msra.mxu0 0.0
        %684 = vmatprep.subr.mxu0 0.0
        %685 = vmatpush1.msra.mxu0 0.0
        %686 = vmatprep.subr.mxu0 0.0
        %687 = vmatpush1.msra.mxu0 0.0
        %688 = vmatprep.subr.mxu0 0.0
        %689 = vmatpush1.msra.mxu0 0.0
        %690 = vmatprep.subr.mxu0 0.0
        %691 = vmatpush1.msra.mxu0 0.0
        %692 = vmatprep.subr.mxu0 0.0
        %693 = vmatpush1.msra.mxu0 0.0
        %694 = vmatprep.subr.mxu0 0.0
        %695 = vmatpush1.msra.mxu0 0.0
        %696 = vmatprep.subr.mxu0 0.0
        %697 = vmatpush1.msra.mxu0 0.0
        %698 = vmatprep.subr.mxu0 0.0
        %699 = vmatpush1.msra.mxu0 0.0
        %700 = vmatprep.subr.mxu0 0.0
        %701 = vmatpush1.msra.mxu0 0.0
        %702 = vmatprep.subr.mxu0 0.0
        %703 = vmatpush1.msra.mxu0 0.0
        %704 = vmatprep.subr.mxu0 0.0
        %705 = vmatpush1.msra.mxu0 0.0
        %706 = vmatprep.subr.mxu0 0.0
        %707 = vmatpush1.msra.mxu0 0.0
        %708 = vmatprep.subr.mxu0 0.0
        %709 = vmatpush1.msra.mxu0 0.0
        %710 = vmatprep.subr.mxu0 0.0
        %711 = vmatpush1.msra.mxu0 0.0
        %712 = vmatprep.mubr.f32.mxu0 0.0
        %713 = vmatmul.mubr.f32.gmra.mrb[0].mxu0 %v221
        %v714 = vpop.f32.mrb[0].mxu0
        %v715 = vadd.f32 0.0, %v714
        %v716 = vpop.f32.mrb[0].mxu0
        %v717 = vadd.f32 0.0, %v716
        %718 = vmatprep.mubr.f32.mxu0 0.0
        %719 = vmatmul.mubr.f32.gmra.mrb[0].mxu0 %v224
        %v720 = vpop.f32.mrb[0].mxu0
        %v721 = vadd.f32 0.0, %v720
        %v722 = vpop.f32.mrb[0].mxu0
        %v723 = vadd.f32 0.0, %v722
        %724 = vdwg.mxu0
        %725 = vst [vmem:[#allocation2] sm:$0xff] %v330
        %726 = vst [vmem:[#allocation2 + $0x8] sm:$0xff] %v332
        %727 = vst [vmem:[#allocation2 + $0x10] sm:$0xff] %v407
        %728 = vst [vmem:[#allocation2 + $0x18] sm:$0xff] %v409
        %729 = vst [vmem:[#allocation2 + $0x20] sm:$0xff] %v484
        %730 = vst [vmem:[#allocation2 + $0x28] sm:$0xff] %v486
        %731 = vst [vmem:[#allocation2 + $0x30] sm:$0xff] %v561
        %732 = vst [vmem:[#allocation2 + $0x38] sm:$0xff] %v563
        %733 = vst [vmem:[#allocation2 + $0x40] sm:$0xff] %v638
        %734 = vst [vmem:[#allocation2 + $0x48] sm:$0xff] %v640
        %735 = vst [vmem:[#allocation2 + $0x50] sm:$0xff] %v715
        %736 = vst [vmem:[#allocation2 + $0x58] sm:$0xff] %v717
        %737 = vst [vmem:[#allocation2 + $0x60] sm:$0xff] %v336
        %738 = vst [vmem:[#allocation2 + $0x68] sm:$0xff] %v338
        %739 = vst [vmem:[#allocation2 + $0x70] sm:$0xff] %v413
        %740 = vst [vmem:[#allocation2 + $0x78] sm:$0xff] %v415
        %741 = vst [vmem:[#allocation2 + $0x80] sm:$0xff] %v490
        %742 = vst [vmem:[#allocation2 + $0x88] sm:$0xff] %v492
        %743 = vst [vmem:[#allocation2 + $0x90] sm:$0xff] %v567
        %744 = vst [vmem:[#allocation2 + $0x98] sm:$0xff] %v569
        %745 = vst [vmem:[#allocation2 + $0xa0] sm:$0xff] %v644
        %746 = vst [vmem:[#allocation2 + $0xa8] sm:$0xff] %v646
        %747 = vst [vmem:[#allocation2 + $0xb0] sm:$0xff] %v721
        %748 = vst [vmem:[#allocation2 + $0xb8] sm:$0xff] %v723
        %v749 = vld [vmem:[#allocation2 + $0x8] sm:$0xff]
        %v750 = vld [vmem:[#allocation2 + $0x10] sm:$0xff]
        %v751 = vld [vmem:[#allocation2 + $0x18] sm:$0xff]
        %v752 = vld [vmem:[#allocation2 + $0x20] sm:$0xff]
        %v753 = vld [vmem:[#allocation2 + $0x28] sm:$0xff]
        %v754 = vld [vmem:[#allocation2 + $0x30] sm:$0xff]
        %v755 = vld [vmem:[#allocation2 + $0x68] sm:$0xff]
        %v756 = vld [vmem:[#allocation2 + $0x70] sm:$0xff]
        %v757 = vld [vmem:[#allocation2 + $0x78] sm:$0xff]
        %v758 = vld [vmem:[#allocation2 + $0x80] sm:$0xff]
        %v759 = vld [vmem:[#allocation2 + $0x88] sm:$0xff]
        %v760 = vld [vmem:[#allocation2 + $0x90] sm:$0xff]
        %773 = vrot.lane.b32.xlu0 %v749, 17
        %v774 = vpop.permute.xlu0 %773
        %775 = vrot.lane.b32.xlu0 %v750, 17
        %v776 = vpop.permute.xlu0 %775
        %777 = vrot.lane.b32.xlu0 %v751, 17
        %v778 = vpop.permute.xlu0 %777
        %779 = vrot.lane.b32.xlu0 %v752, 17
        %v780 = vpop.permute.xlu0 %779
        %781 = vrot.lane.b32.xlu0 %v753, 17
        %v782 = vpop.permute.xlu0 %781
        %783 = vrot.lane.b32.xlu0 %v754, 17
        %v784 = vpop.permute.xlu0 %783
        %785 = vrot.lane.b32.xlu0 %v755, 17
        %v786 = vpop.permute.xlu0 %785
        %787 = vrot.lane.b32.xlu0 %v756, 17
        %v788 = vpop.permute.xlu0 %787
        %789 = vrot.lane.b32.xlu0 %v757, 17
        %v790 = vpop.permute.xlu0 %789
        %791 = vrot.lane.b32.xlu0 %v758, 17
        %v792 = vpop.permute.xlu0 %791
        %793 = vrot.lane.b32.xlu0 %v759, 17
        %v794 = vpop.permute.xlu0 %793
        %795 = vrot.lane.b32.xlu0 %v760, 17
        %v796 = vpop.permute.xlu0 %795
        %vm797 = vcmask 138240
        %v798 = vsel %vm797, %v774, %v776
        %v799 = vsel %vm797, %v776, %v778
        %v800 = vsel %vm797, %v778, %v780
        %v801 = vsel %vm797, %v780, %v782
        %v802 = vsel %vm797, %v782, %v784
        %v803 = vsel %vm797, %v786, %v788
        %v804 = vsel %vm797, %v788, %v790
        %v805 = vsel %vm797, %v790, %v792
        %v806 = vsel %vm797, %v792, %v794
        %v807 = vsel %vm797, %v794, %v796
        %818 = vst [vmem:[#allocation3] sm:$0xff] %v798
        %819 = vst [vmem:[#allocation3 + $0x8] sm:$0xff] %v799
        %820 = vst [vmem:[#allocation3 + $0x10] sm:$0xff] %v800
        %821 = vst [vmem:[#allocation3 + $0x18] sm:$0xff] %v801
        %822 = vst [vmem:[#allocation3 + $0x20] sm:$0xff] %v802
        %823 = vst [vmem:[#allocation3 + $0x28] sm:$0xff] %v803
        %824 = vst [vmem:[#allocation3 + $0x30] sm:$0xff] %v804
        %825 = vst [vmem:[#allocation3 + $0x38] sm:$0xff] %v805
        %826 = vst [vmem:[#allocation3 + $0x40] sm:$0xff] %v806
        %827 = vst [vmem:[#allocation3 + $0x48] sm:$0xff] %v807
        %v828 = vld [vmem:[#allocation2 + $0x8] sm:$0xff]
        %v829 = vld [vmem:[#allocation2 + $0x10] sm:$0xff]
        %v830 = vld [vmem:[#allocation2 + $0x18] sm:$0xff]
        %v831 = vld [vmem:[#allocation2 + $0x20] sm:$0xff]
        %v832 = vld [vmem:[#allocation2 + $0x28] sm:$0xff]
        %v833 = vld [vmem:[#allocation2 + $0x30] sm:$0xff]
        %v834 = vld [vmem:[#allocation2 + $0x68] sm:$0xff]
        %v835 = vld [vmem:[#allocation2 + $0x70] sm:$0xff]
        %v836 = vld [vmem:[#allocation2 + $0x78] sm:$0xff]
        %v837 = vld [vmem:[#allocation2 + $0x80] sm:$0xff]
        %v838 = vld [vmem:[#allocation2 + $0x88] sm:$0xff]
        %v839 = vld [vmem:[#allocation2 + $0x90] sm:$0xff]
        %852 = vrot.lane.b32.xlu0 %v828, 12
        %v853 = vpop.permute.xlu0 %852
        %854 = vrot.lane.b32.xlu0 %v829, 12
        %v855 = vpop.permute.xlu0 %854
        %856 = vrot.lane.b32.xlu0 %v830, 12
        %v857 = vpop.permute.xlu0 %856
        %858 = vrot.lane.b32.xlu0 %v831, 12
        %v859 = vpop.permute.xlu0 %858
        %860 = vrot.lane.b32.xlu0 %v832, 12
        %v861 = vpop.permute.xlu0 %860
        %862 = vrot.lane.b32.xlu0 %v833, 12
        %v863 = vpop.permute.xlu0 %862
        %864 = vrot.lane.b32.xlu0 %v834, 12
        %v865 = vpop.permute.xlu0 %864
        %866 = vrot.lane.b32.xlu0 %v835, 12
        %v867 = vpop.permute.xlu0 %866
        %868 = vrot.lane.b32.xlu0 %v836, 12
        %v869 = vpop.permute.xlu0 %868
        %870 = vrot.lane.b32.xlu0 %v837, 12
        %v871 = vpop.permute.xlu0 %870
        %872 = vrot.lane.b32.xlu0 %v838, 12
        %v873 = vpop.permute.xlu0 %872
        %874 = vrot.lane.b32.xlu0 %v839, 12
        %v875 = vpop.permute.xlu0 %874
        %vm876 = vcmask 97280
        %v877 = vsel %vm876, %v853, %v855
        %v878 = vsel %vm876, %v855, %v857
        %v879 = vsel %vm876, %v857, %v859
        %v880 = vsel %vm876, %v859, %v861
        %v881 = vsel %vm876, %v861, %v863
        %v882 = vsel %vm876, %v865, %v867
        %v883 = vsel %vm876, %v867, %v869
        %v884 = vsel %vm876, %v869, %v871
        %v885 = vsel %vm876, %v871, %v873
        %v886 = vsel %vm876, %v873, %v875
        %897 = vst [vmem:[#allocation3 + $0x50] sm:$0xff] %v877
        %898 = vst [vmem:[#allocation3 + $0x58] sm:$0xff] %v878
        %899 = vst [vmem:[#allocation3 + $0x60] sm:$0xff] %v879
        %900 = vst [vmem:[#allocation3 + $0x68] sm:$0xff] %v880
        %901 = vst [vmem:[#allocation3 + $0x70] sm:$0xff] %v881
        %902 = vst [vmem:[#allocation3 + $0x78] sm:$0xff] %v882
        %903 = vst [vmem:[#allocation3 + $0x80] sm:$0xff] %v883
        %904 = vst [vmem:[#allocation3 + $0x88] sm:$0xff] %v884
        %905 = vst [vmem:[#allocation3 + $0x90] sm:$0xff] %v885
        %906 = vst [vmem:[#allocation3 + $0x98] sm:$0xff] %v886
        %v907 = vld [vmem:[#allocation2 + $0x8] sm:$0xff]
        %v908 = vld [vmem:[#allocation2 + $0x10] sm:$0xff]
        %v909 = vld [vmem:[#allocation2 + $0x18] sm:$0xff]
        %v910 = vld [vmem:[#allocation2 + $0x20] sm:$0xff]
        %v911 = vld [vmem:[#allocation2 + $0x28] sm:$0xff]
        %v912 = vld [vmem:[#allocation2 + $0x30] sm:$0xff]
        %v913 = vld [vmem:[#allocation2 + $0x68] sm:$0xff]
        %v914 = vld [vmem:[#allocation2 + $0x70] sm:$0xff]
        %v915 = vld [vmem:[#allocation2 + $0x78] sm:$0xff]
        %v916 = vld [vmem:[#allocation2 + $0x80] sm:$0xff]
        %v917 = vld [vmem:[#allocation2 + $0x88] sm:$0xff]
        %v918 = vld [vmem:[#allocation2 + $0x90] sm:$0xff]
        %931 = vrot.lane.b32.xlu0 %v907, 7
        %v932 = vpop.permute.xlu0 %931
        %933 = vrot.lane.b32.xlu0 %v908, 7
        %v934 = vpop.permute.xlu0 %933
        %935 = vrot.lane.b32.xlu0 %v909, 7
        %v936 = vpop.permute.xlu0 %935
        %937 = vrot.lane.b32.xlu0 %v910, 7
        %v938 = vpop.permute.xlu0 %937
        %939 = vrot.lane.b32.xlu0 %v911, 7
        %v940 = vpop.permute.xlu0 %939
        %941 = vrot.lane.b32.xlu0 %v912, 7
        %v942 = vpop.permute.xlu0 %941
        %943 = vrot.lane.b32.xlu0 %v913, 7
        %v944 = vpop.permute.xlu0 %943
        %945 = vrot.lane.b32.xlu0 %v914, 7
        %v946 = vpop.permute.xlu0 %945
        %947 = vrot.lane.b32.xlu0 %v915, 7
        %v948 = vpop.permute.xlu0 %947
        %949 = vrot.lane.b32.xlu0 %v916, 7
        %v950 = vpop.permute.xlu0 %949
        %951 = vrot.lane.b32.xlu0 %v917, 7
        %v952 = vpop.permute.xlu0 %951
        %953 = vrot.lane.b32.xlu0 %v918, 7
        %v954 = vpop.permute.xlu0 %953
        %vm955 = vcmask 56320
        %v956 = vsel %vm955, %v932, %v934
        %v957 = vsel %vm955, %v934, %v936
        %v958 = vsel %vm955, %v936, %v938
        %v959 = vsel %vm955, %v938, %v940
        %v960 = vsel %vm955, %v940, %v942
        %v961 = vsel %vm955, %v944, %v946
        %v962 = vsel %vm955, %v946, %v948
        %v963 = vsel %vm955, %v948, %v950
        %v964 = vsel %vm955, %v950, %v952
        %v965 = vsel %vm955, %v952, %v954
        %976 = vst [vmem:[#allocation3 + $0xa0] sm:$0xff] %v956
        %977 = vst [vmem:[#allocation3 + $0xa8] sm:$0xff] %v957
        %978 = vst [vmem:[#allocation3 + $0xb0] sm:$0xff] %v958
        %979 = vst [vmem:[#allocation3 + $0xb8] sm:$0xff] %v959
        %980 = vst [vmem:[#allocation3 + $0xc0] sm:$0xff] %v960
        %981 = vst [vmem:[#allocation3 + $0xc8] sm:$0xff] %v961
        %982 = vst [vmem:[#allocation3 + $0xd0] sm:$0xff] %v962
        %983 = vst [vmem:[#allocation3 + $0xd8] sm:$0xff] %v963
        %984 = vst [vmem:[#allocation3 + $0xe0] sm:$0xff] %v964
        %985 = vst [vmem:[#allocation3 + $0xe8] sm:$0xff] %v965
        %v986 = vld [vmem:[#allocation2 + $0x18] sm:$0xff]
        %v987 = vld [vmem:[#allocation2 + $0x20] sm:$0xff]
        %v988 = vld [vmem:[#allocation2 + $0x28] sm:$0xff]
        %v989 = vld [vmem:[#allocation2 + $0x30] sm:$0xff]
        %v990 = vld [vmem:[#allocation2 + $0x38] sm:$0xff]
        %v991 = vld [vmem:[#allocation2 + $0x40] sm:$0xff]
        %v992 = vld [vmem:[#allocation2 + $0x78] sm:$0xff]
        %v993 = vld [vmem:[#allocation2 + $0x80] sm:$0xff]
        %v994 = vld [vmem:[#allocation2 + $0x88] sm:$0xff]
        %v995 = vld [vmem:[#allocation2 + $0x90] sm:$0xff]
        %v996 = vld [vmem:[#allocation2 + $0x98] sm:$0xff]
        %v997 = vld [vmem:[#allocation2 + $0xa0] sm:$0xff]
        %1010 = vrot.lane.b32.xlu0 %v986, 83
        %v1011 = vpop.permute.xlu0 %1010
        %1012 = vrot.lane.b32.xlu0 %v987, 83
        %v1013 = vpop.permute.xlu0 %1012
        %1014 = vrot.lane.b32.xlu0 %v988, 83
        %v1015 = vpop.permute.xlu0 %1014
        %1016 = vrot.lane.b32.xlu0 %v989, 83
        %v1017 = vpop.permute.xlu0 %1016
        %1018 = vrot.lane.b32.xlu0 %v990, 83
        %v1019 = vpop.permute.xlu0 %1018
        %1020 = vrot.lane.b32.xlu0 %v991, 83
        %v1021 = vpop.permute.xlu0 %1020
        %1022 = vrot.lane.b32.xlu0 %v992, 83
        %v1023 = vpop.permute.xlu0 %1022
        %1024 = vrot.lane.b32.xlu0 %v993, 83
        %v1025 = vpop.permute.xlu0 %1024
        %1026 = vrot.lane.b32.xlu0 %v994, 83
        %v1027 = vpop.permute.xlu0 %1026
        %1028 = vrot.lane.b32.xlu0 %v995, 83
        %v1029 = vpop.permute.xlu0 %1028
        %1030 = vrot.lane.b32.xlu0 %v996, 83
        %v1031 = vpop.permute.xlu0 %1030
        %1032 = vrot.lane.b32.xlu0 %v997, 83
        %v1033 = vpop.permute.xlu0 %1032
        %vm1034 = vcmask 678912
        %v1035 = vsel %vm1034, %v1011, %v1013
        %v1036 = vsel %vm1034, %v1013, %v1015
        %v1037 = vsel %vm1034, %v1015, %v1017
        %v1038 = vsel %vm1034, %v1017, %v1019
        %v1039 = vsel %vm1034, %v1019, %v1021
        %v1040 = vsel %vm1034, %v1023, %v1025
        %v1041 = vsel %vm1034, %v1025, %v1027
        %v1042 = vsel %vm1034, %v1027, %v1029
        %v1043 = vsel %vm1034, %v1029, %v1031
        %v1044 = vsel %vm1034, %v1031, %v1033
        %1055 = vst [vmem:[#allocation3 + $0xf0] sm:$0xff] %v1035
        %1056 = vst [vmem:[#allocation3 + $0xf8] sm:$0xff] %v1036
        %1057 = vst [vmem:[#allocation3 + $0x100] sm:$0xff] %v1037
        %1058 = vst [vmem:[#allocation3 + $0x108] sm:$0xff] %v1038
        %1059 = vst [vmem:[#allocation3 + $0x110] sm:$0xff] %v1039
        %1060 = vst [vmem:[#allocation3 + $0x118] sm:$0xff] %v1040
        %1061 = vst [vmem:[#allocation3 + $0x120] sm:$0xff] %v1041
        %1062 = vst [vmem:[#allocation3 + $0x128] sm:$0xff] %v1042
        %1063 = vst [vmem:[#allocation3 + $0x130] sm:$0xff] %v1043
        %1064 = vst [vmem:[#allocation3 + $0x138] sm:$0xff] %v1044
        %v1065 = vld [vmem:[#allocation2 + $0x18] sm:$0xff]
        %v1066 = vld [vmem:[#allocation2 + $0x20] sm:$0xff]
        %v1067 = vld [vmem:[#allocation2 + $0x28] sm:$0xff]
        %v1068 = vld [vmem:[#allocation2 + $0x30] sm:$0xff]
        %v1069 = vld [vmem:[#allocation2 + $0x38] sm:$0xff]
        %v1070 = vld [vmem:[#allocation2 + $0x40] sm:$0xff]
        %v1071 = vld [vmem:[#allocation2 + $0x78] sm:$0xff]
        %v1072 = vld [vmem:[#allocation2 + $0x80] sm:$0xff]
        %v1073 = vld [vmem:[#allocation2 + $0x88] sm:$0xff]
        %v1074 = vld [vmem:[#allocation2 + $0x90] sm:$0xff]
        %v1075 = vld [vmem:[#allocation2 + $0x98] sm:$0xff]
        %v1076 = vld [vmem:[#allocation2 + $0xa0] sm:$0xff]
        %1089 = vrot.lane.b32.xlu0 %v1065, 78
        %v1090 = vpop.permute.xlu0 %1089
        %1091 = vrot.lane.b32.xlu0 %v1066, 78
        %v1092 = vpop.permute.xlu0 %1091
        %1093 = vrot.lane.b32.xlu0 %v1067, 78
        %v1094 = vpop.permute.xlu0 %1093
        %1095 = vrot.lane.b32.xlu0 %v1068, 78
        %v1096 = vpop.permute.xlu0 %1095
        %1097 = vrot.lane.b32.xlu0 %v1069, 78
        %v1098 = vpop.permute.xlu0 %1097
        %1099 = vrot.lane.b32.xlu0 %v1070, 78
        %v1100 = vpop.permute.xlu0 %1099
        %1101 = vrot.lane.b32.xlu0 %v1071, 78
        %v1102 = vpop.permute.xlu0 %1101
        %1103 = vrot.lane.b32.xlu0 %v1072, 78
        %v1104 = vpop.permute.xlu0 %1103
        %1105 = vrot.lane.b32.xlu0 %v1073, 78
        %v1106 = vpop.permute.xlu0 %1105
        %1107 = vrot.lane.b32.xlu0 %v1074, 78
        %v1108 = vpop.permute.xlu0 %1107
        %1109 = vrot.lane.b32.xlu0 %v1075, 78
        %v1110 = vpop.permute.xlu0 %1109
        %1111 = vrot.lane.b32.xlu0 %v1076, 78
        %v1112 = vpop.permute.xlu0 %1111
        %vm1113 = vcmask 637952
        %v1114 = vsel %vm1113, %v1090, %v1092
        %v1115 = vsel %vm1113, %v1092, %v1094
        %v1116 = vsel %vm1113, %v1094, %v1096
        %v1117 = vsel %vm1113, %v1096, %v1098
        %v1118 = vsel %vm1113, %v1098, %v1100
        %v1119 = vsel %vm1113, %v1102, %v1104
        %v1120 = vsel %vm1113, %v1104, %v1106
        %v1121 = vsel %vm1113, %v1106, %v1108
        %v1122 = vsel %vm1113, %v1108, %v1110
        %v1123 = vsel %vm1113, %v1110, %v1112
        %1134 = vst [vmem:[#allocation3 + $0x140] sm:$0xff] %v1114
        %1135 = vst [vmem:[#allocation3 + $0x148] sm:$0xff] %v1115
        %1136 = vst [vmem:[#allocation3 + $0x150] sm:$0xff] %v1116
        %1137 = vst [vmem:[#allocation3 + $0x158] sm:$0xff] %v1117
        %1138 = vst [vmem:[#allocation3 + $0x160] sm:$0xff] %v1118
        %1139 = vst [vmem:[#allocation3 + $0x168] sm:$0xff] %v1119
        %1140 = vst [vmem:[#allocation3 + $0x170] sm:$0xff] %v1120
        %1141 = vst [vmem:[#allocation3 + $0x178] sm:$0xff] %v1121
        %1142 = vst [vmem:[#allocation3 + $0x180] sm:$0xff] %v1122
        %1143 = vst [vmem:[#allocation3 + $0x188] sm:$0xff] %v1123
        %v1144 = vld [vmem:[#allocation2 + $0x18] sm:$0xff]
        %v1145 = vld [vmem:[#allocation2 + $0x20] sm:$0xff]
        %v1146 = vld [vmem:[#allocation2 + $0x28] sm:$0xff]
        %v1147 = vld [vmem:[#allocation2 + $0x30] sm:$0xff]
        %v1148 = vld [vmem:[#allocation2 + $0x38] sm:$0xff]
        %v1149 = vld [vmem:[#allocation2 + $0x40] sm:$0xff]
        %v1150 = vld [vmem:[#allocation2 + $0x78] sm:$0xff]
        %v1151 = vld [vmem:[#allocation2 + $0x80] sm:$0xff]
        %v1152 = vld [vmem:[#allocation2 + $0x88] sm:$0xff]
        %v1153 = vld [vmem:[#allocation2 + $0x90] sm:$0xff]
        %v1154 = vld [vmem:[#allocation2 + $0x98] sm:$0xff]
        %v1155 = vld [vmem:[#allocation2 + $0xa0] sm:$0xff]
        %1168 = vrot.lane.b32.xlu0 %v1144, 73
        %v1169 = vpop.permute.xlu0 %1168
        %1170 = vrot.lane.b32.xlu0 %v1145, 73
        %v1171 = vpop.permute.xlu0 %1170
        %1172 = vrot.lane.b32.xlu0 %v1146, 73
        %v1173 = vpop.permute.xlu0 %1172
        %1174 = vrot.lane.b32.xlu0 %v1147, 73
        %v1175 = vpop.permute.xlu0 %1174
        %1176 = vrot.lane.b32.xlu0 %v1148, 73
        %v1177 = vpop.permute.xlu0 %1176
        %1178 = vrot.lane.b32.xlu0 %v1149, 73
        %v1179 = vpop.permute.xlu0 %1178
        %1180 = vrot.lane.b32.xlu0 %v1150, 73
        %v1181 = vpop.permute.xlu0 %1180
        %1182 = vrot.lane.b32.xlu0 %v1151, 73
        %v1183 = vpop.permute.xlu0 %1182
        %1184 = vrot.lane.b32.xlu0 %v1152, 73
        %v1185 = vpop.permute.xlu0 %1184
        %1186 = vrot.lane.b32.xlu0 %v1153, 73
        %v1187 = vpop.permute.xlu0 %1186
        %1188 = vrot.lane.b32.xlu0 %v1154, 73
        %v1189 = vpop.permute.xlu0 %1188
        %1190 = vrot.lane.b32.xlu0 %v1155, 73
        %v1191 = vpop.permute.xlu0 %1190
        %vm1192 = vcmask 596992
        %v1193 = vsel %vm1192, %v1169, %v1171
        %v1194 = vsel %vm1192, %v1171, %v1173
        %v1195 = vsel %vm1192, %v1173, %v1175
        %v1196 = vsel %vm1192, %v1175, %v1177
        %v1197 = vsel %vm1192, %v1177, %v1179
        %v1198 = vsel %vm1192, %v1181, %v1183
        %v1199 = vsel %vm1192, %v1183, %v1185
        %v1200 = vsel %vm1192, %v1185, %v1187
        %v1201 = vsel %vm1192, %v1187, %v1189
        %v1202 = vsel %vm1192, %v1189, %v1191
        %1213 = vst [vmem:[#allocation3 + $0x190] sm:$0xff] %v1193
        %1214 = vst [vmem:[#allocation3 + $0x198] sm:$0xff] %v1194
        %1215 = vst [vmem:[#allocation3 + $0x1a0] sm:$0xff] %v1195
        %1216 = vst [vmem:[#allocation3 + $0x1a8] sm:$0xff] %v1196
        %1217 = vst [vmem:[#allocation3 + $0x1b0] sm:$0xff] %v1197
        %1218 = vst [vmem:[#allocation3 + $0x1b8] sm:$0xff] %v1198
        %1219 = vst [vmem:[#allocation3 + $0x1c0] sm:$0xff] %v1199
        %1220 = vst [vmem:[#allocation3 + $0x1c8] sm:$0xff] %v1200
        %1221 = vst [vmem:[#allocation3 + $0x1d0] sm:$0xff] %v1201
        %1222 = vst [vmem:[#allocation3 + $0x1d8] sm:$0xff] %v1202
        %v1223 = vld [vmem:[#allocation2 + $0x20] sm:$0xff]
        %v1224 = vld [vmem:[#allocation2 + $0x28] sm:$0xff]
        %v1225 = vld [vmem:[#allocation2 + $0x30] sm:$0xff]
        %v1226 = vld [vmem:[#allocation2 + $0x38] sm:$0xff]
        %v1227 = vld [vmem:[#allocation2 + $0x40] sm:$0xff]
        %v1228 = vld [vmem:[#allocation2 + $0x48] sm:$0xff]
        %v1229 = vld [vmem:[#allocation2 + $0x80] sm:$0xff]
        %v1230 = vld [vmem:[#allocation2 + $0x88] sm:$0xff]
        %v1231 = vld [vmem:[#allocation2 + $0x90] sm:$0xff]
        %v1232 = vld [vmem:[#allocation2 + $0x98] sm:$0xff]
        %v1233 = vld [vmem:[#allocation2 + $0xa0] sm:$0xff]
        %v1234 = vld [vmem:[#allocation2 + $0xa8] sm:$0xff]
        %1247 = vrot.lane.b32.xlu0 %v1223, 21
        %v1248 = vpop.permute.xlu0 %1247
        %1249 = vrot.lane.b32.xlu0 %v1224, 21
        %v1250 = vpop.permute.xlu0 %1249
        %1251 = vrot.lane.b32.xlu0 %v1225, 21
        %v1252 = vpop.permute.xlu0 %1251
        %1253 = vrot.lane.b32.xlu0 %v1226, 21
        %v1254 = vpop.permute.xlu0 %1253
        %1255 = vrot.lane.b32.xlu0 %v1227, 21
        %v1256 = vpop.permute.xlu0 %1255
        %1257 = vrot.lane.b32.xlu0 %v1228, 21
        %v1258 = vpop.permute.xlu0 %1257
        %1259 = vrot.lane.b32.xlu0 %v1229, 21
        %v1260 = vpop.permute.xlu0 %1259
        %1261 = vrot.lane.b32.xlu0 %v1230, 21
        %v1262 = vpop.permute.xlu0 %1261
        %1263 = vrot.lane.b32.xlu0 %v1231, 21
        %v1264 = vpop.permute.xlu0 %1263
        %1265 = vrot.lane.b32.xlu0 %v1232, 21
        %v1266 = vpop.permute.xlu0 %1265
        %1267 = vrot.lane.b32.xlu0 %v1233, 21
        %v1268 = vpop.permute.xlu0 %1267
        %1269 = vrot.lane.b32.xlu0 %v1234, 21
        %v1270 = vpop.permute.xlu0 %1269
        %vm1271 = vcmask 171008
        %v1272 = vsel %vm1271, %v1248, %v1250
        %v1273 = vsel %vm1271, %v1250, %v1252
        %v1274 = vsel %vm1271, %v1252, %v1254
        %v1275 = vsel %vm1271, %v1254, %v1256
        %v1276 = vsel %vm1271, %v1256, %v1258
        %v1277 = vsel %vm1271, %v1260, %v1262
        %v1278 = vsel %vm1271, %v1262, %v1264
        %v1279 = vsel %vm1271, %v1264, %v1266
        %v1280 = vsel %vm1271, %v1266, %v1268
        %v1281 = vsel %vm1271, %v1268, %v1270
        %1292 = vst [vmem:[#allocation3 + $0x1e0] sm:$0xff] %v1272
        %1293 = vst [vmem:[#allocation3 + $0x1e8] sm:$0xff] %v1273
        %1294 = vst [vmem:[#allocation3 + $0x1f0] sm:$0xff] %v1274
        %1295 = vst [vmem:[#allocation3 + $0x1f8] sm:$0xff] %v1275
        %1296 = vst [vmem:[#allocation3 + $0x200] sm:$0xff] %v1276
        %1297 = vst [vmem:[#allocation3 + $0x208] sm:$0xff] %v1277
        %1298 = vst [vmem:[#allocation3 + $0x210] sm:$0xff] %v1278
        %1299 = vst [vmem:[#allocation3 + $0x218] sm:$0xff] %v1279
        %1300 = vst [vmem:[#allocation3 + $0x220] sm:$0xff] %v1280
        %1301 = vst [vmem:[#allocation3 + $0x228] sm:$0xff] %v1281
        %v1302 = vld [vmem:[#allocation2 + $0x20] sm:$0xff]
        %v1303 = vld [vmem:[#allocation2 + $0x28] sm:$0xff]
        %v1304 = vld [vmem:[#allocation2 + $0x30] sm:$0xff]
        %v1305 = vld [vmem:[#allocation2 + $0x38] sm:$0xff]
        %v1306 = vld [vmem:[#allocation2 + $0x40] sm:$0xff]
        %v1307 = vld [vmem:[#allocation2 + $0x48] sm:$0xff]
        %v1308 = vld [vmem:[#allocation2 + $0x80] sm:$0xff]
        %v1309 = vld [vmem:[#allocation2 + $0x88] sm:$0xff]
        %v1310 = vld [vmem:[#allocation2 + $0x90] sm:$0xff]
        %v1311 = vld [vmem:[#allocation2 + $0x98] sm:$0xff]
        %v1312 = vld [vmem:[#allocation2 + $0xa0] sm:$0xff]
        %v1313 = vld [vmem:[#allocation2 + $0xa8] sm:$0xff]
        %1326 = vrot.lane.b32.xlu0 %v1302, 16
        %v1327 = vpop.permute.xlu0 %1326
        %1328 = vrot.lane.b32.xlu0 %v1303, 16
        %v1329 = vpop.permute.xlu0 %1328
        %1330 = vrot.lane.b32.xlu0 %v1304, 16
        %v1331 = vpop.permute.xlu0 %1330
        %1332 = vrot.lane.b32.xlu0 %v1305, 16
        %v1333 = vpop.permute.xlu0 %1332
        %1334 = vrot.lane.b32.xlu0 %v1306, 16
        %v1335 = vpop.permute.xlu0 %1334
        %1336 = vrot.lane.b32.xlu0 %v1307, 16
        %v1337 = vpop.permute.xlu0 %1336
        %1338 = vrot.lane.b32.xlu0 %v1308, 16
        %v1339 = vpop.permute.xlu0 %1338
        %1340 = vrot.lane.b32.xlu0 %v1309, 16
        %v1341 = vpop.permute.xlu0 %1340
        %1342 = vrot.lane.b32.xlu0 %v1310, 16
        %v1343 = vpop.permute.xlu0 %1342
        %1344 = vrot.lane.b32.xlu0 %v1311, 16
        %v1345 = vpop.permute.xlu0 %1344
        %1346 = vrot.lane.b32.xlu0 %v1312, 16
        %v1347 = vpop.permute.xlu0 %1346
        %1348 = vrot.lane.b32.xlu0 %v1313, 16
        %v1349 = vpop.permute.xlu0 %1348
        %vm1350 = vcmask 130048
        %v1351 = vsel %vm1350, %v1327, %v1329
        %v1352 = vsel %vm1350, %v1329, %v1331
        %v1353 = vsel %vm1350, %v1331, %v1333
        %v1354 = vsel %vm1350, %v1333, %v1335
        %v1355 = vsel %vm1350, %v1335, %v1337
        %v1356 = vsel %vm1350, %v1339, %v1341
        %v1357 = vsel %vm1350, %v1341, %v1343
        %v1358 = vsel %vm1350, %v1343, %v1345
        %v1359 = vsel %vm1350, %v1345, %v1347
        %v1360 = vsel %vm1350, %v1347, %v1349
        %1371 = vst [vmem:[#allocation3 + $0x230] sm:$0xff] %v1351
        %1372 = vst [vmem:[#allocation3 + $0x238] sm:$0xff] %v1352
        %1373 = vst [vmem:[#allocation3 + $0x240] sm:$0xff] %v1353
        %1374 = vst [vmem:[#allocation3 + $0x248] sm:$0xff] %v1354
        %1375 = vst [vmem:[#allocation3 + $0x250] sm:$0xff] %v1355
        %1376 = vst [vmem:[#allocation3 + $0x258] sm:$0xff] %v1356
        %1377 = vst [vmem:[#allocation3 + $0x260] sm:$0xff] %v1357
        %1378 = vst [vmem:[#allocation3 + $0x268] sm:$0xff] %v1358
        %1379 = vst [vmem:[#allocation3 + $0x270] sm:$0xff] %v1359
        %1380 = vst [vmem:[#allocation3 + $0x278] sm:$0xff] %v1360
        %v1381 = vld [vmem:[#allocation2 + $0x20] sm:$0xff]
        %v1382 = vld [vmem:[#allocation2 + $0x28] sm:$0xff]
        %v1383 = vld [vmem:[#allocation2 + $0x30] sm:$0xff]
        %v1384 = vld [vmem:[#allocation2 + $0x38] sm:$0xff]
        %v1385 = vld [vmem:[#allocation2 + $0x40] sm:$0xff]
        %v1386 = vld [vmem:[#allocation2 + $0x48] sm:$0xff]
        %v1387 = vld [vmem:[#allocation2 + $0x80] sm:$0xff]
        %v1388 = vld [vmem:[#allocation2 + $0x88] sm:$0xff]
        %v1389 = vld [vmem:[#allocation2 + $0x90] sm:$0xff]
        %v1390 = vld [vmem:[#allocation2 + $0x98] sm:$0xff]
        %v1391 = vld [vmem:[#allocation2 + $0xa0] sm:$0xff]
        %v1392 = vld [vmem:[#allocation2 + $0xa8] sm:$0xff]
        %1405 = vrot.lane.b32.xlu0 %v1381, 11
        %v1406 = vpop.permute.xlu0 %1405
        %1407 = vrot.lane.b32.xlu0 %v1382, 11
        %v1408 = vpop.permute.xlu0 %1407
        %1409 = vrot.lane.b32.xlu0 %v1383, 11
        %v1410 = vpop.permute.xlu0 %1409
        %1411 = vrot.lane.b32.xlu0 %v1384, 11
        %v1412 = vpop.permute.xlu0 %1411
        %1413 = vrot.lane.b32.xlu0 %v1385, 11
        %v1414 = vpop.permute.xlu0 %1413
        %1415 = vrot.lane.b32.xlu0 %v1386, 11
        %v1416 = vpop.permute.xlu0 %1415
        %1417 = vrot.lane.b32.xlu0 %v1387, 11
        %v1418 = vpop.permute.xlu0 %1417
        %1419 = vrot.lane.b32.xlu0 %v1388, 11
        %v1420 = vpop.permute.xlu0 %1419
        %1421 = vrot.lane.b32.xlu0 %v1389, 11
        %v1422 = vpop.permute.xlu0 %1421
        %1423 = vrot.lane.b32.xlu0 %v1390, 11
        %v1424 = vpop.permute.xlu0 %1423
        %1425 = vrot.lane.b32.xlu0 %v1391, 11
        %v1426 = vpop.permute.xlu0 %1425
        %1427 = vrot.lane.b32.xlu0 %v1392, 11
        %v1428 = vpop.permute.xlu0 %1427
        %vm1429 = vcmask 89088
        %v1430 = vsel %vm1429, %v1406, %v1408
        %v1431 = vsel %vm1429, %v1408, %v1410
        %v1432 = vsel %vm1429, %v1410, %v1412
        %v1433 = vsel %vm1429, %v1412, %v1414
        %v1434 = vsel %vm1429, %v1414, %v1416
        %v1435 = vsel %vm1429, %v1418, %v1420
        %v1436 = vsel %vm1429, %v1420, %v1422
        %v1437 = vsel %vm1429, %v1422, %v1424
        %v1438 = vsel %vm1429, %v1424, %v1426
        %v1439 = vsel %vm1429, %v1426, %v1428
        %1450 = vst [vmem:[#allocation3 + $0x280] sm:$0xff] %v1430
        %1451 = vst [vmem:[#allocation3 + $0x288] sm:$0xff] %v1431
        %1452 = vst [vmem:[#allocation3 + $0x290] sm:$0xff] %v1432
        %1453 = vst [vmem:[#allocation3 + $0x298] sm:$0xff] %v1433
        %1454 = vst [vmem:[#allocation3 + $0x2a0] sm:$0xff] %v1434
        %1455 = vst [vmem:[#allocation3 + $0x2a8] sm:$0xff] %v1435
        %1456 = vst [vmem:[#allocation3 + $0x2b0] sm:$0xff] %v1436
        %1457 = vst [vmem:[#allocation3 + $0x2b8] sm:$0xff] %v1437
        %1458 = vst [vmem:[#allocation3 + $0x2c0] sm:$0xff] %v1438
        %1459 = vst [vmem:[#allocation3 + $0x2c8] sm:$0xff] %v1439
        %v1460 = vld [vmem:[%s2] sm:$0xff]
        %v1461 = vld [vmem:[%s2 + $0x8] sm:$0xff]
        %v1462 = vld [vmem:[%s2 + $0x10] sm:$0xff]
        %v1463 = vld [vmem:[%s2 + $0x18] sm:$0xff]
        %v1464 = vld [vmem:[#allocation3] sm:$0xff]
        %v1465 = vld [vmem:[#allocation3 + $0x8] sm:$0xff]
        %v1466 = vld [vmem:[#allocation3 + $0x10] sm:$0xff]
        %v1467 = vld [vmem:[#allocation3 + $0x18] sm:$0xff]
        %v1468 = vld [vmem:[#allocation3 + $0x20] sm:$0xff]
        %v1469 = vld [vmem:[#allocation3 + $0x28] sm:$0xff]
        %v1470 = vld [vmem:[#allocation3 + $0x30] sm:$0xff]
        %v1471 = vld [vmem:[#allocation3 + $0x38] sm:$0xff]
        %v1472 = vld [vmem:[#allocation3 + $0x40] sm:$0xff]
        %v1473 = vld [vmem:[#allocation3 + $0x48] sm:$0xff]
        %v1474 = vld [vmem:[#allocation3 + $0x50] sm:$0xff]
        %v1475 = vld [vmem:[#allocation3 + $0x58] sm:$0xff]
        %v1476 = vld [vmem:[#allocation3 + $0x60] sm:$0xff]
        %v1477 = vld [vmem:[#allocation3 + $0x68] sm:$0xff]
        %v1478 = vld [vmem:[#allocation3 + $0x70] sm:$0xff]
        %v1479 = vld [vmem:[#allocation3 + $0x78] sm:$0xff]
        %v1480 = vld [vmem:[#allocation3 + $0x80] sm:$0xff]
        %v1481 = vld [vmem:[#allocation3 + $0x88] sm:$0xff]
        %v1482 = vld [vmem:[#allocation3 + $0x90] sm:$0xff]
        %v1483 = vld [vmem:[#allocation3 + $0x98] sm:$0xff]
        %v1484 = vld [vmem:[#allocation3 + $0xa0] sm:$0xff]
        %v1485 = vld [vmem:[#allocation3 + $0xa8] sm:$0xff]
        %v1486 = vld [vmem:[#allocation3 + $0xb0] sm:$0xff]
        %v1487 = vld [vmem:[#allocation3 + $0xb8] sm:$0xff]
        %v1488 = vld [vmem:[#allocation3 + $0xc0] sm:$0xff]
        %v1489 = vld [vmem:[#allocation3 + $0xc8] sm:$0xff]
        %v1490 = vld [vmem:[#allocation3 + $0xd0] sm:$0xff]
        %v1491 = vld [vmem:[#allocation3 + $0xd8] sm:$0xff]
        %v1492 = vld [vmem:[#allocation3 + $0xe0] sm:$0xff]
        %v1493 = vld [vmem:[#allocation3 + $0xe8] sm:$0xff]
        %v1494 = vld [vmem:[#allocation3 + $0xf0] sm:$0xff]
        %v1495 = vld [vmem:[#allocation3 + $0xf8] sm:$0xff]
        %v1496 = vld [vmem:[#allocation3 + $0x100] sm:$0xff]
        %v1497 = vld [vmem:[#allocation3 + $0x108] sm:$0xff]
        %v1498 = vld [vmem:[#allocation3 + $0x110] sm:$0xff]
        %v1499 = vld [vmem:[#allocation3 + $0x118] sm:$0xff]
        %v1500 = vld [vmem:[#allocation3 + $0x120] sm:$0xff]
        %v1501 = vld [vmem:[#allocation3 + $0x128] sm:$0xff]
        %v1502 = vld [vmem:[#allocation3 + $0x130] sm:$0xff]
        %v1503 = vld [vmem:[#allocation3 + $0x138] sm:$0xff]
        %v1504 = vld [vmem:[#allocation3 + $0x140] sm:$0xff]
        %v1505 = vld [vmem:[#allocation3 + $0x148] sm:$0xff]
        %v1506 = vld [vmem:[#allocation3 + $0x150] sm:$0xff]
        %v1507 = vld [vmem:[#allocation3 + $0x158] sm:$0xff]
        %v1508 = vld [vmem:[#allocation3 + $0x160] sm:$0xff]
        %v1509 = vld [vmem:[#allocation3 + $0x168] sm:$0xff]
        %v1510 = vld [vmem:[#allocation3 + $0x170] sm:$0xff]
        %v1511 = vld [vmem:[#allocation3 + $0x178] sm:$0xff]
        %v1512 = vld [vmem:[#allocation3 + $0x180] sm:$0xff]
        %v1513 = vld [vmem:[#allocation3 + $0x188] sm:$0xff]
        %v1514 = vld [vmem:[#allocation3 + $0x190] sm:$0xff]
        %v1515 = vld [vmem:[#allocation3 + $0x198] sm:$0xff]
        %v1516 = vld [vmem:[#allocation3 + $0x1a0] sm:$0xff]
        %v1517 = vld [vmem:[#allocation3 + $0x1a8] sm:$0xff]
        %v1518 = vld [vmem:[#allocation3 + $0x1b0] sm:$0xff]
        %v1519 = vld [vmem:[#allocation3 + $0x1b8] sm:$0xff]
        %v1520 = vld [vmem:[#allocation3 + $0x1c0] sm:$0xff]
        %v1521 = vld [vmem:[#allocation3 + $0x1c8] sm:$0xff]
        %v1522 = vld [vmem:[#allocation3 + $0x1d0] sm:$0xff]
        %v1523 = vld [vmem:[#allocation3 + $0x1d8] sm:$0xff]
        %v1524 = vld [vmem:[#allocation3 + $0x1e0] sm:$0xff]
        %v1525 = vld [vmem:[#allocation3 + $0x1e8] sm:$0xff]
        %v1526 = vld [vmem:[#allocation3 + $0x1f0] sm:$0xff]
        %v1527 = vld [vmem:[#allocation3 + $0x1f8] sm:$0xff]
        %v1528 = vld [vmem:[#allocation3 + $0x200] sm:$0xff]
        %v1529 = vld [vmem:[#allocation3 + $0x208] sm:$0xff]
        %v1530 = vld [vmem:[#allocation3 + $0x210] sm:$0xff]
        %v1531 = vld [vmem:[#allocation3 + $0x218] sm:$0xff]
        %v1532 = vld [vmem:[#allocation3 + $0x220] sm:$0xff]
        %v1533 = vld [vmem:[#allocation3 + $0x228] sm:$0xff]
        %v1534 = vld [vmem:[#allocation3 + $0x230] sm:$0xff]
        %v1535 = vld [vmem:[#allocation3 + $0x238] sm:$0xff]
        %v1536 = vld [vmem:[#allocation3 + $0x240] sm:$0xff]
        %v1537 = vld [vmem:[#allocation3 + $0x248] sm:$0xff]
        %v1538 = vld [vmem:[#allocation3 + $0x250] sm:$0xff]
        %v1539 = vld [vmem:[#allocation3 + $0x258] sm:$0xff]
        %v1540 = vld [vmem:[#allocation3 + $0x260] sm:$0xff]
        %v1541 = vld [vmem:[#allocation3 + $0x268] sm:$0xff]
        %v1542 = vld [vmem:[#allocation3 + $0x270] sm:$0xff]
        %v1543 = vld [vmem:[#allocation3 + $0x278] sm:$0xff]
        %v1544 = vld [vmem:[#allocation3 + $0x280] sm:$0xff]
        %v1545 = vld [vmem:[#allocation3 + $0x288] sm:$0xff]
        %v1546 = vld [vmem:[#allocation3 + $0x290] sm:$0xff]
        %v1547 = vld [vmem:[#allocation3 + $0x298] sm:$0xff]
        %v1548 = vld [vmem:[#allocation3 + $0x2a0] sm:$0xff]
        %v1549 = vld [vmem:[#allocation3 + $0x2a8] sm:$0xff]
        %v1550 = vld [vmem:[#allocation3 + $0x2b0] sm:$0xff]
        %v1551 = vld [vmem:[#allocation3 + $0x2b8] sm:$0xff]
        %v1552 = vld [vmem:[#allocation3 + $0x2c0] sm:$0xff]
        %v1553 = vld [vmem:[#allocation3 + $0x2c8] sm:$0xff]
        %v1555 = vsel %vm1350, %v1461, 0
        %v1558 = vsel %vm1350, %v1463, 0
        %1560 = vmatprep.subr.mxu0 %v1465
        %1561 = vmatpush1.msra.mxu0 %v1464
        %1562 = vmatprep.subr.mxu0 %v1470
        %1563 = vmatpush1.msra.mxu0 %v1469
        %1564 = vmatprep.subr.mxu0 %v1475
        %1565 = vmatpush1.msra.mxu0 %v1474
        %1566 = vmatprep.subr.mxu0 %v1480
        %1567 = vmatpush1.msra.mxu0 %v1479
        %1568 = vmatprep.subr.mxu0 %v1485
        %1569 = vmatpush1.msra.mxu0 %v1484
        %1570 = vmatprep.subr.mxu0 %v1490
        %1571 = vmatpush1.msra.mxu0 %v1489
        %1572 = vmatprep.subr.mxu0 %v1495
        %1573 = vmatpush1.msra.mxu0 %v1494
        %1574 = vmatprep.subr.mxu0 %v1500
        %1575 = vmatpush1.msra.mxu0 %v1499
        %1576 = vmatprep.subr.mxu0 %v1505
        %1577 = vmatpush1.msra.mxu0 %v1504
        %1578 = vmatprep.subr.mxu0 %v1510
        %1579 = vmatpush1.msra.mxu0 %v1509
        %1580 = vmatprep.subr.mxu0 %v1515
        %1581 = vmatpush1.msra.mxu0 %v1514
        %1582 = vmatprep.subr.mxu0 %v1520
        %1583 = vmatpush1.msra.mxu0 %v1519
        %1584 = vmatprep.subr.mxu0 %v1525
        %1585 = vmatpush1.msra.mxu0 %v1524
        %1586 = vmatprep.subr.mxu0 %v1530
        %1587 = vmatpush1.msra.mxu0 %v1529
        %1588 = vmatprep.subr.mxu0 %v1535
        %1589 = vmatpush1.msra.mxu0 %v1534
        %1590 = vmatprep.subr.mxu0 %v1540
        %1591 = vmatpush1.msra.mxu0 %v1539
        %1592 = vmatprep.subr.mxu0 %v1545
        %1593 = vmatpush1.msra.mxu0 %v1544
        %1594 = vmatprep.subr.mxu0 %v1550
        %1595 = vmatpush1.msra.mxu0 %v1549
        %1596 = vmatprep.subr.mxu0 0.0
        %1597 = vmatpush1.msra.mxu0 0.0
        %1598 = vmatprep.subr.mxu0 0.0
        %1599 = vmatpush1.msra.mxu0 0.0
        %1600 = vmatprep.subr.mxu0 0.0
        %1601 = vmatpush1.msra.mxu0 0.0
        %1602 = vmatprep.subr.mxu0 0.0
        %1603 = vmatpush1.msra.mxu0 0.0
        %1604 = vmatprep.subr.mxu0 0.0
        %1605 = vmatpush1.msra.mxu0 0.0
        %1606 = vmatprep.subr.mxu0 0.0
        %1607 = vmatpush1.msra.mxu0 0.0
        %1608 = vmatprep.subr.mxu0 0.0
        %1609 = vmatpush1.msra.mxu0 0.0
        %1610 = vmatprep.subr.mxu0 0.0
        %1611 = vmatpush1.msra.mxu0 0.0
        %1612 = vmatprep.subr.mxu0 0.0
        %1613 = vmatpush1.msra.mxu0 0.0
        %1614 = vmatprep.subr.mxu0 0.0
        %1615 = vmatpush1.msra.mxu0 0.0
        %1616 = vmatprep.subr.mxu0 0.0
        %1617 = vmatpush1.msra.mxu0 0.0
        %1618 = vmatprep.subr.mxu0 0.0
        %1619 = vmatpush1.msra.mxu0 0.0
        %1620 = vmatprep.subr.mxu0 0.0
        %1621 = vmatpush1.msra.mxu0 0.0
        %1622 = vmatprep.subr.mxu0 0.0
        %1623 = vmatpush1.msra.mxu0 0.0
        %1624 = vmatprep.mubr.f32.mxu0 %v1555
        %1625 = vmatmul.mubr.f32.gmra.mrb[0].mxu0 %v1460
        %v1626 = vpop.f32.mrb[0].mxu0
        %v1627 = vadd.f32 0.0, %v1626
        %v1628 = vpop.f32.mrb[0].mxu0
        %v1629 = vadd.f32 0.0, %v1628
        %1630 = vmatprep.mubr.f32.mxu0 %v1558
        %1631 = vmatmul.mubr.f32.gmra.mrb[0].mxu0 %v1462
        %v1632 = vpop.f32.mrb[0].mxu0
        %v1633 = vadd.f32 0.0, %v1632
        %v1634 = vpop.f32.mrb[0].mxu0
        %v1635 = vadd.f32 0.0, %v1634
        %1636 = vdwg.mxu0
        %1637 = vmatprep.subr.mxu0 %v1467
        %1638 = vmatpush1.msra.mxu0 %v1466
        %1639 = vmatprep.subr.mxu0 %v1472
        %1640 = vmatpush1.msra.mxu0 %v1471
        %1641 = vmatprep.subr.mxu0 %v1477
        %1642 = vmatpush1.msra.mxu0 %v1476
        %1643 = vmatprep.subr.mxu0 %v1482
        %1644 = vmatpush1.msra.mxu0 %v1481
        %1645 = vmatprep.subr.mxu0 %v1487
        %1646 = vmatpush1.msra.mxu0 %v1486
        %1647 = vmatprep.subr.mxu0 %v1492
        %1648 = vmatpush1.msra.mxu0 %v1491
        %1649 = vmatprep.subr.mxu0 %v1497
        %1650 = vmatpush1.msra.mxu0 %v1496
        %1651 = vmatprep.subr.mxu0 %v1502
        %1652 = vmatpush1.msra.mxu0 %v1501
        %1653 = vmatprep.subr.mxu0 %v1507
        %1654 = vmatpush1.msra.mxu0 %v1506
        %1655 = vmatprep.subr.mxu0 %v1512
        %1656 = vmatpush1.msra.mxu0 %v1511
        %1657 = vmatprep.subr.mxu0 %v1517
        %1658 = vmatpush1.msra.mxu0 %v1516
        %1659 = vmatprep.subr.mxu0 %v1522
        %1660 = vmatpush1.msra.mxu0 %v1521
        %1661 = vmatprep.subr.mxu0 %v1527
        %1662 = vmatpush1.msra.mxu0 %v1526
        %1663 = vmatprep.subr.mxu0 %v1532
        %1664 = vmatpush1.msra.mxu0 %v1531
        %1665 = vmatprep.subr.mxu0 %v1537
        %1666 = vmatpush1.msra.mxu0 %v1536
        %1667 = vmatprep.subr.mxu0 %v1542
        %1668 = vmatpush1.msra.mxu0 %v1541
        %1669 = vmatprep.subr.mxu0 %v1547
        %1670 = vmatpush1.msra.mxu0 %v1546
        %1671 = vmatprep.subr.mxu0 %v1552
        %1672 = vmatpush1.msra.mxu0 %v1551
        %1673 = vmatprep.subr.mxu0 0.0
        %1674 = vmatpush1.msra.mxu0 0.0
        %1675 = vmatprep.subr.mxu0 0.0
        %1676 = vmatpush1.msra.mxu0 0.0
        %1677 = vmatprep.subr.mxu0 0.0
        %1678 = vmatpush1.msra.mxu0 0.0
        %1679 = vmatprep.subr.mxu0 0.0
        %1680 = vmatpush1.msra.mxu0 0.0
        %1681 = vmatprep.subr.mxu0 0.0
        %1682 = vmatpush1.msra.mxu0 0.0
        %1683 = vmatprep.subr.mxu0 0.0
        %1684 = vmatpush1.msra.mxu0 0.0
        %1685 = vmatprep.subr.mxu0 0.0
        %1686 = vmatpush1.msra.mxu0 0.0
        %1687 = vmatprep.subr.mxu0 0.0
        %1688 = vmatpush1.msra.mxu0 0.0
        %1689 = vmatprep.subr.mxu0 0.0
        %1690 = vmatpush1.msra.mxu0 0.0
        %1691 = vmatprep.subr.mxu0 0.0
        %1692 = vmatpush1.msra.mxu0 0.0
        %1693 = vmatprep.subr.mxu0 0.0
        %1694 = vmatpush1.msra.mxu0 0.0
        %1695 = vmatprep.subr.mxu0 0.0
        %1696 = vmatpush1.msra.mxu0 0.0
        %1697 = vmatprep.subr.mxu0 0.0
        %1698 = vmatpush1.msra.mxu0 0.0
        %1699 = vmatprep.subr.mxu0 0.0
        %1700 = vmatpush1.msra.mxu0 0.0
        %1701 = vmatprep.mubr.f32.mxu0 %v1555
        %1702 = vmatmul.mubr.f32.gmra.mrb[0].mxu0 %v1460
        %v1703 = vpop.f32.mrb[0].mxu0
        %v1704 = vadd.f32 0.0, %v1703
        %v1705 = vpop.f32.mrb[0].mxu0
        %v1706 = vadd.f32 0.0, %v1705
        %1707 = vmatprep.mubr.f32.mxu0 %v1558
        %1708 = vmatmul.mubr.f32.gmra.mrb[0].mxu0 %v1462
        %v1709 = vpop.f32.mrb[0].mxu0
        %v1710 = vadd.f32 0.0, %v1709
        %v1711 = vpop.f32.mrb[0].mxu0
        %v1712 = vadd.f32 0.0, %v1711
        %1713 = vdwg.mxu0
        %1714 = vmatprep.subr.mxu0 0.0
        %1715 = vmatpush1.msra.mxu0 %v1468
        %1716 = vmatprep.subr.mxu0 0.0
        %1717 = vmatpush1.msra.mxu0 %v1473
        %1718 = vmatprep.subr.mxu0 0.0
        %1719 = vmatpush1.msra.mxu0 %v1478
        %1720 = vmatprep.subr.mxu0 0.0
        %1721 = vmatpush1.msra.mxu0 %v1483
        %1722 = vmatprep.subr.mxu0 0.0
        %1723 = vmatpush1.msra.mxu0 %v1488
        %1724 = vmatprep.subr.mxu0 0.0
        %1725 = vmatpush1.msra.mxu0 %v1493
        %1726 = vmatprep.subr.mxu0 0.0
        %1727 = vmatpush1.msra.mxu0 %v1498
        %1728 = vmatprep.subr.mxu0 0.0
        %1729 = vmatpush1.msra.mxu0 %v1503
        %1730 = vmatprep.subr.mxu0 0.0
        %1731 = vmatpush1.msra.mxu0 %v1508
        %1732 = vmatprep.subr.mxu0 0.0
        %1733 = vmatpush1.msra.mxu0 %v1513
        %1734 = vmatprep.subr.mxu0 0.0
        %1735 = vmatpush1.msra.mxu0 %v1518
        %1736 = vmatprep.subr.mxu0 0.0
        %1737 = vmatpush1.msra.mxu0 %v1523
        %1738 = vmatprep.subr.mxu0 0.0
        %1739 = vmatpush1.msra.mxu0 %v1528
        %1740 = vmatprep.subr.mxu0 0.0
        %1741 = vmatpush1.msra.mxu0 %v1533
        %1742 = vmatprep.subr.mxu0 0.0
        %1743 = vmatpush1.msra.mxu0 %v1538
        %1744 = vmatprep.subr.mxu0 0.0
        %1745 = vmatpush1.msra.mxu0 %v1543
        %1746 = vmatprep.subr.mxu0 0.0
        %1747 = vmatpush1.msra.mxu0 %v1548
        %1748 = vmatprep.subr.mxu0 0.0
        %1749 = vmatpush1.msra.mxu0 %v1553
        %1750 = vmatprep.subr.mxu0 0.0
        %1751 = vmatpush1.msra.mxu0 0.0
        %1752 = vmatprep.subr.mxu0 0.0
        %1753 = vmatpush1.msra.mxu0 0.0
        %1754 = vmatprep.subr.mxu0 0.0
        %1755 = vmatpush1.msra.mxu0 0.0
        %1756 = vmatprep.subr.mxu0 0.0
        %1757 = vmatpush1.msra.mxu0 0.0
        %1758 = vmatprep.subr.mxu0 0.0
        %1759 = vmatpush1.msra.mxu0 0.0
        %1760 = vmatprep.subr.mxu0 0.0
        %1761 = vmatpush1.msra.mxu0 0.0
        %1762 = vmatprep.subr.mxu0 0.0
        %1763 = vmatpush1.msra.mxu0 0.0
        %1764 = vmatprep.subr.mxu0 0.0
        %1765 = vmatpush1.msra.mxu0 0.0
        %1766 = vmatprep.subr.mxu0 0.0
        %1767 = vmatpush1.msra.mxu0 0.0
        %1768 = vmatprep.subr.mxu0 0.0
        %1769 = vmatpush1.msra.mxu0 0.0
        %1770 = vmatprep.subr.mxu0 0.0
        %1771 = vmatpush1.msra.mxu0 0.0
        %1772 = vmatprep.subr.mxu0 0.0
        %1773 = vmatpush1.msra.mxu0 0.0
        %1774 = vmatprep.subr.mxu0 0.0
        %1775 = vmatpush1.msra.mxu0 0.0
        %1776 = vmatprep.subr.mxu0 0.0
        %1777 = vmatpush1.msra.mxu0 0.0
        %1778 = vmatprep.mubr.f32.mxu0 %v1555
        %1779 = vmatmul.mubr.f32.gmra.mrb[0].mxu0 %v1460
        %v1780 = vpop.f32.mrb[0].mxu0
        %v1781 = vadd.f32 0.0, %v1780
        %v1782 = vpop.f32.mrb[0].mxu0
        %1783 = vmatprep.mubr.f32.mxu0 %v1558
        %1784 = vmatmul.mubr.f32.gmra.mrb[0].mxu0 %v1462
        %v1785 = vpop.f32.mrb[0].mxu0
        %v1786 = vadd.f32 0.0, %v1785
        %v1787 = vpop.f32.mrb[0].mxu0
        %1788 = vdwg.mxu0
        %1789 = vst [vmem:[%s163] sm:$0xff] %v1627
        %1790 = vst [vmem:[%s163 + $0x8] sm:$0xff] %v1629
        %1791 = vst [vmem:[%s163 + $0x10] sm:$0xff] %v1704
        %1792 = vst [vmem:[%s163 + $0x18] sm:$0xff] %v1706
        %1793 = vst [vmem:[%s163 + $0x20] sm:$0xff] %v1781
        %1794 = vst [vmem:[%s163 + $0x28] sm:$0xff] %v1633
        %1795 = vst [vmem:[%s163 + $0x30] sm:$0xff] %v1635
        %1796 = vst [vmem:[%s163 + $0x38] sm:$0xff] %v1710
        %1797 = vst [vmem:[%s163 + $0x40] sm:$0xff] %v1712
        %1798 = vst [vmem:[%s163 + $0x48] sm:$0xff] %v1786
        %v1799 = vld [vmem:[#allocation2 + $0x8] sm:$0xff]
        %v1800 = vld [vmem:[#allocation2 + $0x10] sm:$0xff]
        %v1801 = vld [vmem:[#allocation2 + $0x18] sm:$0xff]
        %v1802 = vld [vmem:[#allocation2 + $0x20] sm:$0xff]
        %v1803 = vld [vmem:[#allocation2 + $0x28] sm:$0xff]
        %v1804 = vld [vmem:[#allocation2 + $0x30] sm:$0xff]
        %v1805 = vld [vmem:[#allocation2 + $0x68] sm:$0xff]
        %v1806 = vld [vmem:[#allocation2 + $0x70] sm:$0xff]
        %v1807 = vld [vmem:[#allocation2 + $0x78] sm:$0xff]
        %v1808 = vld [vmem:[#allocation2 + $0x80] sm:$0xff]
        %v1809 = vld [vmem:[#allocation2 + $0x88] sm:$0xff]
        %v1810 = vld [vmem:[#allocation2 + $0x90] sm:$0xff]
        %1823 = vrot.lane.b32.xlu0 %v1799, 95
        %v1824 = vpop.permute.xlu0 %1823
        %1825 = vrot.lane.b32.xlu0 %v1800, 95
        %v1826 = vpop.permute.xlu0 %1825
        %1827 = vrot.lane.b32.xlu0 %v1801, 95
        %v1828 = vpop.permute.xlu0 %1827
        %1829 = vrot.lane.b32.xlu0 %v1802, 95
        %v1830 = vpop.permute.xlu0 %1829
        %1831 = vrot.lane.b32.xlu0 %v1803, 95
        %v1832 = vpop.permute.xlu0 %1831
        %1833 = vrot.lane.b32.xlu0 %v1804, 95
        %v1834 = vpop.permute.xlu0 %1833
        %1835 = vrot.lane.b32.xlu0 %v1805, 95
        %v1836 = vpop.permute.xlu0 %1835
        %1837 = vrot.lane.b32.xlu0 %v1806, 95
        %v1838 = vpop.permute.xlu0 %1837
        %1839 = vrot.lane.b32.xlu0 %v1807, 95
        %v1840 = vpop.permute.xlu0 %1839
        %1841 = vrot.lane.b32.xlu0 %v1808, 95
        %v1842 = vpop.permute.xlu0 %1841
        %1843 = vrot.lane.b32.xlu0 %v1809, 95
        %v1844 = vpop.permute.xlu0 %1843
        %1845 = vrot.lane.b32.xlu0 %v1810, 95
        %v1846 = vpop.permute.xlu0 %1845
        %vm1847 = vcmask 777216
        %v1848 = vsel %vm1847, %v1824, %v1826
        %v1849 = vsel %vm1847, %v1826, %v1828
        %v1850 = vsel %vm1847, %v1828, %v1830
        %v1851 = vsel %vm1847, %v1830, %v1832
        %v1852 = vsel %vm1847, %v1832, %v1834
        %v1853 = vsel %vm1847, %v1836, %v1838
        %v1854 = vsel %vm1847, %v1838, %v1840
        %v1855 = vsel %vm1847, %v1840, %v1842
        %v1856 = vsel %vm1847, %v1842, %v1844
        %v1857 = vsel %vm1847, %v1844, %v1846
        %1868 = vst [vmem:[#allocation3] sm:$0xff] %v1848
        %1869 = vst [vmem:[#allocation3 + $0x8] sm:$0xff] %v1849
        %1870 = vst [vmem:[#allocation3 + $0x10] sm:$0xff] %v1850
        %1871 = vst [vmem:[#allocation3 + $0x18] sm:$0xff] %v1851
        %1872 = vst [vmem:[#allocation3 + $0x20] sm:$0xff] %v1852
        %1873 = vst [vmem:[#allocation3 + $0x28] sm:$0xff] %v1853
        %1874 = vst [vmem:[#allocation3 + $0x30] sm:$0xff] %v1854
        %1875 = vst [vmem:[#allocation3 + $0x38] sm:$0xff] %v1855
        %1876 = vst [vmem:[#allocation3 + $0x40] sm:$0xff] %v1856
        %1877 = vst [vmem:[#allocation3 + $0x48] sm:$0xff] %v1857
        %v1878 = vld [vmem:[#allocation2 + $0x8] sm:$0xff]
        %v1879 = vld [vmem:[#allocation2 + $0x10] sm:$0xff]
        %v1880 = vld [vmem:[#allocation2 + $0x18] sm:$0xff]
        %v1881 = vld [vmem:[#allocation2 + $0x20] sm:$0xff]
        %v1882 = vld [vmem:[#allocation2 + $0x28] sm:$0xff]
        %v1883 = vld [vmem:[#allocation2 + $0x30] sm:$0xff]
        %v1884 = vld [vmem:[#allocation2 + $0x68] sm:$0xff]
        %v1885 = vld [vmem:[#allocation2 + $0x70] sm:$0xff]
        %v1886 = vld [vmem:[#allocation2 + $0x78] sm:$0xff]
        %v1887 = vld [vmem:[#allocation2 + $0x80] sm:$0xff]
        %v1888 = vld [vmem:[#allocation2 + $0x88] sm:$0xff]
        %v1889 = vld [vmem:[#allocation2 + $0x90] sm:$0xff]
        %1902 = vrot.lane.b32.xlu0 %v1878, 88
        %v1903 = vpop.permute.xlu0 %1902
        %1904 = vrot.lane.b32.xlu0 %v1879, 88
        %v1905 = vpop.permute.xlu0 %1904
        %1906 = vrot.lane.b32.xlu0 %v1880, 88
        %v1907 = vpop.permute.xlu0 %1906
        %1908 = vrot.lane.b32.xlu0 %v1881, 88
        %v1909 = vpop.permute.xlu0 %1908
        %1910 = vrot.lane.b32.xlu0 %v1882, 88
        %v1911 = vpop.permute.xlu0 %1910
        %1912 = vrot.lane.b32.xlu0 %v1883, 88
        %v1913 = vpop.permute.xlu0 %1912
        %1914 = vrot.lane.b32.xlu0 %v1884, 88
        %v1915 = vpop.permute.xlu0 %1914
        %1916 = vrot.lane.b32.xlu0 %v1885, 88
        %v1917 = vpop.permute.xlu0 %1916
        %1918 = vrot.lane.b32.xlu0 %v1886, 88
        %v1919 = vpop.permute.xlu0 %1918
        %1920 = vrot.lane.b32.xlu0 %v1887, 88
        %v1921 = vpop.permute.xlu0 %1920
        %1922 = vrot.lane.b32.xlu0 %v1888, 88
        %v1923 = vpop.permute.xlu0 %1922
        %1924 = vrot.lane.b32.xlu0 %v1889, 88
        %v1925 = vpop.permute.xlu0 %1924
        %vm1926 = vcmask 719872
        %v1927 = vsel %vm1926, %v1903, %v1905
        %v1928 = vsel %vm1926, %v1905, %v1907
        %v1929 = vsel %vm1926, %v1907, %v1909
        %v1930 = vsel %vm1926, %v1909, %v1911
        %v1931 = vsel %vm1926, %v1911, %v1913
        %v1932 = vsel %vm1926, %v1915, %v1917
        %v1933 = vsel %vm1926, %v1917, %v1919
        %v1934 = vsel %vm1926, %v1919, %v1921
        %v1935 = vsel %vm1926, %v1921, %v1923
        %v1936 = vsel %vm1926, %v1923, %v1925
        %1947 = vst [vmem:[#allocation3 + $0x50] sm:$0xff] %v1927
        %1948 = vst [vmem:[#allocation3 + $0x58] sm:$0xff] %v1928
        %1949 = vst [vmem:[#allocation3 + $0x60] sm:$0xff] %v1929
        %1950 = vst [vmem:[#allocation3 + $0x68] sm:$0xff] %v1930
        %1951 = vst [vmem:[#allocation3 + $0x70] sm:$0xff] %v1931
        %1952 = vst [vmem:[#allocation3 + $0x78] sm:$0xff] %v1932
        %1953 = vst [vmem:[#allocation3 + $0x80] sm:$0xff] %v1933
        %1954 = vst [vmem:[#allocation3 + $0x88] sm:$0xff] %v1934
        %1955 = vst [vmem:[#allocation3 + $0x90] sm:$0xff] %v1935
        %1956 = vst [vmem:[#allocation3 + $0x98] sm:$0xff] %v1936
        %v1957 = vld [vmem:[#allocation2 + $0x8] sm:$0xff]
        %v1958 = vld [vmem:[#allocation2 + $0x10] sm:$0xff]
        %v1959 = vld [vmem:[#allocation2 + $0x18] sm:$0xff]
        %v1960 = vld [vmem:[#allocation2 + $0x20] sm:$0xff]
        %v1961 = vld [vmem:[#allocation2 + $0x28] sm:$0xff]
        %v1962 = vld [vmem:[#allocation2 + $0x30] sm:$0xff]
        %v1963 = vld [vmem:[#allocation2 + $0x68] sm:$0xff]
        %v1964 = vld [vmem:[#allocation2 + $0x70] sm:$0xff]
        %v1965 = vld [vmem:[#allocation2 + $0x78] sm:$0xff]
        %v1966 = vld [vmem:[#allocation2 + $0x80] sm:$0xff]
        %v1967 = vld [vmem:[#allocation2 + $0x88] sm:$0xff]
        %v1968 = vld [vmem:[#allocation2 + $0x90] sm:$0xff]
        %1981 = vrot.lane.b32.xlu0 %v1957, 81
        %v1982 = vpop.permute.xlu0 %1981
        %1983 = vrot.lane.b32.xlu0 %v1958, 81
        %v1984 = vpop.permute.xlu0 %1983
        %1985 = vrot.lane.b32.xlu0 %v1959, 81
        %v1986 = vpop.permute.xlu0 %1985
        %1987 = vrot.lane.b32.xlu0 %v1960, 81
        %v1988 = vpop.permute.xlu0 %1987
        %1989 = vrot.lane.b32.xlu0 %v1961, 81
        %v1990 = vpop.permute.xlu0 %1989
        %1991 = vrot.lane.b32.xlu0 %v1962, 81
        %v1992 = vpop.permute.xlu0 %1991
        %1993 = vrot.lane.b32.xlu0 %v1963, 81
        %v1994 = vpop.permute.xlu0 %1993
        %1995 = vrot.lane.b32.xlu0 %v1964, 81
        %v1996 = vpop.permute.xlu0 %1995
        %1997 = vrot.lane.b32.xlu0 %v1965, 81
        %v1998 = vpop.permute.xlu0 %1997
        %1999 = vrot.lane.b32.xlu0 %v1966, 81
        %v2000 = vpop.permute.xlu0 %1999
        %2001 = vrot.lane.b32.xlu0 %v1967, 81
        %v2002 = vpop.permute.xlu0 %2001
        %2003 = vrot.lane.b32.xlu0 %v1968, 81
        %v2004 = vpop.permute.xlu0 %2003
        %vm2005 = vcmask 662528
        %v2006 = vsel %vm2005, %v1982, %v1984
        %v2007 = vsel %vm2005, %v1984, %v1986
        %v2008 = vsel %vm2005, %v1986, %v1988
        %v2009 = vsel %vm2005, %v1988, %v1990
        %v2010 = vsel %vm2005, %v1990, %v1992
        %v2011 = vsel %vm2005, %v1994, %v1996
        %v2012 = vsel %vm2005, %v1996, %v1998
        %v2013 = vsel %vm2005, %v1998, %v2000
        %v2014 = vsel %vm2005, %v2000, %v2002
        %v2015 = vsel %vm2005, %v2002, %v2004
        %2026 = vst [vmem:[#allocation3 + $0xa0] sm:$0xff] %v2006
        %2027 = vst [vmem:[#allocation3 + $0xa8] sm:$0xff] %v2007
        %2028 = vst [vmem:[#allocation3 + $0xb0] sm:$0xff] %v2008
        %2029 = vst [vmem:[#allocation3 + $0xb8] sm:$0xff] %v2009
        %2030 = vst [vmem:[#allocation3 + $0xc0] sm:$0xff] %v2010
        %2031 = vst [vmem:[#allocation3 + $0xc8] sm:$0xff] %v2011
        %2032 = vst [vmem:[#allocation3 + $0xd0] sm:$0xff] %v2012
        %2033 = vst [vmem:[#allocation3 + $0xd8] sm:$0xff] %v2013
        %2034 = vst [vmem:[#allocation3 + $0xe0] sm:$0xff] %v2014
        %2035 = vst [vmem:[#allocation3 + $0xe8] sm:$0xff] %v2015
        %v2036 = vld [vmem:[#allocation2 + $0x18] sm:$0xff]
        %v2037 = vld [vmem:[#allocation2 + $0x20] sm:$0xff]
        %v2038 = vld [vmem:[#allocation2 + $0x28] sm:$0xff]
        %v2039 = vld [vmem:[#allocation2 + $0x30] sm:$0xff]
        %v2040 = vld [vmem:[#allocation2 + $0x38] sm:$0xff]
        %v2041 = vld [vmem:[#allocation2 + $0x40] sm:$0xff]
        %v2042 = vld [vmem:[#allocation2 + $0x78] sm:$0xff]
        %v2043 = vld [vmem:[#allocation2 + $0x80] sm:$0xff]
        %v2044 = vld [vmem:[#allocation2 + $0x88] sm:$0xff]
        %v2045 = vld [vmem:[#allocation2 + $0x90] sm:$0xff]
        %v2046 = vld [vmem:[#allocation2 + $0x98] sm:$0xff]
        %v2047 = vld [vmem:[#allocation2 + $0xa0] sm:$0xff]
        %2060 = vrot.lane.b32.xlu0 %v2036, 85
        %v2061 = vpop.permute.xlu0 %2060
        %2062 = vrot.lane.b32.xlu0 %v2037, 85
        %v2063 = vpop.permute.xlu0 %2062
        %2064 = vrot.lane.b32.xlu0 %v2038, 85
        %v2065 = vpop.permute.xlu0 %2064
        %2066 = vrot.lane.b32.xlu0 %v2039, 85
        %v2067 = vpop.permute.xlu0 %2066
        %2068 = vrot.lane.b32.xlu0 %v2040, 85
        %v2069 = vpop.permute.xlu0 %2068
        %2070 = vrot.lane.b32.xlu0 %v2041, 85
        %v2071 = vpop.permute.xlu0 %2070
        %2072 = vrot.lane.b32.xlu0 %v2042, 85
        %v2073 = vpop.permute.xlu0 %2072
        %2074 = vrot.lane.b32.xlu0 %v2043, 85
        %v2075 = vpop.permute.xlu0 %2074
        %2076 = vrot.lane.b32.xlu0 %v2044, 85
        %v2077 = vpop.permute.xlu0 %2076
        %2078 = vrot.lane.b32.xlu0 %v2045, 85
        %v2079 = vpop.permute.xlu0 %2078
        %2080 = vrot.lane.b32.xlu0 %v2046, 85
        %v2081 = vpop.permute.xlu0 %2080
        %2082 = vrot.lane.b32.xlu0 %v2047, 85
        %v2083 = vpop.permute.xlu0 %2082
        %vm2084 = vcmask 695296
        %v2085 = vsel %vm2084, %v2061, %v2063
        %v2086 = vsel %vm2084, %v2063, %v2065
        %v2087 = vsel %vm2084, %v2065, %v2067
        %v2088 = vsel %vm2084, %v2067, %v2069
        %v2089 = vsel %vm2084, %v2069, %v2071
        %v2090 = vsel %vm2084, %v2073, %v2075
        %v2091 = vsel %vm2084, %v2075, %v2077
        %v2092 = vsel %vm2084, %v2077, %v2079
        %v2093 = vsel %vm2084, %v2079, %v2081
        %v2094 = vsel %vm2084, %v2081, %v2083
        %2105 = vst [vmem:[#allocation3 + $0xf0] sm:$0xff] %v2085
        %2106 = vst [vmem:[#allocation3 + $0xf8] sm:$0xff] %v2086
        %2107 = vst [vmem:[#allocation3 + $0x100] sm:$0xff] %v2087
        %2108 = vst [vmem:[#allocation3 + $0x108] sm:$0xff] %v2088
        %2109 = vst [vmem:[#allocation3 + $0x110] sm:$0xff] %v2089
        %2110 = vst [vmem:[#allocation3 + $0x118] sm:$0xff] %v2090
        %2111 = vst [vmem:[#allocation3 + $0x120] sm:$0xff] %v2091
        %2112 = vst [vmem:[#allocation3 + $0x128] sm:$0xff] %v2092
        %2113 = vst [vmem:[#allocation3 + $0x130] sm:$0xff] %v2093
        %2114 = vst [vmem:[#allocation3 + $0x138] sm:$0xff] %v2094
        %v2115 = vld [vmem:[#allocation2 + $0x18] sm:$0xff]
        %v2116 = vld [vmem:[#allocation2 + $0x20] sm:$0xff]
        %v2117 = vld [vmem:[#allocation2 + $0x28] sm:$0xff]
        %v2118 = vld [vmem:[#allocation2 + $0x30] sm:$0xff]
        %v2119 = vld [vmem:[#allocation2 + $0x38] sm:$0xff]
        %v2120 = vld [vmem:[#allocation2 + $0x40] sm:$0xff]
        %v2121 = vld [vmem:[#allocation2 + $0x78] sm:$0xff]
        %v2122 = vld [vmem:[#allocation2 + $0x80] sm:$0xff]
        %v2123 = vld [vmem:[#allocation2 + $0x88] sm:$0xff]
        %v2124 = vld [vmem:[#allocation2 + $0x90] sm:$0xff]
        %v2125 = vld [vmem:[#allocation2 + $0x98] sm:$0xff]
        %v2126 = vld [vmem:[#allocation2 + $0xa0] sm:$0xff]
        %2139 = vrot.lane.b32.xlu0 %v2115, 78
        %v2140 = vpop.permute.xlu0 %2139
        %2141 = vrot.lane.b32.xlu0 %v2116, 78
        %v2142 = vpop.permute.xlu0 %2141
        %2143 = vrot.lane.b32.xlu0 %v2117, 78
        %v2144 = vpop.permute.xlu0 %2143
        %2145 = vrot.lane.b32.xlu0 %v2118, 78
        %v2146 = vpop.permute.xlu0 %2145
        %2147 = vrot.lane.b32.xlu0 %v2119, 78
        %v2148 = vpop.permute.xlu0 %2147
        %2149 = vrot.lane.b32.xlu0 %v2120, 78
        %v2150 = vpop.permute.xlu0 %2149
        %2151 = vrot.lane.b32.xlu0 %v2121, 78
        %v2152 = vpop.permute.xlu0 %2151
        %2153 = vrot.lane.b32.xlu0 %v2122, 78
        %v2154 = vpop.permute.xlu0 %2153
        %2155 = vrot.lane.b32.xlu0 %v2123, 78
        %v2156 = vpop.permute.xlu0 %2155
        %2157 = vrot.lane.b32.xlu0 %v2124, 78
        %v2158 = vpop.permute.xlu0 %2157
        %2159 = vrot.lane.b32.xlu0 %v2125, 78
        %v2160 = vpop.permute.xlu0 %2159
        %2161 = vrot.lane.b32.xlu0 %v2126, 78
        %v2162 = vpop.permute.xlu0 %2161
        %v2163 = vsel %vm1113, %v2140, %v2142
        %v2164 = vsel %vm1113, %v2142, %v2144
        %v2165 = vsel %vm1113, %v2144, %v2146
        %v2166 = vsel %vm1113, %v2146, %v2148
        %v2167 = vsel %vm1113, %v2148, %v2150
        %v2168 = vsel %vm1113, %v2152, %v2154
        %v2169 = vsel %vm1113, %v2154, %v2156
        %v2170 = vsel %vm1113, %v2156, %v2158
        %v2171 = vsel %vm1113, %v2158, %v2160
        %v2172 = vsel %vm1113, %v2160, %v2162
        %2183 = vst [vmem:[#allocation3 + $0x140] sm:$0xff] %v2163
        %2184 = vst [vmem:[#allocation3 + $0x148] sm:$0xff] %v2164
        %2185 = vst [vmem:[#allocation3 + $0x150] sm:$0xff] %v2165
        %2186 = vst [vmem:[#allocation3 + $0x158] sm:$0xff] %v2166
        %2187 = vst [vmem:[#allocation3 + $0x160] sm:$0xff] %v2167
        %2188 = vst [vmem:[#allocation3 + $0x168] sm:$0xff] %v2168
        %2189 = vst [vmem:[#allocation3 + $0x170] sm:$0xff] %v2169
        %2190 = vst [vmem:[#allocation3 + $0x178] sm:$0xff] %v2170
        %2191 = vst [vmem:[#allocation3 + $0x180] sm:$0xff] %v2171
        %2192 = vst [vmem:[#allocation3 + $0x188] sm:$0xff] %v2172
        %v2193 = vld [vmem:[#allocation2 + $0x18] sm:$0xff]
        %v2194 = vld [vmem:[#allocation2 + $0x20] sm:$0xff]
        %v2195 = vld [vmem:[#allocation2 + $0x28] sm:$0xff]
        %v2196 = vld [vmem:[#allocation2 + $0x30] sm:$0xff]
        %v2197 = vld [vmem:[#allocation2 + $0x38] sm:$0xff]
        %v2198 = vld [vmem:[#allocation2 + $0x40] sm:$0xff]
        %v2199 = vld [vmem:[#allocation2 + $0x78] sm:$0xff]
        %v2200 = vld [vmem:[#allocation2 + $0x80] sm:$0xff]
        %v2201 = vld [vmem:[#allocation2 + $0x88] sm:$0xff]
        %v2202 = vld [vmem:[#allocation2 + $0x90] sm:$0xff]
        %v2203 = vld [vmem:[#allocation2 + $0x98] sm:$0xff]
        %v2204 = vld [vmem:[#allocation2 + $0xa0] sm:$0xff]
        %2217 = vrot.lane.b32.xlu0 %v2193, 71
        %v2218 = vpop.permute.xlu0 %2217
        %2219 = vrot.lane.b32.xlu0 %v2194, 71
        %v2220 = vpop.permute.xlu0 %2219
        %2221 = vrot.lane.b32.xlu0 %v2195, 71
        %v2222 = vpop.permute.xlu0 %2221
        %2223 = vrot.lane.b32.xlu0 %v2196, 71
        %v2224 = vpop.permute.xlu0 %2223
        %2225 = vrot.lane.b32.xlu0 %v2197, 71
        %v2226 = vpop.permute.xlu0 %2225
        %2227 = vrot.lane.b32.xlu0 %v2198, 71
        %v2228 = vpop.permute.xlu0 %2227
        %2229 = vrot.lane.b32.xlu0 %v2199, 71
        %v2230 = vpop.permute.xlu0 %2229
        %2231 = vrot.lane.b32.xlu0 %v2200, 71
        %v2232 = vpop.permute.xlu0 %2231
        %2233 = vrot.lane.b32.xlu0 %v2201, 71
        %v2234 = vpop.permute.xlu0 %2233
        %2235 = vrot.lane.b32.xlu0 %v2202, 71
        %v2236 = vpop.permute.xlu0 %2235
        %2237 = vrot.lane.b32.xlu0 %v2203, 71
        %v2238 = vpop.permute.xlu0 %2237
        %2239 = vrot.lane.b32.xlu0 %v2204, 71
        %v2240 = vpop.permute.xlu0 %2239
        %vm2241 = vcmask 580608
        %v2242 = vsel %vm2241, %v2218, %v2220
        %v2243 = vsel %vm2241, %v2220, %v2222
        %v2244 = vsel %vm2241, %v2222, %v2224
        %v2245 = vsel %vm2241, %v2224, %v2226
        %v2246 = vsel %vm2241, %v2226, %v2228
        %v2247 = vsel %vm2241, %v2230, %v2232
        %v2248 = vsel %vm2241, %v2232, %v2234
        %v2249 = vsel %vm2241, %v2234, %v2236
        %v2250 = vsel %vm2241, %v2236, %v2238
        %v2251 = vsel %vm2241, %v2238, %v2240
        %2262 = vst [vmem:[#allocation3 + $0x190] sm:$0xff] %v2242
        %2263 = vst [vmem:[#allocation3 + $0x198] sm:$0xff] %v2243
        %2264 = vst [vmem:[#allocation3 + $0x1a0] sm:$0xff] %v2244
        %2265 = vst [vmem:[#allocation3 + $0x1a8] sm:$0xff] %v2245
        %2266 = vst [vmem:[#allocation3 + $0x1b0] sm:$0xff] %v2246
        %2267 = vst [vmem:[#allocation3 + $0x1b8] sm:$0xff] %v2247
        %2268 = vst [vmem:[#allocation3 + $0x1c0] sm:$0xff] %v2248
        %2269 = vst [vmem:[#allocation3 + $0x1c8] sm:$0xff] %v2249
        %2270 = vst [vmem:[#allocation3 + $0x1d0] sm:$0xff] %v2250
        %2271 = vst [vmem:[#allocation3 + $0x1d8] sm:$0xff] %v2251
        %v2272 = vld [vmem:[#allocation2 + $0x28] sm:$0xff]
        %v2273 = vld [vmem:[#allocation2 + $0x30] sm:$0xff]
        %v2274 = vld [vmem:[#allocation2 + $0x38] sm:$0xff]
        %v2275 = vld [vmem:[#allocation2 + $0x40] sm:$0xff]
        %v2276 = vld [vmem:[#allocation2 + $0x48] sm:$0xff]
        %v2277 = vld [vmem:[#allocation2 + $0x50] sm:$0xff]
        %v2278 = vld [vmem:[#allocation2 + $0x88] sm:$0xff]
        %v2279 = vld [vmem:[#allocation2 + $0x90] sm:$0xff]
        %v2280 = vld [vmem:[#allocation2 + $0x98] sm:$0xff]
        %v2281 = vld [vmem:[#allocation2 + $0xa0] sm:$0xff]
        %v2282 = vld [vmem:[#allocation2 + $0xa8] sm:$0xff]
        %v2283 = vld [vmem:[#allocation2 + $0xb0] sm:$0xff]
        %2296 = vrot.lane.b32.xlu0 %v2272, 75
        %v2297 = vpop.permute.xlu0 %2296
        %2298 = vrot.lane.b32.xlu0 %v2273, 75
        %v2299 = vpop.permute.xlu0 %2298
        %2300 = vrot.lane.b32.xlu0 %v2274, 75
        %v2301 = vpop.permute.xlu0 %2300
        %2302 = vrot.lane.b32.xlu0 %v2275, 75
        %v2303 = vpop.permute.xlu0 %2302
        %2304 = vrot.lane.b32.xlu0 %v2276, 75
        %v2305 = vpop.permute.xlu0 %2304
        %2306 = vrot.lane.b32.xlu0 %v2277, 75
        %v2307 = vpop.permute.xlu0 %2306
        %2308 = vrot.lane.b32.xlu0 %v2278, 75
        %v2309 = vpop.permute.xlu0 %2308
        %2310 = vrot.lane.b32.xlu0 %v2279, 75
        %v2311 = vpop.permute.xlu0 %2310
        %2312 = vrot.lane.b32.xlu0 %v2280, 75
        %v2313 = vpop.permute.xlu0 %2312
        %2314 = vrot.lane.b32.xlu0 %v2281, 75
        %v2315 = vpop.permute.xlu0 %2314
        %2316 = vrot.lane.b32.xlu0 %v2282, 75
        %v2317 = vpop.permute.xlu0 %2316
        %2318 = vrot.lane.b32.xlu0 %v2283, 75
        %v2319 = vpop.permute.xlu0 %2318
        %vm2320 = vcmask 613376
        %v2321 = vsel %vm2320, %v2297, %v2299
        %v2322 = vsel %vm2320, %v2299, %v2301
        %v2323 = vsel %vm2320, %v2301, %v2303
        %v2324 = vsel %vm2320, %v2303, %v2305
        %v2325 = vsel %vm2320, %v2305, %v2307
        %v2326 = vsel %vm2320, %v2309, %v2311
        %v2327 = vsel %vm2320, %v2311, %v2313
        %v2328 = vsel %vm2320, %v2313, %v2315
        %v2329 = vsel %vm2320, %v2315, %v2317
        %v2330 = vsel %vm2320, %v2317, %v2319
        %2341 = vst [vmem:[#allocation3 + $0x1e0] sm:$0xff] %v2321
        %2342 = vst [vmem:[#allocation3 + $0x1e8] sm:$0xff] %v2322
        %2343 = vst [vmem:[#allocation3 + $0x1f0] sm:$0xff] %v2323
        %2344 = vst [vmem:[#allocation3 + $0x1f8] sm:$0xff] %v2324
        %2345 = vst [vmem:[#allocation3 + $0x200] sm:$0xff] %v2325
        %2346 = vst [vmem:[#allocation3 + $0x208] sm:$0xff] %v2326
        %2347 = vst [vmem:[#allocation3 + $0x210] sm:$0xff] %v2327
        %2348 = vst [vmem:[#allocation3 + $0x218] sm:$0xff] %v2328
        %2349 = vst [vmem:[#allocation3 + $0x220] sm:$0xff] %v2329
        %2350 = vst [vmem:[#allocation3 + $0x228] sm:$0xff] %v2330
        %v2351 = vld [vmem:[#allocation2 + $0x28] sm:$0xff]
        %v2352 = vld [vmem:[#allocation2 + $0x30] sm:$0xff]
        %v2353 = vld [vmem:[#allocation2 + $0x38] sm:$0xff]
        %v2354 = vld [vmem:[#allocation2 + $0x40] sm:$0xff]
        %v2355 = vld [vmem:[#allocation2 + $0x48] sm:$0xff]
        %v2356 = vld [vmem:[#allocation2 + $0x50] sm:$0xff]
        %v2357 = vld [vmem:[#allocation2 + $0x88] sm:$0xff]
        %v2358 = vld [vmem:[#allocation2 + $0x90] sm:$0xff]
        %v2359 = vld [vmem:[#allocation2 + $0x98] sm:$0xff]
        %v2360 = vld [vmem:[#allocation2 + $0xa0] sm:$0xff]
        %v2361 = vld [vmem:[#allocation2 + $0xa8] sm:$0xff]
        %v2362 = vld [vmem:[#allocation2 + $0xb0] sm:$0xff]
        %2375 = vrot.lane.b32.xlu0 %v2351, 68
        %v2376 = vpop.permute.xlu0 %2375
        %2377 = vrot.lane.b32.xlu0 %v2352, 68
        %v2378 = vpop.permute.xlu0 %2377
        %2379 = vrot.lane.b32.xlu0 %v2353, 68
        %v2380 = vpop.permute.xlu0 %2379
        %2381 = vrot.lane.b32.xlu0 %v2354, 68
        %v2382 = vpop.permute.xlu0 %2381
        %2383 = vrot.lane.b32.xlu0 %v2355, 68
        %v2384 = vpop.permute.xlu0 %2383
        %2385 = vrot.lane.b32.xlu0 %v2356, 68
        %v2386 = vpop.permute.xlu0 %2385
        %2387 = vrot.lane.b32.xlu0 %v2357, 68
        %v2388 = vpop.permute.xlu0 %2387
        %2389 = vrot.lane.b32.xlu0 %v2358, 68
        %v2390 = vpop.permute.xlu0 %2389
        %2391 = vrot.lane.b32.xlu0 %v2359, 68
        %v2392 = vpop.permute.xlu0 %2391
        %2393 = vrot.lane.b32.xlu0 %v2360, 68
        %v2394 = vpop.permute.xlu0 %2393
        %2395 = vrot.lane.b32.xlu0 %v2361, 68
        %v2396 = vpop.permute.xlu0 %2395
        %2397 = vrot.lane.b32.xlu0 %v2362, 68
        %v2398 = vpop.permute.xlu0 %2397
        %vm2399 = vcmask 556032
        %v2400 = vsel %vm2399, %v2376, %v2378
        %v2401 = vsel %vm2399, %v2378, %v2380
        %v2402 = vsel %vm2399, %v2380, %v2382
        %v2403 = vsel %vm2399, %v2382, %v2384
        %v2404 = vsel %vm2399, %v2384, %v2386
        %v2405 = vsel %vm2399, %v2388, %v2390
        %v2406 = vsel %vm2399, %v2390, %v2392
        %v2407 = vsel %vm2399, %v2392, %v2394
        %v2408 = vsel %vm2399, %v2394, %v2396
        %v2409 = vsel %vm2399, %v2396, %v2398
        %2420 = vst [vmem:[#allocation3 + $0x230] sm:$0xff] %v2400
        %2421 = vst [vmem:[#allocation3 + $0x238] sm:$0xff] %v2401
        %2422 = vst [vmem:[#allocation3 + $0x240] sm:$0xff] %v2402
        %2423 = vst [vmem:[#allocation3 + $0x248] sm:$0xff] %v2403
        %2424 = vst [vmem:[#allocation3 + $0x250] sm:$0xff] %v2404
        %2425 = vst [vmem:[#allocation3 + $0x258] sm:$0xff] %v2405
        %2426 = vst [vmem:[#allocation3 + $0x260] sm:$0xff] %v2406
        %2427 = vst [vmem:[#allocation3 + $0x268] sm:$0xff] %v2407
        %2428 = vst [vmem:[#allocation3 + $0x270] sm:$0xff] %v2408
        %2429 = vst [vmem:[#allocation3 + $0x278] sm:$0xff] %v2409
        %v2430 = vld [vmem:[#allocation2 + $0x28] sm:$0xff]
        %v2431 = vld [vmem:[#allocation2 + $0x30] sm:$0xff]
        %v2432 = vld [vmem:[#allocation2 + $0x38] sm:$0xff]
        %v2433 = vld [vmem:[#allocation2 + $0x40] sm:$0xff]
        %v2434 = vld [vmem:[#allocation2 + $0x48] sm:$0xff]
        %v2435 = vld [vmem:[#allocation2 + $0x50] sm:$0xff]
        %v2436 = vld [vmem:[#allocation2 + $0x88] sm:$0xff]
        %v2437 = vld [vmem:[#allocation2 + $0x90] sm:$0xff]
        %v2438 = vld [vmem:[#allocation2 + $0x98] sm:$0xff]
        %v2439 = vld [vmem:[#allocation2 + $0xa0] sm:$0xff]
        %v2440 = vld [vmem:[#allocation2 + $0xa8] sm:$0xff]
        %v2441 = vld [vmem:[#allocation2 + $0xb0] sm:$0xff]
        %2454 = vrot.lane.b32.xlu0 %v2430, 61
        %v2455 = vpop.permute.xlu0 %2454
        %2456 = vrot.lane.b32.xlu0 %v2431, 61
        %v2457 = vpop.permute.xlu0 %2456
        %2458 = vrot.lane.b32.xlu0 %v2432, 61
        %v2459 = vpop.permute.xlu0 %2458
        %2460 = vrot.lane.b32.xlu0 %v2433, 61
        %v2461 = vpop.permute.xlu0 %2460
        %2462 = vrot.lane.b32.xlu0 %v2434, 61
        %v2463 = vpop.permute.xlu0 %2462
        %2464 = vrot.lane.b32.xlu0 %v2435, 61
        %v2465 = vpop.permute.xlu0 %2464
        %2466 = vrot.lane.b32.xlu0 %v2436, 61
        %v2467 = vpop.permute.xlu0 %2466
        %2468 = vrot.lane.b32.xlu0 %v2437, 61
        %v2469 = vpop.permute.xlu0 %2468
        %2470 = vrot.lane.b32.xlu0 %v2438, 61
        %v2471 = vpop.permute.xlu0 %2470
        %2472 = vrot.lane.b32.xlu0 %v2439, 61
        %v2473 = vpop.permute.xlu0 %2472
        %2474 = vrot.lane.b32.xlu0 %v2440, 61
        %v2475 = vpop.permute.xlu0 %2474
        %2476 = vrot.lane.b32.xlu0 %v2441, 61
        %v2477 = vpop.permute.xlu0 %2476
        %vm2478 = vcmask 498688
        %v2479 = vsel %vm2478, %v2455, %v2457
        %v2480 = vsel %vm2478, %v2457, %v2459
        %v2481 = vsel %vm2478, %v2459, %v2461
        %v2482 = vsel %vm2478, %v2461, %v2463
        %v2483 = vsel %vm2478, %v2463, %v2465
        %v2484 = vsel %vm2478, %v2467, %v2469
        %v2485 = vsel %vm2478, %v2469, %v2471
        %v2486 = vsel %vm2478, %v2471, %v2473
        %v2487 = vsel %vm2478, %v2473, %v2475
        %v2488 = vsel %vm2478, %v2475, %v2477
        %2499 = vst [vmem:[#allocation3 + $0x280] sm:$0xff] %v2479
        %2500 = vst [vmem:[#allocation3 + $0x288] sm:$0xff] %v2480
        %2501 = vst [vmem:[#allocation3 + $0x290] sm:$0xff] %v2481
        %2502 = vst [vmem:[#allocation3 + $0x298] sm:$0xff] %v2482
        %2503 = vst [vmem:[#allocation3 + $0x2a0] sm:$0xff] %v2483
        %2504 = vst [vmem:[#allocation3 + $0x2a8] sm:$0xff] %v2484
        %2505 = vst [vmem:[#allocation3 + $0x2b0] sm:$0xff] %v2485
        %2506 = vst [vmem:[#allocation3 + $0x2b8] sm:$0xff] %v2486
        %2507 = vst [vmem:[#allocation3 + $0x2c0] sm:$0xff] %v2487
        %2508 = vst [vmem:[#allocation3 + $0x2c8] sm:$0xff] %v2488
        %s2509 = scalar_lea.vmem %s2, 32
        %v2510 = vld [vmem:[%s2509] sm:$0xff]
        %v2511 = vld [vmem:[%s2509 + $0x8] sm:$0xff]
        %v2512 = vld [vmem:[%s2509 + $0x10] sm:$0xff]
        %v2513 = vld [vmem:[%s2509 + $0x18] sm:$0xff]
        %v2514 = vld [vmem:[#allocation3] sm:$0xff]
        %v2515 = vld [vmem:[#allocation3 + $0x8] sm:$0xff]
        %v2516 = vld [vmem:[#allocation3 + $0x10] sm:$0xff]
        %v2517 = vld [vmem:[#allocation3 + $0x18] sm:$0xff]
        %v2518 = vld [vmem:[#allocation3 + $0x20] sm:$0xff]
        %v2519 = vld [vmem:[#allocation3 + $0x28] sm:$0xff]
        %v2520 = vld [vmem:[#allocation3 + $0x30] sm:$0xff]
        %v2521 = vld [vmem:[#allocation3 + $0x38] sm:$0xff]
        %v2522 = vld [vmem:[#allocation3 + $0x40] sm:$0xff]
        %v2523 = vld [vmem:[#allocation3 + $0x48] sm:$0xff]
        %v2524 = vld [vmem:[#allocation3 + $0x50] sm:$0xff]
        %v2525 = vld [vmem:[#allocation3 + $0x58] sm:$0xff]
        %v2526 = vld [vmem:[#allocation3 + $0x60] sm:$0xff]
        %v2527 = vld [vmem:[#allocation3 + $0x68] sm:$0xff]
        %v2528 = vld [vmem:[#allocation3 + $0x70] sm:$0xff]
        %v2529 = vld [vmem:[#allocation3 + $0x78] sm:$0xff]
        %v2530 = vld [vmem:[#allocation3 + $0x80] sm:$0xff]
        %v2531 = vld [vmem:[#allocation3 + $0x88] sm:$0xff]
        %v2532 = vld [vmem:[#allocation3 + $0x90] sm:$0xff]
        %v2533 = vld [vmem:[#allocation3 + $0x98] sm:$0xff]
        %v2534 = vld [vmem:[#allocation3 + $0xa0] sm:$0xff]
        %v2535 = vld [vmem:[#allocation3 + $0xa8] sm:$0xff]
        %v2536 = vld [vmem:[#allocation3 + $0xb0] sm:$0xff]
        %v2537 = vld [vmem:[#allocation3 + $0xb8] sm:$0xff]
        %v2538 = vld [vmem:[#allocation3 + $0xc0] sm:$0xff]
        %v2539 = vld [vmem:[#allocation3 + $0xc8] sm:$0xff]
        %v2540 = vld [vmem:[#allocation3 + $0xd0] sm:$0xff]
        %v2541 = vld [vmem:[#allocation3 + $0xd8] sm:$0xff]
        %v2542 = vld [vmem:[#allocation3 + $0xe0] sm:$0xff]
        %v2543 = vld [vmem:[#allocation3 + $0xe8] sm:$0xff]
        %v2544 = vld [vmem:[#allocation3 + $0xf0] sm:$0xff]
        %v2545 = vld [vmem:[#allocation3 + $0xf8] sm:$0xff]
        %v2546 = vld [vmem:[#allocation3 + $0x100] sm:$0xff]
        %v2547 = vld [vmem:[#allocation3 + $0x108] sm:$0xff]
        %v2548 = vld [vmem:[#allocation3 + $0x110] sm:$0xff]
        %v2549 = vld [vmem:[#allocation3 + $0x118] sm:$0xff]
        %v2550 = vld [vmem:[#allocation3 + $0x120] sm:$0xff]
        %v2551 = vld [vmem:[#allocation3 + $0x128] sm:$0xff]
        %v2552 = vld [vmem:[#allocation3 + $0x130] sm:$0xff]
        %v2553 = vld [vmem:[#allocation3 + $0x138] sm:$0xff]
        %v2554 = vld [vmem:[#allocation3 + $0x140] sm:$0xff]
        %v2555 = vld [vmem:[#allocation3 + $0x148] sm:$0xff]
        %v2556 = vld [vmem:[#allocation3 + $0x150] sm:$0xff]
        %v2557 = vld [vmem:[#allocation3 + $0x158] sm:$0xff]
        %v2558 = vld [vmem:[#allocation3 + $0x160] sm:$0xff]
        %v2559 = vld [vmem:[#allocation3 + $0x168] sm:$0xff]
        %v2560 = vld [vmem:[#allocation3 + $0x170] sm:$0xff]
        %v2561 = vld [vmem:[#allocation3 + $0x178] sm:$0xff]
        %v2562 = vld [vmem:[#allocation3 + $0x180] sm:$0xff]
        %v2563 = vld [vmem:[#allocation3 + $0x188] sm:$0xff]
        %v2564 = vld [vmem:[#allocation3 + $0x190] sm:$0xff]
        %v2565 = vld [vmem:[#allocation3 + $0x198] sm:$0xff]
        %v2566 = vld [vmem:[#allocation3 + $0x1a0] sm:$0xff]
        %v2567 = vld [vmem:[#allocation3 + $0x1a8] sm:$0xff]
        %v2568 = vld [vmem:[#allocation3 + $0x1b0] sm:$0xff]
        %v2569 = vld [vmem:[#allocation3 + $0x1b8] sm:$0xff]
        %v2570 = vld [vmem:[#allocation3 + $0x1c0] sm:$0xff]
        %v2571 = vld [vmem:[#allocation3 + $0x1c8] sm:$0xff]
        %v2572 = vld [vmem:[#allocation3 + $0x1d0] sm:$0xff]
        %v2573 = vld [vmem:[#allocation3 + $0x1d8] sm:$0xff]
        %v2574 = vld [vmem:[#allocation3 + $0x1e0] sm:$0xff]
        %v2575 = vld [vmem:[#allocation3 + $0x1e8] sm:$0xff]
        %v2576 = vld [vmem:[#allocation3 + $0x1f0] sm:$0xff]
        %v2577 = vld [vmem:[#allocation3 + $0x1f8] sm:$0xff]
        %v2578 = vld [vmem:[#allocation3 + $0x200] sm:$0xff]
        %v2579 = vld [vmem:[#allocation3 + $0x208] sm:$0xff]
        %v2580 = vld [vmem:[#allocation3 + $0x210] sm:$0xff]
        %v2581 = vld [vmem:[#allocation3 + $0x218] sm:$0xff]
        %v2582 = vld [vmem:[#allocation3 + $0x220] sm:$0xff]
        %v2583 = vld [vmem:[#allocation3 + $0x228] sm:$0xff]
        %v2584 = vld [vmem:[#allocation3 + $0x230] sm:$0xff]
        %v2585 = vld [vmem:[#allocation3 + $0x238] sm:$0xff]
        %v2586 = vld [vmem:[#allocation3 + $0x240] sm:$0xff]
        %v2587 = vld [vmem:[#allocation3 + $0x248] sm:$0xff]
        %v2588 = vld [vmem:[#allocation3 + $0x250] sm:$0xff]
        %v2589 = vld [vmem:[#allocation3 + $0x258] sm:$0xff]
        %v2590 = vld [vmem:[#allocation3 + $0x260] sm:$0xff]
        %v2591 = vld [vmem:[#allocation3 + $0x268] sm:$0xff]
        %v2592 = vld [vmem:[#allocation3 + $0x270] sm:$0xff]
        %v2593 = vld [vmem:[#allocation3 + $0x278] sm:$0xff]
        %v2594 = vld [vmem:[#allocation3 + $0x280] sm:$0xff]
        %v2595 = vld [vmem:[#allocation3 + $0x288] sm:$0xff]
        %v2596 = vld [vmem:[#allocation3 + $0x290] sm:$0xff]
        %v2597 = vld [vmem:[#allocation3 + $0x298] sm:$0xff]
        %v2598 = vld [vmem:[#allocation3 + $0x2a0] sm:$0xff]
        %v2599 = vld [vmem:[#allocation3 + $0x2a8] sm:$0xff]
        %v2600 = vld [vmem:[#allocation3 + $0x2b0] sm:$0xff]
        %v2601 = vld [vmem:[#allocation3 + $0x2b8] sm:$0xff]
        %v2602 = vld [vmem:[#allocation3 + $0x2c0] sm:$0xff]
        %v2603 = vld [vmem:[#allocation3 + $0x2c8] sm:$0xff]
        %v2605 = vsel %vm1350, %v2511, 0
        %v2608 = vsel %vm1350, %v2513, 0
        %2610 = vmatprep.subr.mxu0 %v2515
        %2611 = vmatpush1.msra.mxu0 %v2514
        %2612 = vmatprep.subr.mxu0 %v2520
        %2613 = vmatpush1.msra.mxu0 %v2519
        %2614 = vmatprep.subr.mxu0 %v2525
        %2615 = vmatpush1.msra.mxu0 %v2524
        %2616 = vmatprep.subr.mxu0 %v2530
        %2617 = vmatpush1.msra.mxu0 %v2529
        %2618 = vmatprep.subr.mxu0 %v2535
        %2619 = vmatpush1.msra.mxu0 %v2534
        %2620 = vmatprep.subr.mxu0 %v2540
        %2621 = vmatpush1.msra.mxu0 %v2539
        %2622 = vmatprep.subr.mxu0 %v2545
        %2623 = vmatpush1.msra.mxu0 %v2544
        %2624 = vmatprep.subr.mxu0 %v2550
        %2625 = vmatpush1.msra.mxu0 %v2549
        %2626 = vmatprep.subr.mxu0 %v2555
        %2627 = vmatpush1.msra.mxu0 %v2554
        %2628 = vmatprep.subr.mxu0 %v2560
        %2629 = vmatpush1.msra.mxu0 %v2559
        %2630 = vmatprep.subr.mxu0 %v2565
        %2631 = vmatpush1.msra.mxu0 %v2564
        %2632 = vmatprep.subr.mxu0 %v2570
        %2633 = vmatpush1.msra.mxu0 %v2569
        %2634 = vmatprep.subr.mxu0 %v2575
        %2635 = vmatpush1.msra.mxu0 %v2574
        %2636 = vmatprep.subr.mxu0 %v2580
        %2637 = vmatpush1.msra.mxu0 %v2579
        %2638 = vmatprep.subr.mxu0 %v2585
        %2639 = vmatpush1.msra.mxu0 %v2584
        %2640 = vmatprep.subr.mxu0 %v2590
        %2641 = vmatpush1.msra.mxu0 %v2589
        %2642 = vmatprep.subr.mxu0 %v2595
        %2643 = vmatpush1.msra.mxu0 %v2594
        %2644 = vmatprep.subr.mxu0 %v2600
        %2645 = vmatpush1.msra.mxu0 %v2599
        %2646 = vmatprep.subr.mxu0 0.0
        %2647 = vmatpush1.msra.mxu0 0.0
        %2648 = vmatprep.subr.mxu0 0.0
        %2649 = vmatpush1.msra.mxu0 0.0
        %2650 = vmatprep.subr.mxu0 0.0
        %2651 = vmatpush1.msra.mxu0 0.0
        %2652 = vmatprep.subr.mxu0 0.0
        %2653 = vmatpush1.msra.mxu0 0.0
        %2654 = vmatprep.subr.mxu0 0.0
        %2655 = vmatpush1.msra.mxu0 0.0
        %2656 = vmatprep.subr.mxu0 0.0
        %2657 = vmatpush1.msra.mxu0 0.0
        %2658 = vmatprep.subr.mxu0 0.0
        %2659 = vmatpush1.msra.mxu0 0.0
        %2660 = vmatprep.subr.mxu0 0.0
        %2661 = vmatpush1.msra.mxu0 0.0
        %2662 = vmatprep.subr.mxu0 0.0
        %2663 = vmatpush1.msra.mxu0 0.0
        %2664 = vmatprep.subr.mxu0 0.0
        %2665 = vmatpush1.msra.mxu0 0.0
        %2666 = vmatprep.subr.mxu0 0.0
        %2667 = vmatpush1.msra.mxu0 0.0
        %2668 = vmatprep.subr.mxu0 0.0
        %2669 = vmatpush1.msra.mxu0 0.0
        %2670 = vmatprep.subr.mxu0 0.0
        %2671 = vmatpush1.msra.mxu0 0.0
        %2672 = vmatprep.subr.mxu0 0.0
        %2673 = vmatpush1.msra.mxu0 0.0
        %2674 = vmatprep.mubr.f32.mxu0 %v2605
        %2675 = vmatmul.mubr.f32.gmra.mrb[0].mxu0 %v2510
        %v2676 = vpop.f32.mrb[0].mxu0
        %v2677 = vadd.f32 0.0, %v2676
        %v2678 = vpop.f32.mrb[0].mxu0
        %v2679 = vadd.f32 0.0, %v2678
        %2680 = vmatprep.mubr.f32.mxu0 %v2608
        %2681 = vmatmul.mubr.f32.gmra.mrb[0].mxu0 %v2512
        %v2682 = vpop.f32.mrb[0].mxu0
        %v2683 = vadd.f32 0.0, %v2682
        %v2684 = vpop.f32.mrb[0].mxu0
        %v2685 = vadd.f32 0.0, %v2684
        %2686 = vdwg.mxu0
        %2687 = vmatprep.subr.mxu0 %v2517
        %2688 = vmatpush1.msra.mxu0 %v2516
        %2689 = vmatprep.subr.mxu0 %v2522
        %2690 = vmatpush1.msra.mxu0 %v2521
        %2691 = vmatprep.subr.mxu0 %v2527
        %2692 = vmatpush1.msra.mxu0 %v2526
        %2693 = vmatprep.subr.mxu0 %v2532
        %2694 = vmatpush1.msra.mxu0 %v2531
        %2695 = vmatprep.subr.mxu0 %v2537
        %2696 = vmatpush1.msra.mxu0 %v2536
        %2697 = vmatprep.subr.mxu0 %v2542
        %2698 = vmatpush1.msra.mxu0 %v2541
        %2699 = vmatprep.subr.mxu0 %v2547
        %2700 = vmatpush1.msra.mxu0 %v2546
        %2701 = vmatprep.subr.mxu0 %v2552
        %2702 = vmatpush1.msra.mxu0 %v2551
        %2703 = vmatprep.subr.mxu0 %v2557
        %2704 = vmatpush1.msra.mxu0 %v2556
        %2705 = vmatprep.subr.mxu0 %v2562
        %2706 = vmatpush1.msra.mxu0 %v2561
        %2707 = vmatprep.subr.mxu0 %v2567
        %2708 = vmatpush1.msra.mxu0 %v2566
        %2709 = vmatprep.subr.mxu0 %v2572
        %2710 = vmatpush1.msra.mxu0 %v2571
        %2711 = vmatprep.subr.mxu0 %v2577
        %2712 = vmatpush1.msra.mxu0 %v2576
        %2713 = vmatprep.subr.mxu0 %v2582
        %2714 = vmatpush1.msra.mxu0 %v2581
        %2715 = vmatprep.subr.mxu0 %v2587
        %2716 = vmatpush1.msra.mxu0 %v2586
        %2717 = vmatprep.subr.mxu0 %v2592
        %2718 = vmatpush1.msra.mxu0 %v2591
        %2719 = vmatprep.subr.mxu0 %v2597
        %2720 = vmatpush1.msra.mxu0 %v2596
        %2721 = vmatprep.subr.mxu0 %v2602
        %2722 = vmatpush1.msra.mxu0 %v2601
        %2723 = vmatprep.subr.mxu0 0.0
        %2724 = vmatpush1.msra.mxu0 0.0
        %2725 = vmatprep.subr.mxu0 0.0
        %2726 = vmatpush1.msra.mxu0 0.0
        %2727 = vmatprep.subr.mxu0 0.0
        %2728 = vmatpush1.msra.mxu0 0.0
        %2729 = vmatprep.subr.mxu0 0.0
        %2730 = vmatpush1.msra.mxu0 0.0
        %2731 = vmatprep.subr.mxu0 0.0
        %2732 = vmatpush1.msra.mxu0 0.0
        %2733 = vmatprep.subr.mxu0 0.0
        %2734 = vmatpush1.msra.mxu0 0.0
        %2735 = vmatprep.subr.mxu0 0.0
        %2736 = vmatpush1.msra.mxu0 0.0
        %2737 = vmatprep.subr.mxu0 0.0
        %2738 = vmatpush1.msra.mxu0 0.0
        %2739 = vmatprep.subr.mxu0 0.0
        %2740 = vmatpush1.msra.mxu0 0.0
        %2741 = vmatprep.subr.mxu0 0.0
        %2742 = vmatpush1.msra.mxu0 0.0
        %2743 = vmatprep.subr.mxu0 0.0
        %2744 = vmatpush1.msra.mxu0 0.0
        %2745 = vmatprep.subr.mxu0 0.0
        %2746 = vmatpush1.msra.mxu0 0.0
        %2747 = vmatprep.subr.mxu0 0.0
        %2748 = vmatpush1.msra.mxu0 0.0
        %2749 = vmatprep.subr.mxu0 0.0
        %2750 = vmatpush1.msra.mxu0 0.0
        %2751 = vmatprep.mubr.f32.mxu0 %v2605
        %2752 = vmatmul.mubr.f32.gmra.mrb[0].mxu0 %v2510
        %v2753 = vpop.f32.mrb[0].mxu0
        %v2754 = vadd.f32 0.0, %v2753
        %v2755 = vpop.f32.mrb[0].mxu0
        %v2756 = vadd.f32 0.0, %v2755
        %2757 = vmatprep.mubr.f32.mxu0 %v2608
        %2758 = vmatmul.mubr.f32.gmra.mrb[0].mxu0 %v2512
        %v2759 = vpop.f32.mrb[0].mxu0
        %v2760 = vadd.f32 0.0, %v2759
        %v2761 = vpop.f32.mrb[0].mxu0
        %v2762 = vadd.f32 0.0, %v2761
        %2763 = vdwg.mxu0
        %2764 = vmatprep.subr.mxu0 0.0
        %2765 = vmatpush1.msra.mxu0 %v2518
        %2766 = vmatprep.subr.mxu0 0.0
        %2767 = vmatpush1.msra.mxu0 %v2523
        %2768 = vmatprep.subr.mxu0 0.0
        %2769 = vmatpush1.msra.mxu0 %v2528
        %2770 = vmatprep.subr.mxu0 0.0
        %2771 = vmatpush1.msra.mxu0 %v2533
        %2772 = vmatprep.subr.mxu0 0.0
        %2773 = vmatpush1.msra.mxu0 %v2538
        %2774 = vmatprep.subr.mxu0 0.0
        %2775 = vmatpush1.msra.mxu0 %v2543
        %2776 = vmatprep.subr.mxu0 0.0
        %2777 = vmatpush1.msra.mxu0 %v2548
        %2778 = vmatprep.subr.mxu0 0.0
        %2779 = vmatpush1.msra.mxu0 %v2553
        %2780 = vmatprep.subr.mxu0 0.0
        %2781 = vmatpush1.msra.mxu0 %v2558
        %2782 = vmatprep.subr.mxu0 0.0
        %2783 = vmatpush1.msra.mxu0 %v2563
        %2784 = vmatprep.subr.mxu0 0.0
        %2785 = vmatpush1.msra.mxu0 %v2568
        %2786 = vmatprep.subr.mxu0 0.0
        %2787 = vmatpush1.msra.mxu0 %v2573
        %2788 = vmatprep.subr.mxu0 0.0
        %2789 = vmatpush1.msra.mxu0 %v2578
        %2790 = vmatprep.subr.mxu0 0.0
        %2791 = vmatpush1.msra.mxu0 %v2583
        %2792 = vmatprep.subr.mxu0 0.0
        %2793 = vmatpush1.msra.mxu0 %v2588
        %2794 = vmatprep.subr.mxu0 0.0
        %2795 = vmatpush1.msra.mxu0 %v2593
        %2796 = vmatprep.subr.mxu0 0.0
        %2797 = vmatpush1.msra.mxu0 %v2598
        %2798 = vmatprep.subr.mxu0 0.0
        %2799 = vmatpush1.msra.mxu0 %v2603
        %2800 = vmatprep.subr.mxu0 0.0
        %2801 = vmatpush1.msra.mxu0 0.0
        %2802 = vmatprep.subr.mxu0 0.0
        %2803 = vmatpush1.msra.mxu0 0.0
        %2804 = vmatprep.subr.mxu0 0.0
        %2805 = vmatpush1.msra.mxu0 0.0
        %2806 = vmatprep.subr.mxu0 0.0
        %2807 = vmatpush1.msra.mxu0 0.0
        %2808 = vmatprep.subr.mxu0 0.0
        %2809 = vmatpush1.msra.mxu0 0.0
        %2810 = vmatprep.subr.mxu0 0.0
        %2811 = vmatpush1.msra.mxu0 0.0
        %2812 = vmatprep.subr.mxu0 0.0
        %2813 = vmatpush1.msra.mxu0 0.0
        %2814 = vmatprep.subr.mxu0 0.0
        %2815 = vmatpush1.msra.mxu0 0.0
        %2816 = vmatprep.subr.mxu0 0.0
        %2817 = vmatpush1.msra.mxu0 0.0
        %2818 = vmatprep.subr.mxu0 0.0
        %2819 = vmatpush1.msra.mxu0 0.0
        %2820 = vmatprep.subr.mxu0 0.0
        %2821 = vmatpush1.msra.mxu0 0.0
        %2822 = vmatprep.subr.mxu0 0.0
        %2823 = vmatpush1.msra.mxu0 0.0
        %2824 = vmatprep.subr.mxu0 0.0
        %2825 = vmatpush1.msra.mxu0 0.0
        %2826 = vmatprep.subr.mxu0 0.0
        %2827 = vmatpush1.msra.mxu0 0.0
        %2828 = vmatprep.mubr.f32.mxu0 %v2605
        %2829 = vmatmul.mubr.f32.gmra.mrb[0].mxu0 %v2510
        %v2830 = vpop.f32.mrb[0].mxu0
        %v2831 = vadd.f32 0.0, %v2830
        %v2832 = vpop.f32.mrb[0].mxu0
        %2833 = vmatprep.mubr.f32.mxu0 %v2608
        %2834 = vmatmul.mubr.f32.gmra.mrb[0].mxu0 %v2512
        %v2835 = vpop.f32.mrb[0].mxu0
        %v2836 = vadd.f32 0.0, %v2835
        %v2837 = vpop.f32.mrb[0].mxu0
        %2838 = vdwg.mxu0
        %v2839 = vld [vmem:[%s163] sm:$0xff]
        %v2840 = vld [vmem:[%s163 + $0x8] sm:$0xff]
        %v2841 = vld [vmem:[%s163 + $0x10] sm:$0xff]
        %v2842 = vld [vmem:[%s163 + $0x18] sm:$0xff]
        %v2843 = vld [vmem:[%s163 + $0x20] sm:$0xff]
        %v2844 = vld [vmem:[%s163 + $0x28] sm:$0xff]
        %v2845 = vld [vmem:[%s163 + $0x30] sm:$0xff]
        %v2846 = vld [vmem:[%s163 + $0x38] sm:$0xff]
        %v2847 = vld [vmem:[%s163 + $0x40] sm:$0xff]
        %v2848 = vld [vmem:[%s163 + $0x48] sm:$0xff]
        %v2849 = vadd.f32 %v2839, %v2677
        %v2850 = vadd.f32 %v2840, %v2679
        %v2851 = vadd.f32 %v2841, %v2754
        %v2852 = vadd.f32 %v2842, %v2756
        %v2853 = vadd.f32 %v2843, %v2831
        %v2854 = vadd.f32 %v2844, %v2683
        %v2855 = vadd.f32 %v2845, %v2685
        %v2856 = vadd.f32 %v2846, %v2760
        %v2857 = vadd.f32 %v2847, %v2762
        %v2858 = vadd.f32 %v2848, %v2836
        %2859 = vst [vmem:[%s163] sm:$0xff] %v2849
        %2860 = vst [vmem:[%s163 + $0x8] sm:$0xff] %v2850
        %2861 = vst [vmem:[%s163 + $0x10] sm:$0xff] %v2851
        %2862 = vst [vmem:[%s163 + $0x18] sm:$0xff] %v2852
        %2863 = vst [vmem:[%s163 + $0x20] sm:$0xff] %v2853
        %2864 = vst [vmem:[%s163 + $0x28] sm:$0xff] %v2854
        %2865 = vst [vmem:[%s163 + $0x30] sm:$0xff] %v2855
        %2866 = vst [vmem:[%s163 + $0x38] sm:$0xff] %v2856
        %2867 = vst [vmem:[%s163 + $0x40] sm:$0xff] %v2857
        %2868 = vst [vmem:[%s163 + $0x48] sm:$0xff] %v2858
        %v2869 = vld [vmem:[#allocation2] sm:$0xff]
        %v2870 = vld [vmem:[#allocation2 + $0x8] sm:$0xff]
        %v2871 = vld [vmem:[#allocation2 + $0x10] sm:$0xff]
        %v2872 = vld [vmem:[#allocation2 + $0x18] sm:$0xff]
        %v2873 = vld [vmem:[#allocation2 + $0x20] sm:$0xff]
        %v2874 = vld [vmem:[#allocation2 + $0x28] sm:$0xff]
        %v2875 = vld [vmem:[#allocation2 + $0x60] sm:$0xff]
        %v2876 = vld [vmem:[#allocation2 + $0x68] sm:$0xff]
        %v2877 = vld [vmem:[#allocation2 + $0x70] sm:$0xff]
        %v2878 = vld [vmem:[#allocation2 + $0x78] sm:$0xff]
        %v2879 = vld [vmem:[#allocation2 + $0x80] sm:$0xff]
        %v2880 = vld [vmem:[#allocation2 + $0x88] sm:$0xff]
        %2893 = vrot.lane.b32.xlu0 %v2869, 45
        %v2894 = vpop.permute.xlu0 %2893
        %2895 = vrot.lane.b32.xlu0 %v2870, 45
        %v2896 = vpop.permute.xlu0 %2895
        %2897 = vrot.lane.b32.xlu0 %v2871, 45
        %v2898 = vpop.permute.xlu0 %2897
        %2899 = vrot.lane.b32.xlu0 %v2872, 45
        %v2900 = vpop.permute.xlu0 %2899
        %2901 = vrot.lane.b32.xlu0 %v2873, 45
        %v2902 = vpop.permute.xlu0 %2901
        %2903 = vrot.lane.b32.xlu0 %v2874, 45
        %v2904 = vpop.permute.xlu0 %2903
        %2905 = vrot.lane.b32.xlu0 %v2875, 45
        %v2906 = vpop.permute.xlu0 %2905
        %2907 = vrot.lane.b32.xlu0 %v2876, 45
        %v2908 = vpop.permute.xlu0 %2907
        %2909 = vrot.lane.b32.xlu0 %v2877, 45
        %v2910 = vpop.permute.xlu0 %2909
        %2911 = vrot.lane.b32.xlu0 %v2878, 45
        %v2912 = vpop.permute.xlu0 %2911
        %2913 = vrot.lane.b32.xlu0 %v2879, 45
        %v2914 = vpop.permute.xlu0 %2913
        %2915 = vrot.lane.b32.xlu0 %v2880, 45
        %v2916 = vpop.permute.xlu0 %2915
        %vm2917 = vcmask 367616
        %v2918 = vsel %vm2917, %v2894, %v2896
        %v2919 = vsel %vm2917, %v2896, %v2898
        %v2920 = vsel %vm2917, %v2898, %v2900
        %v2921 = vsel %vm2917, %v2900, %v2902
        %v2922 = vsel %vm2917, %v2902, %v2904
        %v2923 = vsel %vm2917, %v2906, %v2908
        %v2924 = vsel %vm2917, %v2908, %v2910
        %v2925 = vsel %vm2917, %v2910, %v2912
        %v2926 = vsel %vm2917, %v2912, %v2914
        %v2927 = vsel %vm2917, %v2914, %v2916
        %2938 = vst [vmem:[#allocation3] sm:$0xff] %v2918
        %2939 = vst [vmem:[#allocation3 + $0x8] sm:$0xff] %v2919
        %2940 = vst [vmem:[#allocation3 + $0x10] sm:$0xff] %v2920
        %2941 = vst [vmem:[#allocation3 + $0x18] sm:$0xff] %v2921
        %2942 = vst [vmem:[#allocation3 + $0x20] sm:$0xff] %v2922
        %2943 = vst [vmem:[#allocation3 + $0x28] sm:$0xff] %v2923
        %2944 = vst [vmem:[#allocation3 + $0x30] sm:$0xff] %v2924
        %2945 = vst [vmem:[#allocation3 + $0x38] sm:$0xff] %v2925
        %2946 = vst [vmem:[#allocation3 + $0x40] sm:$0xff] %v2926
        %2947 = vst [vmem:[#allocation3 + $0x48] sm:$0xff] %v2927
        %v2948 = vld [vmem:[#allocation2] sm:$0xff]
        %v2949 = vld [vmem:[#allocation2 + $0x8] sm:$0xff]
        %v2950 = vld [vmem:[#allocation2 + $0x10] sm:$0xff]
        %v2951 = vld [vmem:[#allocation2 + $0x18] sm:$0xff]
        %v2952 = vld [vmem:[#allocation2 + $0x20] sm:$0xff]
        %v2953 = vld [vmem:[#allocation2 + $0x28] sm:$0xff]
        %v2954 = vld [vmem:[#allocation2 + $0x60] sm:$0xff]
        %v2955 = vld [vmem:[#allocation2 + $0x68] sm:$0xff]
        %v2956 = vld [vmem:[#allocation2 + $0x70] sm:$0xff]
        %v2957 = vld [vmem:[#allocation2 + $0x78] sm:$0xff]
        %v2958 = vld [vmem:[#allocation2 + $0x80] sm:$0xff]
        %v2959 = vld [vmem:[#allocation2 + $0x88] sm:$0xff]
        %2972 = vrot.lane.b32.xlu0 %v2948, 36
        %v2973 = vpop.permute.xlu0 %2972
        %2974 = vrot.lane.b32.xlu0 %v2949, 36
        %v2975 = vpop.permute.xlu0 %2974
        %2976 = vrot.lane.b32.xlu0 %v2950, 36
        %v2977 = vpop.permute.xlu0 %2976
        %2978 = vrot.lane.b32.xlu0 %v2951, 36
        %v2979 = vpop.permute.xlu0 %2978
        %2980 = vrot.lane.b32.xlu0 %v2952, 36
        %v2981 = vpop.permute.xlu0 %2980
        %2982 = vrot.lane.b32.xlu0 %v2953, 36
        %v2983 = vpop.permute.xlu0 %2982
        %2984 = vrot.lane.b32.xlu0 %v2954, 36
        %v2985 = vpop.permute.xlu0 %2984
        %2986 = vrot.lane.b32.xlu0 %v2955, 36
        %v2987 = vpop.permute.xlu0 %2986
        %2988 = vrot.lane.b32.xlu0 %v2956, 36
        %v2989 = vpop.permute.xlu0 %2988
        %2990 = vrot.lane.b32.xlu0 %v2957, 36
        %v2991 = vpop.permute.xlu0 %2990
        %2992 = vrot.lane.b32.xlu0 %v2958, 36
        %v2993 = vpop.permute.xlu0 %2992
        %2994 = vrot.lane.b32.xlu0 %v2959, 36
        %v2995 = vpop.permute.xlu0 %2994
        %vm2996 = vcmask 293888
        %v2997 = vsel %vm2996, %v2973, %v2975
        %v2998 = vsel %vm2996, %v2975, %v2977
        %v2999 = vsel %vm2996, %v2977, %v2979
        %v3000 = vsel %vm2996, %v2979, %v2981
        %v3001 = vsel %vm2996, %v2981, %v2983
        %v3002 = vsel %vm2996, %v2985, %v2987
        %v3003 = vsel %vm2996, %v2987, %v2989
        %v3004 = vsel %vm2996, %v2989, %v2991
        %v3005 = vsel %vm2996, %v2991, %v2993
        %v3006 = vsel %vm2996, %v2993, %v2995
        %3017 = vst [vmem:[#allocation3 + $0x50] sm:$0xff] %v2997
        %3018 = vst [vmem:[#allocation3 + $0x58] sm:$0xff] %v2998
        %3019 = vst [vmem:[#allocation3 + $0x60] sm:$0xff] %v2999
        %3020 = vst [vmem:[#allocation3 + $0x68] sm:$0xff] %v3000
        %3021 = vst [vmem:[#allocation3 + $0x70] sm:$0xff] %v3001
        %3022 = vst [vmem:[#allocation3 + $0x78] sm:$0xff] %v3002
        %3023 = vst [vmem:[#allocation3 + $0x80] sm:$0xff] %v3003
        %3024 = vst [vmem:[#allocation3 + $0x88] sm:$0xff] %v3004
        %3025 = vst [vmem:[#allocation3 + $0x90] sm:$0xff] %v3005
        %3026 = vst [vmem:[#allocation3 + $0x98] sm:$0xff] %v3006
        %v3027 = vld [vmem:[#allocation2] sm:$0xff]
        %v3028 = vld [vmem:[#allocation2 + $0x8] sm:$0xff]
        %v3029 = vld [vmem:[#allocation2 + $0x10] sm:$0xff]
        %v3030 = vld [vmem:[#allocation2 + $0x18] sm:$0xff]
        %v3031 = vld [vmem:[#allocation2 + $0x20] sm:$0xff]
        %v3032 = vld [vmem:[#allocation2 + $0x28] sm:$0xff]
        %v3033 = vld [vmem:[#allocation2 + $0x60] sm:$0xff]
        %v3034 = vld [vmem:[#allocation2 + $0x68] sm:$0xff]
        %v3035 = vld [vmem:[#allocation2 + $0x70] sm:$0xff]
        %v3036 = vld [vmem:[#allocation2 + $0x78] sm:$0xff]
        %v3037 = vld [vmem:[#allocation2 + $0x80] sm:$0xff]
        %v3038 = vld [vmem:[#allocation2 + $0x88] sm:$0xff]
        %3051 = vrot.lane.b32.xlu0 %v3027, 27
        %v3052 = vpop.permute.xlu0 %3051
        %3053 = vrot.lane.b32.xlu0 %v3028, 27
        %v3054 = vpop.permute.xlu0 %3053
        %3055 = vrot.lane.b32.xlu0 %v3029, 27
        %v3056 = vpop.permute.xlu0 %3055
        %3057 = vrot.lane.b32.xlu0 %v3030, 27
        %v3058 = vpop.permute.xlu0 %3057
        %3059 = vrot.lane.b32.xlu0 %v3031, 27
        %v3060 = vpop.permute.xlu0 %3059
        %3061 = vrot.lane.b32.xlu0 %v3032, 27
        %v3062 = vpop.permute.xlu0 %3061
        %3063 = vrot.lane.b32.xlu0 %v3033, 27
        %v3064 = vpop.permute.xlu0 %3063
        %3065 = vrot.lane.b32.xlu0 %v3034, 27
        %v3066 = vpop.permute.xlu0 %3065
        %3067 = vrot.lane.b32.xlu0 %v3035, 27
        %v3068 = vpop.permute.xlu0 %3067
        %3069 = vrot.lane.b32.xlu0 %v3036, 27
        %v3070 = vpop.permute.xlu0 %3069
        %3071 = vrot.lane.b32.xlu0 %v3037, 27
        %v3072 = vpop.permute.xlu0 %3071
        %3073 = vrot.lane.b32.xlu0 %v3038, 27
        %v3074 = vpop.permute.xlu0 %3073
        %vm3075 = vcmask 220160
        %v3076 = vsel %vm3075, %v3052, %v3054
        %v3077 = vsel %vm3075, %v3054, %v3056
        %v3078 = vsel %vm3075, %v3056, %v3058
        %v3079 = vsel %vm3075, %v3058, %v3060
        %v3080 = vsel %vm3075, %v3060, %v3062
        %v3081 = vsel %vm3075, %v3064, %v3066
        %v3082 = vsel %vm3075, %v3066, %v3068
        %v3083 = vsel %vm3075, %v3068, %v3070
        %v3084 = vsel %vm3075, %v3070, %v3072
        %v3085 = vsel %vm3075, %v3072, %v3074
        %3096 = vst [vmem:[#allocation3 + $0xa0] sm:$0xff] %v3076
        %3097 = vst [vmem:[#allocation3 + $0xa8] sm:$0xff] %v3077
        %3098 = vst [vmem:[#allocation3 + $0xb0] sm:$0xff] %v3078
        %3099 = vst [vmem:[#allocation3 + $0xb8] sm:$0xff] %v3079
        %3100 = vst [vmem:[#allocation3 + $0xc0] sm:$0xff] %v3080
        %3101 = vst [vmem:[#allocation3 + $0xc8] sm:$0xff] %v3081
        %3102 = vst [vmem:[#allocation3 + $0xd0] sm:$0xff] %v3082
        %3103 = vst [vmem:[#allocation3 + $0xd8] sm:$0xff] %v3083
        %3104 = vst [vmem:[#allocation3 + $0xe0] sm:$0xff] %v3084
        %3105 = vst [vmem:[#allocation3 + $0xe8] sm:$0xff] %v3085
        %v3106 = vld [vmem:[#allocation2 + $0x18] sm:$0xff]
        %v3107 = vld [vmem:[#allocation2 + $0x20] sm:$0xff]
        %v3108 = vld [vmem:[#allocation2 + $0x28] sm:$0xff]
        %v3109 = vld [vmem:[#allocation2 + $0x30] sm:$0xff]
        %v3110 = vld [vmem:[#allocation2 + $0x38] sm:$0xff]
        %v3111 = vld [vmem:[#allocation2 + $0x40] sm:$0xff]
        %v3112 = vld [vmem:[#allocation2 + $0x78] sm:$0xff]
        %v3113 = vld [vmem:[#allocation2 + $0x80] sm:$0xff]
        %v3114 = vld [vmem:[#allocation2 + $0x88] sm:$0xff]
        %v3115 = vld [vmem:[#allocation2 + $0x90] sm:$0xff]
        %v3116 = vld [vmem:[#allocation2 + $0x98] sm:$0xff]
        %v3117 = vld [vmem:[#allocation2 + $0xa0] sm:$0xff]
        %3130 = vrot.lane.b32.xlu0 %v3106, 87
        %v3131 = vpop.permute.xlu0 %3130
        %3132 = vrot.lane.b32.xlu0 %v3107, 87
        %v3133 = vpop.permute.xlu0 %3132
        %3134 = vrot.lane.b32.xlu0 %v3108, 87
        %v3135 = vpop.permute.xlu0 %3134
        %3136 = vrot.lane.b32.xlu0 %v3109, 87
        %v3137 = vpop.permute.xlu0 %3136
        %3138 = vrot.lane.b32.xlu0 %v3110, 87
        %v3139 = vpop.permute.xlu0 %3138
        %3140 = vrot.lane.b32.xlu0 %v3111, 87
        %v3141 = vpop.permute.xlu0 %3140
        %3142 = vrot.lane.b32.xlu0 %v3112, 87
        %v3143 = vpop.permute.xlu0 %3142
        %3144 = vrot.lane.b32.xlu0 %v3113, 87
        %v3145 = vpop.permute.xlu0 %3144
        %3146 = vrot.lane.b32.xlu0 %v3114, 87
        %v3147 = vpop.permute.xlu0 %3146
        %3148 = vrot.lane.b32.xlu0 %v3115, 87
        %v3149 = vpop.permute.xlu0 %3148
        %3150 = vrot.lane.b32.xlu0 %v3116, 87
        %v3151 = vpop.permute.xlu0 %3150
        %3152 = vrot.lane.b32.xlu0 %v3117, 87
        %v3153 = vpop.permute.xlu0 %3152
        %vm3154 = vcmask 711680
        %v3155 = vsel %vm3154, %v3131, %v3133
        %v3156 = vsel %vm3154, %v3133, %v3135
        %v3157 = vsel %vm3154, %v3135, %v3137
        %v3158 = vsel %vm3154, %v3137, %v3139
        %v3159 = vsel %vm3154, %v3139, %v3141
        %v3160 = vsel %vm3154, %v3143, %v3145
        %v3161 = vsel %vm3154, %v3145, %v3147
        %v3162 = vsel %vm3154, %v3147, %v3149
        %v3163 = vsel %vm3154, %v3149, %v3151
        %v3164 = vsel %vm3154, %v3151, %v3153
        %3175 = vst [vmem:[#allocation3 + $0xf0] sm:$0xff] %v3155
        %3176 = vst [vmem:[#allocation3 + $0xf8] sm:$0xff] %v3156
        %3177 = vst [vmem:[#allocation3 + $0x100] sm:$0xff] %v3157
        %3178 = vst [vmem:[#allocation3 + $0x108] sm:$0xff] %v3158
        %3179 = vst [vmem:[#allocation3 + $0x110] sm:$0xff] %v3159
        %3180 = vst [vmem:[#allocation3 + $0x118] sm:$0xff] %v3160
        %3181 = vst [vmem:[#allocation3 + $0x120] sm:$0xff] %v3161
        %3182 = vst [vmem:[#allocation3 + $0x128] sm:$0xff] %v3162
        %3183 = vst [vmem:[#allocation3 + $0x130] sm:$0xff] %v3163
        %3184 = vst [vmem:[#allocation3 + $0x138] sm:$0xff] %v3164
        %v3185 = vld [vmem:[#allocation2 + $0x18] sm:$0xff]
        %v3186 = vld [vmem:[#allocation2 + $0x20] sm:$0xff]
        %v3187 = vld [vmem:[#allocation2 + $0x28] sm:$0xff]
        %v3188 = vld [vmem:[#allocation2 + $0x30] sm:$0xff]
        %v3189 = vld [vmem:[#allocation2 + $0x38] sm:$0xff]
        %v3190 = vld [vmem:[#allocation2 + $0x40] sm:$0xff]
        %v3191 = vld [vmem:[#allocation2 + $0x78] sm:$0xff]
        %v3192 = vld [vmem:[#allocation2 + $0x80] sm:$0xff]
        %v3193 = vld [vmem:[#allocation2 + $0x88] sm:$0xff]
        %v3194 = vld [vmem:[#allocation2 + $0x90] sm:$0xff]
        %v3195 = vld [vmem:[#allocation2 + $0x98] sm:$0xff]
        %v3196 = vld [vmem:[#allocation2 + $0xa0] sm:$0xff]
        %3209 = vrot.lane.b32.xlu0 %v3185, 78
        %v3210 = vpop.permute.xlu0 %3209
        %3211 = vrot.lane.b32.xlu0 %v3186, 78
        %v3212 = vpop.permute.xlu0 %3211
        %3213 = vrot.lane.b32.xlu0 %v3187, 78
        %v3214 = vpop.permute.xlu0 %3213
        %3215 = vrot.lane.b32.xlu0 %v3188, 78
        %v3216 = vpop.permute.xlu0 %3215
        %3217 = vrot.lane.b32.xlu0 %v3189, 78
        %v3218 = vpop.permute.xlu0 %3217
        %3219 = vrot.lane.b32.xlu0 %v3190, 78
        %v3220 = vpop.permute.xlu0 %3219
        %3221 = vrot.lane.b32.xlu0 %v3191, 78
        %v3222 = vpop.permute.xlu0 %3221
        %3223 = vrot.lane.b32.xlu0 %v3192, 78
        %v3224 = vpop.permute.xlu0 %3223
        %3225 = vrot.lane.b32.xlu0 %v3193, 78
        %v3226 = vpop.permute.xlu0 %3225
        %3227 = vrot.lane.b32.xlu0 %v3194, 78
        %v3228 = vpop.permute.xlu0 %3227
        %3229 = vrot.lane.b32.xlu0 %v3195, 78
        %v3230 = vpop.permute.xlu0 %3229
        %3231 = vrot.lane.b32.xlu0 %v3196, 78
        %v3232 = vpop.permute.xlu0 %3231
        %v3233 = vsel %vm1113, %v3210, %v3212
        %v3234 = vsel %vm1113, %v3212, %v3214
        %v3235 = vsel %vm1113, %v3214, %v3216
        %v3236 = vsel %vm1113, %v3216, %v3218
        %v3237 = vsel %vm1113, %v3218, %v3220
        %v3238 = vsel %vm1113, %v3222, %v3224
        %v3239 = vsel %vm1113, %v3224, %v3226
        %v3240 = vsel %vm1113, %v3226, %v3228
        %v3241 = vsel %vm1113, %v3228, %v3230
        %v3242 = vsel %vm1113, %v3230, %v3232
        %3253 = vst [vmem:[#allocation3 + $0x140] sm:$0xff] %v3233
        %3254 = vst [vmem:[#allocation3 + $0x148] sm:$0xff] %v3234
        %3255 = vst [vmem:[#allocation3 + $0x150] sm:$0xff] %v3235
        %3256 = vst [vmem:[#allocation3 + $0x158] sm:$0xff] %v3236
        %3257 = vst [vmem:[#allocation3 + $0x160] sm:$0xff] %v3237
        %3258 = vst [vmem:[#allocation3 + $0x168] sm:$0xff] %v3238
        %3259 = vst [vmem:[#allocation3 + $0x170] sm:$0xff] %v3239
        %3260 = vst [vmem:[#allocation3 + $0x178] sm:$0xff] %v3240
        %3261 = vst [vmem:[#allocation3 + $0x180] sm:$0xff] %v3241
        %3262 = vst [vmem:[#allocation3 + $0x188] sm:$0xff] %v3242
        %v3263 = vld [vmem:[#allocation2 + $0x18] sm:$0xff]
        %v3264 = vld [vmem:[#allocation2 + $0x20] sm:$0xff]
        %v3265 = vld [vmem:[#allocation2 + $0x28] sm:$0xff]
        %v3266 = vld [vmem:[#allocation2 + $0x30] sm:$0xff]
        %v3267 = vld [vmem:[#allocation2 + $0x38] sm:$0xff]
        %v3268 = vld [vmem:[#allocation2 + $0x40] sm:$0xff]
        %v3269 = vld [vmem:[#allocation2 + $0x78] sm:$0xff]
        %v3270 = vld [vmem:[#allocation2 + $0x80] sm:$0xff]
        %v3271 = vld [vmem:[#allocation2 + $0x88] sm:$0xff]
        %v3272 = vld [vmem:[#allocation2 + $0x90] sm:$0xff]
        %v3273 = vld [vmem:[#allocation2 + $0x98] sm:$0xff]
        %v3274 = vld [vmem:[#allocation2 + $0xa0] sm:$0xff]
        %3287 = vrot.lane.b32.xlu0 %v3263, 69
        %v3288 = vpop.permute.xlu0 %3287
        %3289 = vrot.lane.b32.xlu0 %v3264, 69
        %v3290 = vpop.permute.xlu0 %3289
        %3291 = vrot.lane.b32.xlu0 %v3265, 69
        %v3292 = vpop.permute.xlu0 %3291
        %3293 = vrot.lane.b32.xlu0 %v3266, 69
        %v3294 = vpop.permute.xlu0 %3293
        %3295 = vrot.lane.b32.xlu0 %v3267, 69
        %v3296 = vpop.permute.xlu0 %3295
        %3297 = vrot.lane.b32.xlu0 %v3268, 69
        %v3298 = vpop.permute.xlu0 %3297
        %3299 = vrot.lane.b32.xlu0 %v3269, 69
        %v3300 = vpop.permute.xlu0 %3299
        %3301 = vrot.lane.b32.xlu0 %v3270, 69
        %v3302 = vpop.permute.xlu0 %3301
        %3303 = vrot.lane.b32.xlu0 %v3271, 69
        %v3304 = vpop.permute.xlu0 %3303
        %3305 = vrot.lane.b32.xlu0 %v3272, 69
        %v3306 = vpop.permute.xlu0 %3305
        %3307 = vrot.lane.b32.xlu0 %v3273, 69
        %v3308 = vpop.permute.xlu0 %3307
        %3309 = vrot.lane.b32.xlu0 %v3274, 69
        %v3310 = vpop.permute.xlu0 %3309
        %vm3311 = vcmask 564224
        %v3312 = vsel %vm3311, %v3288, %v3290
        %v3313 = vsel %vm3311, %v3290, %v3292
        %v3314 = vsel %vm3311, %v3292, %v3294
        %v3315 = vsel %vm3311, %v3294, %v3296
        %v3316 = vsel %vm3311, %v3296, %v3298
        %v3317 = vsel %vm3311, %v3300, %v3302
        %v3318 = vsel %vm3311, %v3302, %v3304
        %v3319 = vsel %vm3311, %v3304, %v3306
        %v3320 = vsel %vm3311, %v3306, %v3308
        %v3321 = vsel %vm3311, %v3308, %v3310
        %3332 = vst [vmem:[#allocation3 + $0x190] sm:$0xff] %v3312
        %3333 = vst [vmem:[#allocation3 + $0x198] sm:$0xff] %v3313
        %3334 = vst [vmem:[#allocation3 + $0x1a0] sm:$0xff] %v3314
        %3335 = vst [vmem:[#allocation3 + $0x1a8] sm:$0xff] %v3315
        %3336 = vst [vmem:[#allocation3 + $0x1b0] sm:$0xff] %v3316
        %3337 = vst [vmem:[#allocation3 + $0x1b8] sm:$0xff] %v3317
        %3338 = vst [vmem:[#allocation3 + $0x1c0] sm:$0xff] %v3318
        %3339 = vst [vmem:[#allocation3 + $0x1c8] sm:$0xff] %v3319
        %3340 = vst [vmem:[#allocation3 + $0x1d0] sm:$0xff] %v3320
        %3341 = vst [vmem:[#allocation3 + $0x1d8] sm:$0xff] %v3321
        %v3342 = vld [vmem:[#allocation2 + $0x28] sm:$0xff]
        %v3343 = vld [vmem:[#allocation2 + $0x30] sm:$0xff]
        %v3344 = vld [vmem:[#allocation2 + $0x38] sm:$0xff]
        %v3345 = vld [vmem:[#allocation2 + $0x40] sm:$0xff]
        %v3346 = vld [vmem:[#allocation2 + $0x48] sm:$0xff]
        %v3347 = vld [vmem:[#allocation2 + $0x50] sm:$0xff]
        %v3348 = vld [vmem:[#allocation2 + $0x88] sm:$0xff]
        %v3349 = vld [vmem:[#allocation2 + $0x90] sm:$0xff]
        %v3350 = vld [vmem:[#allocation2 + $0x98] sm:$0xff]
        %v3351 = vld [vmem:[#allocation2 + $0xa0] sm:$0xff]
        %v3352 = vld [vmem:[#allocation2 + $0xa8] sm:$0xff]
        %v3353 = vld [vmem:[#allocation2 + $0xb0] sm:$0xff]
        %3366 = vrot.lane.b32.xlu0 %v3342, 1
        %v3367 = vpop.permute.xlu0 %3366
        %3368 = vrot.lane.b32.xlu0 %v3343, 1
        %v3369 = vpop.permute.xlu0 %3368
        %3370 = vrot.lane.b32.xlu0 %v3344, 1
        %v3371 = vpop.permute.xlu0 %3370
        %3372 = vrot.lane.b32.xlu0 %v3345, 1
        %v3373 = vpop.permute.xlu0 %3372
        %3374 = vrot.lane.b32.xlu0 %v3346, 1
        %v3375 = vpop.permute.xlu0 %3374
        %3376 = vrot.lane.b32.xlu0 %v3347, 1
        %v3377 = vpop.permute.xlu0 %3376
        %3378 = vrot.lane.b32.xlu0 %v3348, 1
        %v3379 = vpop.permute.xlu0 %3378
        %3380 = vrot.lane.b32.xlu0 %v3349, 1
        %v3381 = vpop.permute.xlu0 %3380
        %3382 = vrot.lane.b32.xlu0 %v3350, 1
        %v3383 = vpop.permute.xlu0 %3382
        %3384 = vrot.lane.b32.xlu0 %v3351, 1
        %v3385 = vpop.permute.xlu0 %3384
        %3386 = vrot.lane.b32.xlu0 %v3352, 1
        %v3387 = vpop.permute.xlu0 %3386
        %3388 = vrot.lane.b32.xlu0 %v3353, 1
        %v3389 = vpop.permute.xlu0 %3388
        %vm3390 = vcmask 7168
        %v3391 = vsel %vm3390, %v3367, %v3369
        %v3392 = vsel %vm3390, %v3369, %v3371
        %v3393 = vsel %vm3390, %v3371, %v3373
        %v3394 = vsel %vm3390, %v3373, %v3375
        %v3395 = vsel %vm3390, %v3375, %v3377
        %v3396 = vsel %vm3390, %v3379, %v3381
        %v3397 = vsel %vm3390, %v3381, %v3383
        %v3398 = vsel %vm3390, %v3383, %v3385
        %v3399 = vsel %vm3390, %v3385, %v3387
        %v3400 = vsel %vm3390, %v3387, %v3389
        %3411 = vst [vmem:[#allocation3 + $0x1e0] sm:$0xff] %v3391
        %3412 = vst [vmem:[#allocation3 + $0x1e8] sm:$0xff] %v3392
        %3413 = vst [vmem:[#allocation3 + $0x1f0] sm:$0xff] %v3393
        %3414 = vst [vmem:[#allocation3 + $0x1f8] sm:$0xff] %v3394
        %3415 = vst [vmem:[#allocation3 + $0x200] sm:$0xff] %v3395
        %3416 = vst [vmem:[#allocation3 + $0x208] sm:$0xff] %v3396
        %3417 = vst [vmem:[#allocation3 + $0x210] sm:$0xff] %v3397
        %3418 = vst [vmem:[#allocation3 + $0x218] sm:$0xff] %v3398
        %3419 = vst [vmem:[#allocation3 + $0x220] sm:$0xff] %v3399
        %3420 = vst [vmem:[#allocation3 + $0x228] sm:$0xff] %v3400
        %v3421 = vld [vmem:[#allocation2 + $0x30] sm:$0xff]
        %v3422 = vld [vmem:[#allocation2 + $0x38] sm:$0xff]
        %v3423 = vld [vmem:[#allocation2 + $0x40] sm:$0xff]
        %v3424 = vld [vmem:[#allocation2 + $0x48] sm:$0xff]
        %v3425 = vld [vmem:[#allocation2 + $0x50] sm:$0xff]
        %v3426 = vld [vmem:[#allocation2 + $0x58] sm:$0xff]
        %v3427 = vld [vmem:[#allocation2 + $0x90] sm:$0xff]
        %v3428 = vld [vmem:[#allocation2 + $0x98] sm:$0xff]
        %v3429 = vld [vmem:[#allocation2 + $0xa0] sm:$0xff]
        %v3430 = vld [vmem:[#allocation2 + $0xa8] sm:$0xff]
        %v3431 = vld [vmem:[#allocation2 + $0xb0] sm:$0xff]
        %v3432 = vld [vmem:[#allocation2 + $0xb8] sm:$0xff]
        %3445 = vrot.lane.b32.xlu0 %v3421, 120
        %v3446 = vpop.permute.xlu0 %3445
        %3447 = vrot.lane.b32.xlu0 %v3422, 120
        %v3448 = vpop.permute.xlu0 %3447
        %3449 = vrot.lane.b32.xlu0 %v3423, 120
        %v3450 = vpop.permute.xlu0 %3449
        %3451 = vrot.lane.b32.xlu0 %v3424, 120
        %v3452 = vpop.permute.xlu0 %3451
        %3453 = vrot.lane.b32.xlu0 %v3425, 120
        %v3454 = vpop.permute.xlu0 %3453
        %3455 = vrot.lane.b32.xlu0 %v3426, 120
        %v3456 = vpop.permute.xlu0 %3455
        %3457 = vrot.lane.b32.xlu0 %v3427, 120
        %v3458 = vpop.permute.xlu0 %3457
        %3459 = vrot.lane.b32.xlu0 %v3428, 120
        %v3460 = vpop.permute.xlu0 %3459
        %3461 = vrot.lane.b32.xlu0 %v3429, 120
        %v3462 = vpop.permute.xlu0 %3461
        %3463 = vrot.lane.b32.xlu0 %v3430, 120
        %v3464 = vpop.permute.xlu0 %3463
        %3465 = vrot.lane.b32.xlu0 %v3431, 120
        %v3466 = vpop.permute.xlu0 %3465
        %3467 = vrot.lane.b32.xlu0 %v3432, 120
        %v3468 = vpop.permute.xlu0 %3467
        %vm3469 = vcmask 982016
        %v3470 = vsel %vm3469, %v3446, %v3448
        %v3471 = vsel %vm3469, %v3448, %v3450
        %v3472 = vsel %vm3469, %v3450, %v3452
        %v3473 = vsel %vm3469, %v3452, %v3454
        %v3474 = vsel %vm3469, %v3454, %v3456
        %v3475 = vsel %vm3469, %v3458, %v3460
        %v3476 = vsel %vm3469, %v3460, %v3462
        %v3477 = vsel %vm3469, %v3462, %v3464
        %v3478 = vsel %vm3469, %v3464, %v3466
        %v3479 = vsel %vm3469, %v3466, %v3468
        %3490 = vst [vmem:[#allocation3 + $0x230] sm:$0xff] %v3470
        %3491 = vst [vmem:[#allocation3 + $0x238] sm:$0xff] %v3471
        %3492 = vst [vmem:[#allocation3 + $0x240] sm:$0xff] %v3472
        %3493 = vst [vmem:[#allocation3 + $0x248] sm:$0xff] %v3473
        %3494 = vst [vmem:[#allocation3 + $0x250] sm:$0xff] %v3474
        %3495 = vst [vmem:[#allocation3 + $0x258] sm:$0xff] %v3475
        %3496 = vst [vmem:[#allocation3 + $0x260] sm:$0xff] %v3476
        %3497 = vst [vmem:[#allocation3 + $0x268] sm:$0xff] %v3477
        %3498 = vst [vmem:[#allocation3 + $0x270] sm:$0xff] %v3478
        %3499 = vst [vmem:[#allocation3 + $0x278] sm:$0xff] %v3479
        %v3500 = vld [vmem:[#allocation2 + $0x30] sm:$0xff]
        %v3501 = vld [vmem:[#allocation2 + $0x38] sm:$0xff]
        %v3502 = vld [vmem:[#allocation2 + $0x40] sm:$0xff]
        %v3503 = vld [vmem:[#allocation2 + $0x48] sm:$0xff]
        %v3504 = vld [vmem:[#allocation2 + $0x50] sm:$0xff]
        %v3505 = vld [vmem:[#allocation2 + $0x58] sm:$0xff]
        %v3506 = vld [vmem:[#allocation2 + $0x90] sm:$0xff]
        %v3507 = vld [vmem:[#allocation2 + $0x98] sm:$0xff]
        %v3508 = vld [vmem:[#allocation2 + $0xa0] sm:$0xff]
        %v3509 = vld [vmem:[#allocation2 + $0xa8] sm:$0xff]
        %v3510 = vld [vmem:[#allocation2 + $0xb0] sm:$0xff]
        %v3511 = vld [vmem:[#allocation2 + $0xb8] sm:$0xff]
        %3524 = vrot.lane.b32.xlu0 %v3500, 111
        %v3525 = vpop.permute.xlu0 %3524
        %3526 = vrot.lane.b32.xlu0 %v3501, 111
        %v3527 = vpop.permute.xlu0 %3526
        %3528 = vrot.lane.b32.xlu0 %v3502, 111
        %v3529 = vpop.permute.xlu0 %3528
        %3530 = vrot.lane.b32.xlu0 %v3503, 111
        %v3531 = vpop.permute.xlu0 %3530
        %3532 = vrot.lane.b32.xlu0 %v3504, 111
        %v3533 = vpop.permute.xlu0 %3532
        %3534 = vrot.lane.b32.xlu0 %v3505, 111
        %v3535 = vpop.permute.xlu0 %3534
        %3536 = vrot.lane.b32.xlu0 %v3506, 111
        %v3537 = vpop.permute.xlu0 %3536
        %3538 = vrot.lane.b32.xlu0 %v3507, 111
        %v3539 = vpop.permute.xlu0 %3538
        %3540 = vrot.lane.b32.xlu0 %v3508, 111
        %v3541 = vpop.permute.xlu0 %3540
        %3542 = vrot.lane.b32.xlu0 %v3509, 111
        %v3543 = vpop.permute.xlu0 %3542
        %3544 = vrot.lane.b32.xlu0 %v3510, 111
        %v3545 = vpop.permute.xlu0 %3544
        %3546 = vrot.lane.b32.xlu0 %v3511, 111
        %v3547 = vpop.permute.xlu0 %3546
        %vm3548 = vcmask 908288
        %v3549 = vsel %vm3548, %v3525, %v3527
        %v3550 = vsel %vm3548, %v3527, %v3529
        %v3551 = vsel %vm3548, %v3529, %v3531
        %v3552 = vsel %vm3548, %v3531, %v3533
        %v3553 = vsel %vm3548, %v3533, %v3535
        %v3554 = vsel %vm3548, %v3537, %v3539
        %v3555 = vsel %vm3548, %v3539, %v3541
        %v3556 = vsel %vm3548, %v3541, %v3543
        %v3557 = vsel %vm3548, %v3543, %v3545
        %v3558 = vsel %vm3548, %v3545, %v3547
        %3569 = vst [vmem:[#allocation3 + $0x280] sm:$0xff] %v3549
        %3570 = vst [vmem:[#allocation3 + $0x288] sm:$0xff] %v3550
        %3571 = vst [vmem:[#allocation3 + $0x290] sm:$0xff] %v3551
        %3572 = vst [vmem:[#allocation3 + $0x298] sm:$0xff] %v3552
        %3573 = vst [vmem:[#allocation3 + $0x2a0] sm:$0xff] %v3553
        %3574 = vst [vmem:[#allocation3 + $0x2a8] sm:$0xff] %v3554
        %3575 = vst [vmem:[#allocation3 + $0x2b0] sm:$0xff] %v3555
        %3576 = vst [vmem:[#allocation3 + $0x2b8] sm:$0xff] %v3556
        %3577 = vst [vmem:[#allocation3 + $0x2c0] sm:$0xff] %v3557
        %3578 = vst [vmem:[#allocation3 + $0x2c8] sm:$0xff] %v3558
        %s3579 = scalar_lea.vmem %s2, 64
        %v3580 = vld [vmem:[%s3579] sm:$0xff]
        %v3581 = vld [vmem:[%s3579 + $0x8] sm:$0xff]
        %v3582 = vld [vmem:[%s3579 + $0x10] sm:$0xff]
        %v3583 = vld [vmem:[%s3579 + $0x18] sm:$0xff]
        %v3584 = vld [vmem:[#allocation3] sm:$0xff]
        %v3585 = vld [vmem:[#allocation3 + $0x8] sm:$0xff]
        %v3586 = vld [vmem:[#allocation3 + $0x10] sm:$0xff]
        %v3587 = vld [vmem:[#allocation3 + $0x18] sm:$0xff]
        %v3588 = vld [vmem:[#allocation3 + $0x20] sm:$0xff]
        %v3589 = vld [vmem:[#allocation3 + $0x28] sm:$0xff]
        %v3590 = vld [vmem:[#allocation3 + $0x30] sm:$0xff]
        %v3591 = vld [vmem:[#allocation3 + $0x38] sm:$0xff]
        %v3592 = vld [vmem:[#allocation3 + $0x40] sm:$0xff]
        %v3593 = vld [vmem:[#allocation3 + $0x48] sm:$0xff]
        %v3594 = vld [vmem:[#allocation3 + $0x50] sm:$0xff]
        %v3595 = vld [vmem:[#allocation3 + $0x58] sm:$0xff]
        %v3596 = vld [vmem:[#allocation3 + $0x60] sm:$0xff]
        %v3597 = vld [vmem:[#allocation3 + $0x68] sm:$0xff]
        %v3598 = vld [vmem:[#allocation3 + $0x70] sm:$0xff]
        %v3599 = vld [vmem:[#allocation3 + $0x78] sm:$0xff]
        %v3600 = vld [vmem:[#allocation3 + $0x80] sm:$0xff]
        %v3601 = vld [vmem:[#allocation3 + $0x88] sm:$0xff]
        %v3602 = vld [vmem:[#allocation3 + $0x90] sm:$0xff]
        %v3603 = vld [vmem:[#allocation3 + $0x98] sm:$0xff]
        %v3604 = vld [vmem:[#allocation3 + $0xa0] sm:$0xff]
        %v3605 = vld [vmem:[#allocation3 + $0xa8] sm:$0xff]
        %v3606 = vld [vmem:[#allocation3 + $0xb0] sm:$0xff]
        %v3607 = vld [vmem:[#allocation3 + $0xb8] sm:$0xff]
        %v3608 = vld [vmem:[#allocation3 + $0xc0] sm:$0xff]
        %v3609 = vld [vmem:[#allocation3 + $0xc8] sm:$0xff]
        %v3610 = vld [vmem:[#allocation3 + $0xd0] sm:$0xff]
        %v3611 = vld [vmem:[#allocation3 + $0xd8] sm:$0xff]
        %v3612 = vld [vmem:[#allocation3 + $0xe0] sm:$0xff]
        %v3613 = vld [vmem:[#allocation3 + $0xe8] sm:$0xff]
        %v3614 = vld [vmem:[#allocation3 + $0xf0] sm:$0xff]
        %v3615 = vld [vmem:[#allocation3 + $0xf8] sm:$0xff]
        %v3616 = vld [vmem:[#allocation3 + $0x100] sm:$0xff]
        %v3617 = vld [vmem:[#allocation3 + $0x108] sm:$0xff]
        %v3618 = vld [vmem:[#allocation3 + $0x110] sm:$0xff]
        %v3619 = vld [vmem:[#allocation3 + $0x118] sm:$0xff]
        %v3620 = vld [vmem:[#allocation3 + $0x120] sm:$0xff]
        %v3621 = vld [vmem:[#allocation3 + $0x128] sm:$0xff]
        %v3622 = vld [vmem:[#allocation3 + $0x130] sm:$0xff]
        %v3623 = vld [vmem:[#allocation3 + $0x138] sm:$0xff]
        %v3624 = vld [vmem:[#allocation3 + $0x140] sm:$0xff]
        %v3625 = vld [vmem:[#allocation3 + $0x148] sm:$0xff]
        %v3626 = vld [vmem:[#allocation3 + $0x150] sm:$0xff]
        %v3627 = vld [vmem:[#allocation3 + $0x158] sm:$0xff]
        %v3628 = vld [vmem:[#allocation3 + $0x160] sm:$0xff]
        %v3629 = vld [vmem:[#allocation3 + $0x168] sm:$0xff]
        %v3630 = vld [vmem:[#allocation3 + $0x170] sm:$0xff]
        %v3631 = vld [vmem:[#allocation3 + $0x178] sm:$0xff]
        %v3632 = vld [vmem:[#allocation3 + $0x180] sm:$0xff]
        %v3633 = vld [vmem:[#allocation3 + $0x188] sm:$0xff]
        %v3634 = vld [vmem:[#allocation3 + $0x190] sm:$0xff]
        %v3635 = vld [vmem:[#allocation3 + $0x198] sm:$0xff]
        %v3636 = vld [vmem:[#allocation3 + $0x1a0] sm:$0xff]
        %v3637 = vld [vmem:[#allocation3 + $0x1a8] sm:$0xff]
        %v3638 = vld [vmem:[#allocation3 + $0x1b0] sm:$0xff]
        %v3639 = vld [vmem:[#allocation3 + $0x1b8] sm:$0xff]
        %v3640 = vld [vmem:[#allocation3 + $0x1c0] sm:$0xff]
        %v3641 = vld [vmem:[#allocation3 + $0x1c8] sm:$0xff]
        %v3642 = vld [vmem:[#allocation3 + $0x1d0] sm:$0xff]
        %v3643 = vld [vmem:[#allocation3 + $0x1d8] sm:$0xff]
        %v3644 = vld [vmem:[#allocation3 + $0x1e0] sm:$0xff]
        %v3645 = vld [vmem:[#allocation3 + $0x1e8] sm:$0xff]
        %v3646 = vld [vmem:[#allocation3 + $0x1f0] sm:$0xff]
        %v3647 = vld [vmem:[#allocation3 + $0x1f8] sm:$0xff]
        %v3648 = vld [vmem:[#allocation3 + $0x200] sm:$0xff]
        %v3649 = vld [vmem:[#allocation3 + $0x208] sm:$0xff]
        %v3650 = vld [vmem:[#allocation3 + $0x210] sm:$0xff]
        %v3651 = vld [vmem:[#allocation3 + $0x218] sm:$0xff]
        %v3652 = vld [vmem:[#allocation3 + $0x220] sm:$0xff]
        %v3653 = vld [vmem:[#allocation3 + $0x228] sm:$0xff]
        %v3654 = vld [vmem:[#allocation3 + $0x230] sm:$0xff]
        %v3655 = vld [vmem:[#allocation3 + $0x238] sm:$0xff]
        %v3656 = vld [vmem:[#allocation3 + $0x240] sm:$0xff]
        %v3657 = vld [vmem:[#allocation3 + $0x248] sm:$0xff]
        %v3658 = vld [vmem:[#allocation3 + $0x250] sm:$0xff]
        %v3659 = vld [vmem:[#allocation3 + $0x258] sm:$0xff]
        %v3660 = vld [vmem:[#allocation3 + $0x260] sm:$0xff]
        %v3661 = vld [vmem:[#allocation3 + $0x268] sm:$0xff]
        %v3662 = vld [vmem:[#allocation3 + $0x270] sm:$0xff]
        %v3663 = vld [vmem:[#allocation3 + $0x278] sm:$0xff]
        %v3664 = vld [vmem:[#allocation3 + $0x280] sm:$0xff]
        %v3665 = vld [vmem:[#allocation3 + $0x288] sm:$0xff]
        %v3666 = vld [vmem:[#allocation3 + $0x290] sm:$0xff]
        %v3667 = vld [vmem:[#allocation3 + $0x298] sm:$0xff]
        %v3668 = vld [vmem:[#allocation3 + $0x2a0] sm:$0xff]
        %v3669 = vld [vmem:[#allocation3 + $0x2a8] sm:$0xff]
        %v3670 = vld [vmem:[#allocation3 + $0x2b0] sm:$0xff]
        %v3671 = vld [vmem:[#allocation3 + $0x2b8] sm:$0xff]
        %v3672 = vld [vmem:[#allocation3 + $0x2c0] sm:$0xff]
        %v3673 = vld [vmem:[#allocation3 + $0x2c8] sm:$0xff]
        %v3675 = vsel %vm1350, %v3581, 0
        %v3678 = vsel %vm1350, %v3583, 0
        %3680 = vmatprep.subr.mxu0 %v3585
        %3681 = vmatpush1.msra.mxu0 %v3584
        %3682 = vmatprep.subr.mxu0 %v3590
        %3683 = vmatpush1.msra.mxu0 %v3589
        %3684 = vmatprep.subr.mxu0 %v3595
        %3685 = vmatpush1.msra.mxu0 %v3594
        %3686 = vmatprep.subr.mxu0 %v3600
        %3687 = vmatpush1.msra.mxu0 %v3599
        %3688 = vmatprep.subr.mxu0 %v3605
        %3689 = vmatpush1.msra.mxu0 %v3604
        %3690 = vmatprep.subr.mxu0 %v3610
        %3691 = vmatpush1.msra.mxu0 %v3609
        %3692 = vmatprep.subr.mxu0 %v3615
        %3693 = vmatpush1.msra.mxu0 %v3614
        %3694 = vmatprep.subr.mxu0 %v3620
        %3695 = vmatpush1.msra.mxu0 %v3619
        %3696 = vmatprep.subr.mxu0 %v3625
        %3697 = vmatpush1.msra.mxu0 %v3624
        %3698 = vmatprep.subr.mxu0 %v3630
        %3699 = vmatpush1.msra.mxu0 %v3629
        %3700 = vmatprep.subr.mxu0 %v3635
        %3701 = vmatpush1.msra.mxu0 %v3634
        %3702 = vmatprep.subr.mxu0 %v3640
        %3703 = vmatpush1.msra.mxu0 %v3639
        %3704 = vmatprep.subr.mxu0 %v3645
        %3705 = vmatpush1.msra.mxu0 %v3644
        %3706 = vmatprep.subr.mxu0 %v3650
        %3707 = vmatpush1.msra.mxu0 %v3649
        %3708 = vmatprep.subr.mxu0 %v3655
        %3709 = vmatpush1.msra.mxu0 %v3654
        %3710 = vmatprep.subr.mxu0 %v3660
        %3711 = vmatpush1.msra.mxu0 %v3659
        %3712 = vmatprep.subr.mxu0 %v3665
        %3713 = vmatpush1.msra.mxu0 %v3664
        %3714 = vmatprep.subr.mxu0 %v3670
        %3715 = vmatpush1.msra.mxu0 %v3669
        %3716 = vmatprep.subr.mxu0 0.0
        %3717 = vmatpush1.msra.mxu0 0.0
        %3718 = vmatprep.subr.mxu0 0.0
        %3719 = vmatpush1.msra.mxu0 0.0
        %3720 = vmatprep.subr.mxu0 0.0
        %3721 = vmatpush1.msra.mxu0 0.0
        %3722 = vmatprep.subr.mxu0 0.0
        %3723 = vmatpush1.msra.mxu0 0.0
        %3724 = vmatprep.subr.mxu0 0.0
        %3725 = vmatpush1.msra.mxu0 0.0
        %3726 = vmatprep.subr.mxu0 0.0
        %3727 = vmatpush1.msra.mxu0 0.0
        %3728 = vmatprep.subr.mxu0 0.0
        %3729 = vmatpush1.msra.mxu0 0.0
        %3730 = vmatprep.subr.mxu0 0.0
        %3731 = vmatpush1.msra.mxu0 0.0
        %3732 = vmatprep.subr.mxu0 0.0
        %3733 = vmatpush1.msra.mxu0 0.0
        %3734 = vmatprep.subr.mxu0 0.0
        %3735 = vmatpush1.msra.mxu0 0.0
        %3736 = vmatprep.subr.mxu0 0.0
        %3737 = vmatpush1.msra.mxu0 0.0
        %3738 = vmatprep.subr.mxu0 0.0
        %3739 = vmatpush1.msra.mxu0 0.0
        %3740 = vmatprep.subr.mxu0 0.0
        %3741 = vmatpush1.msra.mxu0 0.0
        %3742 = vmatprep.subr.mxu0 0.0
        %3743 = vmatpush1.msra.mxu0 0.0
        %3744 = vmatprep.mubr.f32.mxu0 %v3675
        %3745 = vmatmul.mubr.f32.gmra.mrb[0].mxu0 %v3580
        %v3746 = vpop.f32.mrb[0].mxu0
        %v3747 = vadd.f32 0.0, %v3746
        %v3748 = vpop.f32.mrb[0].mxu0
        %v3749 = vadd.f32 0.0, %v3748
        %3750 = vmatprep.mubr.f32.mxu0 %v3678
        %3751 = vmatmul.mubr.f32.gmra.mrb[0].mxu0 %v3582
        %v3752 = vpop.f32.mrb[0].mxu0
        %v3753 = vadd.f32 0.0, %v3752
        %v3754 = vpop.f32.mrb[0].mxu0
        %v3755 = vadd.f32 0.0, %v3754
        %3756 = vdwg.mxu0
        %3757 = vmatprep.subr.mxu0 %v3587
        %3758 = vmatpush1.msra.mxu0 %v3586
        %3759 = vmatprep.subr.mxu0 %v3592
        %3760 = vmatpush1.msra.mxu0 %v3591
        %3761 = vmatprep.subr.mxu0 %v3597
        %3762 = vmatpush1.msra.mxu0 %v3596
        %3763 = vmatprep.subr.mxu0 %v3602
        %3764 = vmatpush1.msra.mxu0 %v3601
        %3765 = vmatprep.subr.mxu0 %v3607
        %3766 = vmatpush1.msra.mxu0 %v3606
        %3767 = vmatprep.subr.mxu0 %v3612
        %3768 = vmatpush1.msra.mxu0 %v3611
        %3769 = vmatprep.subr.mxu0 %v3617
        %3770 = vmatpush1.msra.mxu0 %v3616
        %3771 = vmatprep.subr.mxu0 %v3622
        %3772 = vmatpush1.msra.mxu0 %v3621
        %3773 = vmatprep.subr.mxu0 %v3627
        %3774 = vmatpush1.msra.mxu0 %v3626
        %3775 = vmatprep.subr.mxu0 %v3632
        %3776 = vmatpush1.msra.mxu0 %v3631
        %3777 = vmatprep.subr.mxu0 %v3637
        %3778 = vmatpush1.msra.mxu0 %v3636
        %3779 = vmatprep.subr.mxu0 %v3642
        %3780 = vmatpush1.msra.mxu0 %v3641
        %3781 = vmatprep.subr.mxu0 %v3647
        %3782 = vmatpush1.msra.mxu0 %v3646
        %3783 = vmatprep.subr.mxu0 %v3652
        %3784 = vmatpush1.msra.mxu0 %v3651
        %3785 = vmatprep.subr.mxu0 %v3657
        %3786 = vmatpush1.msra.mxu0 %v3656
        %3787 = vmatprep.subr.mxu0 %v3662
        %3788 = vmatpush1.msra.mxu0 %v3661
        %3789 = vmatprep.subr.mxu0 %v3667
        %3790 = vmatpush1.msra.mxu0 %v3666
        %3791 = vmatprep.subr.mxu0 %v3672
        %3792 = vmatpush1.msra.mxu0 %v3671
        %3793 = vmatprep.subr.mxu0 0.0
        %3794 = vmatpush1.msra.mxu0 0.0
        %3795 = vmatprep.subr.mxu0 0.0
        %3796 = vmatpush1.msra.mxu0 0.0
        %3797 = vmatprep.subr.mxu0 0.0
        %3798 = vmatpush1.msra.mxu0 0.0
        %3799 = vmatprep.subr.mxu0 0.0
        %3800 = vmatpush1.msra.mxu0 0.0
        %3801 = vmatprep.subr.mxu0 0.0
        %3802 = vmatpush1.msra.mxu0 0.0
        %3803 = vmatprep.subr.mxu0 0.0
        %3804 = vmatpush1.msra.mxu0 0.0
        %3805 = vmatprep.subr.mxu0 0.0
        %3806 = vmatpush1.msra.mxu0 0.0
        %3807 = vmatprep.subr.mxu0 0.0
        %3808 = vmatpush1.msra.mxu0 0.0
        %3809 = vmatprep.subr.mxu0 0.0
        %3810 = vmatpush1.msra.mxu0 0.0
        %3811 = vmatprep.subr.mxu0 0.0
        %3812 = vmatpush1.msra.mxu0 0.0
        %3813 = vmatprep.subr.mxu0 0.0
        %3814 = vmatpush1.msra.mxu0 0.0
        %3815 = vmatprep.subr.mxu0 0.0
        %3816 = vmatpush1.msra.mxu0 0.0
        %3817 = vmatprep.subr.mxu0 0.0
        %3818 = vmatpush1.msra.mxu0 0.0
        %3819 = vmatprep.subr.mxu0 0.0
        %3820 = vmatpush1.msra.mxu0 0.0
        %3821 = vmatprep.mubr.f32.mxu0 %v3675
        %3822 = vmatmul.mubr.f32.gmra.mrb[0].mxu0 %v3580
        %v3823 = vpop.f32.mrb[0].mxu0
        %v3824 = vadd.f32 0.0, %v3823
        %v3825 = vpop.f32.mrb[0].mxu0
        %v3826 = vadd.f32 0.0, %v3825
        %3827 = vmatprep.mubr.f32.mxu0 %v3678
        %3828 = vmatmul.mubr.f32.gmra.mrb[0].mxu0 %v3582
        %v3829 = vpop.f32.mrb[0].mxu0
        %v3830 = vadd.f32 0.0, %v3829
        %v3831 = vpop.f32.mrb[0].mxu0
        %v3832 = vadd.f32 0.0, %v3831
        %3833 = vdwg.mxu0
        %3834 = vmatprep.subr.mxu0 0.0
        %3835 = vmatpush1.msra.mxu0 %v3588
        %3836 = vmatprep.subr.mxu0 0.0
        %3837 = vmatpush1.msra.mxu0 %v3593
        %3838 = vmatprep.subr.mxu0 0.0
        %3839 = vmatpush1.msra.mxu0 %v3598
        %3840 = vmatprep.subr.mxu0 0.0
        %3841 = vmatpush1.msra.mxu0 %v3603
        %3842 = vmatprep.subr.mxu0 0.0
        %3843 = vmatpush1.msra.mxu0 %v3608
        %3844 = vmatprep.subr.mxu0 0.0
        %3845 = vmatpush1.msra.mxu0 %v3613
        %3846 = vmatprep.subr.mxu0 0.0
        %3847 = vmatpush1.msra.mxu0 %v3618
        %3848 = vmatprep.subr.mxu0 0.0
        %3849 = vmatpush1.msra.mxu0 %v3623
        %3850 = vmatprep.subr.mxu0 0.0
        %3851 = vmatpush1.msra.mxu0 %v3628
        %3852 = vmatprep.subr.mxu0 0.0
        %3853 = vmatpush1.msra.mxu0 %v3633
        %3854 = vmatprep.subr.mxu0 0.0
        %3855 = vmatpush1.msra.mxu0 %v3638
        %3856 = vmatprep.subr.mxu0 0.0
        %3857 = vmatpush1.msra.mxu0 %v3643
        %3858 = vmatprep.subr.mxu0 0.0
        %3859 = vmatpush1.msra.mxu0 %v3648
        %3860 = vmatprep.subr.mxu0 0.0
        %3861 = vmatpush1.msra.mxu0 %v3653
        %3862 = vmatprep.subr.mxu0 0.0
        %3863 = vmatpush1.msra.mxu0 %v3658
        %3864 = vmatprep.subr.mxu0 0.0
        %3865 = vmatpush1.msra.mxu0 %v3663
        %3866 = vmatprep.subr.mxu0 0.0
        %3867 = vmatpush1.msra.mxu0 %v3668
        %3868 = vmatprep.subr.mxu0 0.0
        %3869 = vmatpush1.msra.mxu0 %v3673
        %3870 = vmatprep.subr.mxu0 0.0
        %3871 = vmatpush1.msra.mxu0 0.0
        %3872 = vmatprep.subr.mxu0 0.0
        %3873 = vmatpush1.msra.mxu0 0.0
        %3874 = vmatprep.subr.mxu0 0.0
        %3875 = vmatpush1.msra.mxu0 0.0
        %3876 = vmatprep.subr.mxu0 0.0
        %3877 = vmatpush1.msra.mxu0 0.0
        %3878 = vmatprep.subr.mxu0 0.0
        %3879 = vmatpush1.msra.mxu0 0.0
        %3880 = vmatprep.subr.mxu0 0.0
        %3881 = vmatpush1.msra.mxu0 0.0
        %3882 = vmatprep.subr.mxu0 0.0
        %3883 = vmatpush1.msra.mxu0 0.0
        %3884 = vmatprep.subr.mxu0 0.0
        %3885 = vmatpush1.msra.mxu0 0.0
        %3886 = vmatprep.subr.mxu0 0.0
        %3887 = vmatpush1.msra.mxu0 0.0
        %3888 = vmatprep.subr.mxu0 0.0
        %3889 = vmatpush1.msra.mxu0 0.0
        %3890 = vmatprep.subr.mxu0 0.0
        %3891 = vmatpush1.msra.mxu0 0.0
        %3892 = vmatprep.subr.mxu0 0.0
        %3893 = vmatpush1.msra.mxu0 0.0
        %3894 = vmatprep.subr.mxu0 0.0
        %3895 = vmatpush1.msra.mxu0 0.0
        %3896 = vmatprep.subr.mxu0 0.0
        %3897 = vmatpush1.msra.mxu0 0.0
        %3898 = vmatprep.mubr.f32.mxu0 %v3675
        %3899 = vmatmul.mubr.f32.gmra.mrb[0].mxu0 %v3580
        %v3900 = vpop.f32.mrb[0].mxu0
        %v3901 = vadd.f32 0.0, %v3900
        %v3902 = vpop.f32.mrb[0].mxu0
        %3903 = vmatprep.mubr.f32.mxu0 %v3678
        %3904 = vmatmul.mubr.f32.gmra.mrb[0].mxu0 %v3582
        %v3905 = vpop.f32.mrb[0].mxu0
        %v3906 = vadd.f32 0.0, %v3905
        %v3907 = vpop.f32.mrb[0].mxu0
        %3908 = vdwg.mxu0
        %v3909 = vld [vmem:[%s163] sm:$0xff]
        %v3910 = vld [vmem:[%s163 + $0x8] sm:$0xff]
        %v3911 = vld [vmem:[%s163 + $0x10] sm:$0xff]
        %v3912 = vld [vmem:[%s163 + $0x18] sm:$0xff]
        %v3913 = vld [vmem:[%s163 + $0x20] sm:$0xff]
        %v3914 = vld [vmem:[%s163 + $0x28] sm:$0xff]
        %v3915 = vld [vmem:[%s163 + $0x30] sm:$0xff]
        %v3916 = vld [vmem:[%s163 + $0x38] sm:$0xff]
        %v3917 = vld [vmem:[%s163 + $0x40] sm:$0xff]
        %v3918 = vld [vmem:[%s163 + $0x48] sm:$0xff]
        %v3919 = vadd.f32 %v3909, %v3747
        %v3920 = vadd.f32 %v3910, %v3749
        %v3921 = vadd.f32 %v3911, %v3824
        %v3922 = vadd.f32 %v3912, %v3826
        %v3923 = vadd.f32 %v3913, %v3901
        %v3924 = vadd.f32 %v3914, %v3753
        %v3925 = vadd.f32 %v3915, %v3755
        %v3926 = vadd.f32 %v3916, %v3830
        %v3927 = vadd.f32 %v3917, %v3832
        %v3928 = vadd.f32 %v3918, %v3906
        %3929 = vst [vmem:[%s163] sm:$0xff] %v3919
        %3930 = vst [vmem:[%s163 + $0x8] sm:$0xff] %v3920
        %3931 = vst [vmem:[%s163 + $0x10] sm:$0xff] %v3921
        %3932 = vst [vmem:[%s163 + $0x18] sm:$0xff] %v3922
        %3933 = vst [vmem:[%s163 + $0x20] sm:$0xff] %v3923
        %3934 = vst [vmem:[%s163 + $0x28] sm:$0xff] %v3924
        %3935 = vst [vmem:[%s163 + $0x30] sm:$0xff] %v3925
        %3936 = vst [vmem:[%s163 + $0x38] sm:$0xff] %v3926
        %3937 = vst [vmem:[%s163 + $0x40] sm:$0xff] %v3927
        %3938 = vst [vmem:[%s163 + $0x48] sm:$0xff] %v3928
        %v3939 = vld [vmem:[#allocation2] sm:$0xff]
        %v3940 = vld [vmem:[#allocation2 + $0x8] sm:$0xff]
        %v3941 = vld [vmem:[#allocation2 + $0x10] sm:$0xff]
        %v3942 = vld [vmem:[#allocation2 + $0x18] sm:$0xff]
        %v3943 = vld [vmem:[#allocation2 + $0x20] sm:$0xff]
        %v3944 = vld [vmem:[#allocation2 + $0x28] sm:$0xff]
        %v3945 = vld [vmem:[#allocation2 + $0x60] sm:$0xff]
        %v3946 = vld [vmem:[#allocation2 + $0x68] sm:$0xff]
        %v3947 = vld [vmem:[#allocation2 + $0x70] sm:$0xff]
        %v3948 = vld [vmem:[#allocation2 + $0x78] sm:$0xff]
        %v3949 = vld [vmem:[#allocation2 + $0x80] sm:$0xff]
        %v3950 = vld [vmem:[#allocation2 + $0x88] sm:$0xff]
        %3963 = vrot.lane.b32.xlu0 %v3939, 123
        %v3964 = vpop.permute.xlu0 %3963
        %3965 = vrot.lane.b32.xlu0 %v3940, 123
        %v3966 = vpop.permute.xlu0 %3965
        %3967 = vrot.lane.b32.xlu0 %v3941, 123
        %v3968 = vpop.permute.xlu0 %3967
        %3969 = vrot.lane.b32.xlu0 %v3942, 123
        %v3970 = vpop.permute.xlu0 %3969
        %3971 = vrot.lane.b32.xlu0 %v3943, 123
        %v3972 = vpop.permute.xlu0 %3971
        %3973 = vrot.lane.b32.xlu0 %v3944, 123
        %v3974 = vpop.permute.xlu0 %3973
        %3975 = vrot.lane.b32.xlu0 %v3945, 123
        %v3976 = vpop.permute.xlu0 %3975
        %3977 = vrot.lane.b32.xlu0 %v3946, 123
        %v3978 = vpop.permute.xlu0 %3977
        %3979 = vrot.lane.b32.xlu0 %v3947, 123
        %v3980 = vpop.permute.xlu0 %3979
        %3981 = vrot.lane.b32.xlu0 %v3948, 123
        %v3982 = vpop.permute.xlu0 %3981
        %3983 = vrot.lane.b32.xlu0 %v3949, 123
        %v3984 = vpop.permute.xlu0 %3983
        %3985 = vrot.lane.b32.xlu0 %v3950, 123
        %v3986 = vpop.permute.xlu0 %3985
        %vm3987 = vcmask 1006592
        %v3988 = vsel %vm3987, %v3964, %v3966
        %v3989 = vsel %vm3987, %v3966, %v3968
        %v3990 = vsel %vm3987, %v3968, %v3970
        %v3991 = vsel %vm3987, %v3970, %v3972
        %v3992 = vsel %vm3987, %v3972, %v3974
        %v3993 = vsel %vm3987, %v3976, %v3978
        %v3994 = vsel %vm3987, %v3978, %v3980
        %v3995 = vsel %vm3987, %v3980, %v3982
        %v3996 = vsel %vm3987, %v3982, %v3984
        %v3997 = vsel %vm3987, %v3984, %v3986
        %4008 = vst [vmem:[#allocation3] sm:$0xff] %v3988
        %4009 = vst [vmem:[#allocation3 + $0x8] sm:$0xff] %v3989
        %4010 = vst [vmem:[#allocation3 + $0x10] sm:$0xff] %v3990
        %4011 = vst [vmem:[#allocation3 + $0x18] sm:$0xff] %v3991
        %4012 = vst [vmem:[#allocation3 + $0x20] sm:$0xff] %v3992
        %4013 = vst [vmem:[#allocation3 + $0x28] sm:$0xff] %v3993
        %4014 = vst [vmem:[#allocation3 + $0x30] sm:$0xff] %v3994
        %4015 = vst [vmem:[#allocation3 + $0x38] sm:$0xff] %v3995
        %4016 = vst [vmem:[#allocation3 + $0x40] sm:$0xff] %v3996
        %4017 = vst [vmem:[#allocation3 + $0x48] sm:$0xff] %v3997
        %v4018 = vld [vmem:[#allocation2] sm:$0xff]
        %v4019 = vld [vmem:[#allocation2 + $0x8] sm:$0xff]
        %v4020 = vld [vmem:[#allocation2 + $0x10] sm:$0xff]
        %v4021 = vld [vmem:[#allocation2 + $0x18] sm:$0xff]
        %v4022 = vld [vmem:[#allocation2 + $0x20] sm:$0xff]
        %v4023 = vld [vmem:[#allocation2 + $0x28] sm:$0xff]
        %v4024 = vld [vmem:[#allocation2 + $0x60] sm:$0xff]
        %v4025 = vld [vmem:[#allocation2 + $0x68] sm:$0xff]
        %v4026 = vld [vmem:[#allocation2 + $0x70] sm:$0xff]
        %v4027 = vld [vmem:[#allocation2 + $0x78] sm:$0xff]
        %v4028 = vld [vmem:[#allocation2 + $0x80] sm:$0xff]
        %v4029 = vld [vmem:[#allocation2 + $0x88] sm:$0xff]
        %4042 = vrot.lane.b32.xlu0 %v4018, 112
        %v4043 = vpop.permute.xlu0 %4042
        %4044 = vrot.lane.b32.xlu0 %v4019, 112
        %v4045 = vpop.permute.xlu0 %4044
        %4046 = vrot.lane.b32.xlu0 %v4020, 112
        %v4047 = vpop.permute.xlu0 %4046
        %4048 = vrot.lane.b32.xlu0 %v4021, 112
        %v4049 = vpop.permute.xlu0 %4048
        %4050 = vrot.lane.b32.xlu0 %v4022, 112
        %v4051 = vpop.permute.xlu0 %4050
        %4052 = vrot.lane.b32.xlu0 %v4023, 112
        %v4053 = vpop.permute.xlu0 %4052
        %4054 = vrot.lane.b32.xlu0 %v4024, 112
        %v4055 = vpop.permute.xlu0 %4054
        %4056 = vrot.lane.b32.xlu0 %v4025, 112
        %v4057 = vpop.permute.xlu0 %4056
        %4058 = vrot.lane.b32.xlu0 %v4026, 112
        %v4059 = vpop.permute.xlu0 %4058
        %4060 = vrot.lane.b32.xlu0 %v4027, 112
        %v4061 = vpop.permute.xlu0 %4060
        %4062 = vrot.lane.b32.xlu0 %v4028, 112
        %v4063 = vpop.permute.xlu0 %4062
        %4064 = vrot.lane.b32.xlu0 %v4029, 112
        %v4065 = vpop.permute.xlu0 %4064
        %vm4066 = vcmask 916480
        %v4067 = vsel %vm4066, %v4043, %v4045
        %v4068 = vsel %vm4066, %v4045, %v4047
        %v4069 = vsel %vm4066, %v4047, %v4049
        %v4070 = vsel %vm4066, %v4049, %v4051
        %v4071 = vsel %vm4066, %v4051, %v4053
        %v4072 = vsel %vm4066, %v4055, %v4057
        %v4073 = vsel %vm4066, %v4057, %v4059
        %v4074 = vsel %vm4066, %v4059, %v4061
        %v4075 = vsel %vm4066, %v4061, %v4063
        %v4076 = vsel %vm4066, %v4063, %v4065
        %4087 = vst [vmem:[#allocation3 + $0x50] sm:$0xff] %v4067
        %4088 = vst [vmem:[#allocation3 + $0x58] sm:$0xff] %v4068
        %4089 = vst [vmem:[#allocation3 + $0x60] sm:$0xff] %v4069
        %4090 = vst [vmem:[#allocation3 + $0x68] sm:$0xff] %v4070
        %4091 = vst [vmem:[#allocation3 + $0x70] sm:$0xff] %v4071
        %4092 = vst [vmem:[#allocation3 + $0x78] sm:$0xff] %v4072
        %4093 = vst [vmem:[#allocation3 + $0x80] sm:$0xff] %v4073
        %4094 = vst [vmem:[#allocation3 + $0x88] sm:$0xff] %v4074
        %4095 = vst [vmem:[#allocation3 + $0x90] sm:$0xff] %v4075
        %4096 = vst [vmem:[#allocation3 + $0x98] sm:$0xff] %v4076
        %v4097 = vld [vmem:[#allocation2] sm:$0xff]
        %v4098 = vld [vmem:[#allocation2 + $0x8] sm:$0xff]
        %v4099 = vld [vmem:[#allocation2 + $0x10] sm:$0xff]
        %v4100 = vld [vmem:[#allocation2 + $0x18] sm:$0xff]
        %v4101 = vld [vmem:[#allocation2 + $0x20] sm:$0xff]
        %v4102 = vld [vmem:[#allocation2 + $0x28] sm:$0xff]
        %v4103 = vld [vmem:[#allocation2 + $0x60] sm:$0xff]
        %v4104 = vld [vmem:[#allocation2 + $0x68] sm:$0xff]
        %v4105 = vld [vmem:[#allocation2 + $0x70] sm:$0xff]
        %v4106 = vld [vmem:[#allocation2 + $0x78] sm:$0xff]
        %v4107 = vld [vmem:[#allocation2 + $0x80] sm:$0xff]
        %v4108 = vld [vmem:[#allocation2 + $0x88] sm:$0xff]
        %4121 = vrot.lane.b32.xlu0 %v4097, 101
        %v4122 = vpop.permute.xlu0 %4121
        %4123 = vrot.lane.b32.xlu0 %v4098, 101
        %v4124 = vpop.permute.xlu0 %4123
        %4125 = vrot.lane.b32.xlu0 %v4099, 101
        %v4126 = vpop.permute.xlu0 %4125
        %4127 = vrot.lane.b32.xlu0 %v4100, 101
        %v4128 = vpop.permute.xlu0 %4127
        %4129 = vrot.lane.b32.xlu0 %v4101, 101
        %v4130 = vpop.permute.xlu0 %4129
        %4131 = vrot.lane.b32.xlu0 %v4102, 101
        %v4132 = vpop.permute.xlu0 %4131
        %4133 = vrot.lane.b32.xlu0 %v4103, 101
        %v4134 = vpop.permute.xlu0 %4133
        %4135 = vrot.lane.b32.xlu0 %v4104, 101
        %v4136 = vpop.permute.xlu0 %4135
        %4137 = vrot.lane.b32.xlu0 %v4105, 101
        %v4138 = vpop.permute.xlu0 %4137
        %4139 = vrot.lane.b32.xlu0 %v4106, 101
        %v4140 = vpop.permute.xlu0 %4139
        %4141 = vrot.lane.b32.xlu0 %v4107, 101
        %v4142 = vpop.permute.xlu0 %4141
        %4143 = vrot.lane.b32.xlu0 %v4108, 101
        %v4144 = vpop.permute.xlu0 %4143
        %vm4145 = vcmask 826368
        %v4146 = vsel %vm4145, %v4122, %v4124
        %v4147 = vsel %vm4145, %v4124, %v4126
        %v4148 = vsel %vm4145, %v4126, %v4128
        %v4149 = vsel %vm4145, %v4128, %v4130
        %v4150 = vsel %vm4145, %v4130, %v4132
        %v4151 = vsel %vm4145, %v4134, %v4136
        %v4152 = vsel %vm4145, %v4136, %v4138
        %v4153 = vsel %vm4145, %v4138, %v4140
        %v4154 = vsel %vm4145, %v4140, %v4142
        %v4155 = vsel %vm4145, %v4142, %v4144
        %4166 = vst [vmem:[#allocation3 + $0xa0] sm:$0xff] %v4146
        %4167 = vst [vmem:[#allocation3 + $0xa8] sm:$0xff] %v4147
        %4168 = vst [vmem:[#allocation3 + $0xb0] sm:$0xff] %v4148
        %4169 = vst [vmem:[#allocation3 + $0xb8] sm:$0xff] %v4149
        %4170 = vst [vmem:[#allocation3 + $0xc0] sm:$0xff] %v4150
        %4171 = vst [vmem:[#allocation3 + $0xc8] sm:$0xff] %v4151
        %4172 = vst [vmem:[#allocation3 + $0xd0] sm:$0xff] %v4152
        %4173 = vst [vmem:[#allocation3 + $0xd8] sm:$0xff] %v4153
        %4174 = vst [vmem:[#allocation3 + $0xe0] sm:$0xff] %v4154
        %4175 = vst [vmem:[#allocation3 + $0xe8] sm:$0xff] %v4155
        %v4176 = vld [vmem:[#allocation2 + $0x18] sm:$0xff]
        %v4177 = vld [vmem:[#allocation2 + $0x20] sm:$0xff]
        %v4178 = vld [vmem:[#allocation2 + $0x28] sm:$0xff]
        %v4179 = vld [vmem:[#allocation2 + $0x30] sm:$0xff]
        %v4180 = vld [vmem:[#allocation2 + $0x38] sm:$0xff]
        %v4181 = vld [vmem:[#allocation2 + $0x40] sm:$0xff]
        %v4182 = vld [vmem:[#allocation2 + $0x78] sm:$0xff]
        %v4183 = vld [vmem:[#allocation2 + $0x80] sm:$0xff]
        %v4184 = vld [vmem:[#allocation2 + $0x88] sm:$0xff]
        %v4185 = vld [vmem:[#allocation2 + $0x90] sm:$0xff]
        %v4186 = vld [vmem:[#allocation2 + $0x98] sm:$0xff]
        %v4187 = vld [vmem:[#allocation2 + $0xa0] sm:$0xff]
        %4200 = vrot.lane.b32.xlu0 %v4176, 89
        %v4201 = vpop.permute.xlu0 %4200
        %4202 = vrot.lane.b32.xlu0 %v4177, 89
        %v4203 = vpop.permute.xlu0 %4202
        %4204 = vrot.lane.b32.xlu0 %v4178, 89
        %v4205 = vpop.permute.xlu0 %4204
        %4206 = vrot.lane.b32.xlu0 %v4179, 89
        %v4207 = vpop.permute.xlu0 %4206
        %4208 = vrot.lane.b32.xlu0 %v4180, 89
        %v4209 = vpop.permute.xlu0 %4208
        %4210 = vrot.lane.b32.xlu0 %v4181, 89
        %v4211 = vpop.permute.xlu0 %4210
        %4212 = vrot.lane.b32.xlu0 %v4182, 89
        %v4213 = vpop.permute.xlu0 %4212
        %4214 = vrot.lane.b32.xlu0 %v4183, 89
        %v4215 = vpop.permute.xlu0 %4214
        %4216 = vrot.lane.b32.xlu0 %v4184, 89
        %v4217 = vpop.permute.xlu0 %4216
        %4218 = vrot.lane.b32.xlu0 %v4185, 89
        %v4219 = vpop.permute.xlu0 %4218
        %4220 = vrot.lane.b32.xlu0 %v4186, 89
        %v4221 = vpop.permute.xlu0 %4220
        %4222 = vrot.lane.b32.xlu0 %v4187, 89
        %v4223 = vpop.permute.xlu0 %4222
        %vm4224 = vcmask 728064
        %v4225 = vsel %vm4224, %v4201, %v4203
        %v4226 = vsel %vm4224, %v4203, %v4205
        %v4227 = vsel %vm4224, %v4205, %v4207
        %v4228 = vsel %vm4224, %v4207, %v4209
        %v4229 = vsel %vm4224, %v4209, %v4211
        %v4230 = vsel %vm4224, %v4213, %v4215
        %v4231 = vsel %vm4224, %v4215, %v4217
        %v4232 = vsel %vm4224, %v4217, %v4219
        %v4233 = vsel %vm4224, %v4219, %v4221
        %v4234 = vsel %vm4224, %v4221, %v4223
        %4245 = vst [vmem:[#allocation3 + $0xf0] sm:$0xff] %v4225
        %4246 = vst [vmem:[#allocation3 + $0xf8] sm:$0xff] %v4226
        %4247 = vst [vmem:[#allocation3 + $0x100] sm:$0xff] %v4227
        %4248 = vst [vmem:[#allocation3 + $0x108] sm:$0xff] %v4228
        %4249 = vst [vmem:[#allocation3 + $0x110] sm:$0xff] %v4229
        %4250 = vst [vmem:[#allocation3 + $0x118] sm:$0xff] %v4230
        %4251 = vst [vmem:[#allocation3 + $0x120] sm:$0xff] %v4231
        %4252 = vst [vmem:[#allocation3 + $0x128] sm:$0xff] %v4232
        %4253 = vst [vmem:[#allocation3 + $0x130] sm:$0xff] %v4233
        %4254 = vst [vmem:[#allocation3 + $0x138] sm:$0xff] %v4234
        %v4255 = vld [vmem:[#allocation2 + $0x18] sm:$0xff]
        %v4256 = vld [vmem:[#allocation2 + $0x20] sm:$0xff]
        %v4257 = vld [vmem:[#allocation2 + $0x28] sm:$0xff]
        %v4258 = vld [vmem:[#allocation2 + $0x30] sm:$0xff]
        %v4259 = vld [vmem:[#allocation2 + $0x38] sm:$0xff]
        %v4260 = vld [vmem:[#allocation2 + $0x40] sm:$0xff]
        %v4261 = vld [vmem:[#allocation2 + $0x78] sm:$0xff]
        %v4262 = vld [vmem:[#allocation2 + $0x80] sm:$0xff]
        %v4263 = vld [vmem:[#allocation2 + $0x88] sm:$0xff]
        %v4264 = vld [vmem:[#allocation2 + $0x90] sm:$0xff]
        %v4265 = vld [vmem:[#allocation2 + $0x98] sm:$0xff]
        %v4266 = vld [vmem:[#allocation2 + $0xa0] sm:$0xff]
        %4279 = vrot.lane.b32.xlu0 %v4255, 78
        %v4280 = vpop.permute.xlu0 %4279
        %4281 = vrot.lane.b32.xlu0 %v4256, 78
        %v4282 = vpop.permute.xlu0 %4281
        %4283 = vrot.lane.b32.xlu0 %v4257, 78
        %v4284 = vpop.permute.xlu0 %4283
        %4285 = vrot.lane.b32.xlu0 %v4258, 78
        %v4286 = vpop.permute.xlu0 %4285
        %4287 = vrot.lane.b32.xlu0 %v4259, 78
        %v4288 = vpop.permute.xlu0 %4287
        %4289 = vrot.lane.b32.xlu0 %v4260, 78
        %v4290 = vpop.permute.xlu0 %4289
        %4291 = vrot.lane.b32.xlu0 %v4261, 78
        %v4292 = vpop.permute.xlu0 %4291
        %4293 = vrot.lane.b32.xlu0 %v4262, 78
        %v4294 = vpop.permute.xlu0 %4293
        %4295 = vrot.lane.b32.xlu0 %v4263, 78
        %v4296 = vpop.permute.xlu0 %4295
        %4297 = vrot.lane.b32.xlu0 %v4264, 78
        %v4298 = vpop.permute.xlu0 %4297
        %4299 = vrot.lane.b32.xlu0 %v4265, 78
        %v4300 = vpop.permute.xlu0 %4299
        %4301 = vrot.lane.b32.xlu0 %v4266, 78
        %v4302 = vpop.permute.xlu0 %4301
        %v4303 = vsel %vm1113, %v4280, %v4282
        %v4304 = vsel %vm1113, %v4282, %v4284
        %v4305 = vsel %vm1113, %v4284, %v4286
        %v4306 = vsel %vm1113, %v4286, %v4288
        %v4307 = vsel %vm1113, %v4288, %v4290
        %v4308 = vsel %vm1113, %v4292, %v4294
        %v4309 = vsel %vm1113, %v4294, %v4296
        %v4310 = vsel %vm1113, %v4296, %v4298
        %v4311 = vsel %vm1113, %v4298, %v4300
        %v4312 = vsel %vm1113, %v4300, %v4302
        %4323 = vst [vmem:[#allocation3 + $0x140] sm:$0xff] %v4303
        %4324 = vst [vmem:[#allocation3 + $0x148] sm:$0xff] %v4304
        %4325 = vst [vmem:[#allocation3 + $0x150] sm:$0xff] %v4305
        %4326 = vst [vmem:[#allocation3 + $0x158] sm:$0xff] %v4306
        %4327 = vst [vmem:[#allocation3 + $0x160] sm:$0xff] %v4307
        %4328 = vst [vmem:[#allocation3 + $0x168] sm:$0xff] %v4308
        %4329 = vst [vmem:[#allocation3 + $0x170] sm:$0xff] %v4309
        %4330 = vst [vmem:[#allocation3 + $0x178] sm:$0xff] %v4310
        %4331 = vst [vmem:[#allocation3 + $0x180] sm:$0xff] %v4311
        %4332 = vst [vmem:[#allocation3 + $0x188] sm:$0xff] %v4312
        %v4333 = vld [vmem:[#allocation2 + $0x18] sm:$0xff]
        %v4334 = vld [vmem:[#allocation2 + $0x20] sm:$0xff]
        %v4335 = vld [vmem:[#allocation2 + $0x28] sm:$0xff]
        %v4336 = vld [vmem:[#allocation2 + $0x30] sm:$0xff]
        %v4337 = vld [vmem:[#allocation2 + $0x38] sm:$0xff]
        %v4338 = vld [vmem:[#allocation2 + $0x40] sm:$0xff]
        %v4339 = vld [vmem:[#allocation2 + $0x78] sm:$0xff]
        %v4340 = vld [vmem:[#allocation2 + $0x80] sm:$0xff]
        %v4341 = vld [vmem:[#allocation2 + $0x88] sm:$0xff]
        %v4342 = vld [vmem:[#allocation2 + $0x90] sm:$0xff]
        %v4343 = vld [vmem:[#allocation2 + $0x98] sm:$0xff]
        %v4344 = vld [vmem:[#allocation2 + $0xa0] sm:$0xff]
        %4357 = vrot.lane.b32.xlu0 %v4333, 67
        %v4358 = vpop.permute.xlu0 %4357
        %4359 = vrot.lane.b32.xlu0 %v4334, 67
        %v4360 = vpop.permute.xlu0 %4359
        %4361 = vrot.lane.b32.xlu0 %v4335, 67
        %v4362 = vpop.permute.xlu0 %4361
        %4363 = vrot.lane.b32.xlu0 %v4336, 67
        %v4364 = vpop.permute.xlu0 %4363
        %4365 = vrot.lane.b32.xlu0 %v4337, 67
        %v4366 = vpop.permute.xlu0 %4365
        %4367 = vrot.lane.b32.xlu0 %v4338, 67
        %v4368 = vpop.permute.xlu0 %4367
        %4369 = vrot.lane.b32.xlu0 %v4339, 67
        %v4370 = vpop.permute.xlu0 %4369
        %4371 = vrot.lane.b32.xlu0 %v4340, 67
        %v4372 = vpop.permute.xlu0 %4371
        %4373 = vrot.lane.b32.xlu0 %v4341, 67
        %v4374 = vpop.permute.xlu0 %4373
        %4375 = vrot.lane.b32.xlu0 %v4342, 67
        %v4376 = vpop.permute.xlu0 %4375
        %4377 = vrot.lane.b32.xlu0 %v4343, 67
        %v4378 = vpop.permute.xlu0 %4377
        %4379 = vrot.lane.b32.xlu0 %v4344, 67
        %v4380 = vpop.permute.xlu0 %4379
        %vm4381 = vcmask 547840
        %v4382 = vsel %vm4381, %v4358, %v4360
        %v4383 = vsel %vm4381, %v4360, %v4362
        %v4384 = vsel %vm4381, %v4362, %v4364
        %v4385 = vsel %vm4381, %v4364, %v4366
        %v4386 = vsel %vm4381, %v4366, %v4368
        %v4387 = vsel %vm4381, %v4370, %v4372
        %v4388 = vsel %vm4381, %v4372, %v4374
        %v4389 = vsel %vm4381, %v4374, %v4376
        %v4390 = vsel %vm4381, %v4376, %v4378
        %v4391 = vsel %vm4381, %v4378, %v4380
        %4402 = vst [vmem:[#allocation3 + $0x190] sm:$0xff] %v4382
        %4403 = vst [vmem:[#allocation3 + $0x198] sm:$0xff] %v4383
        %4404 = vst [vmem:[#allocation3 + $0x1a0] sm:$0xff] %v4384
        %4405 = vst [vmem:[#allocation3 + $0x1a8] sm:$0xff] %v4385
        %4406 = vst [vmem:[#allocation3 + $0x1b0] sm:$0xff] %v4386
        %4407 = vst [vmem:[#allocation3 + $0x1b8] sm:$0xff] %v4387
        %4408 = vst [vmem:[#allocation3 + $0x1c0] sm:$0xff] %v4388
        %4409 = vst [vmem:[#allocation3 + $0x1c8] sm:$0xff] %v4389
        %4410 = vst [vmem:[#allocation3 + $0x1d0] sm:$0xff] %v4390
        %4411 = vst [vmem:[#allocation3 + $0x1d8] sm:$0xff] %v4391
        %v4412 = vld [vmem:[#allocation2 + $0x30] sm:$0xff]
        %v4413 = vld [vmem:[#allocation2 + $0x38] sm:$0xff]
        %v4414 = vld [vmem:[#allocation2 + $0x40] sm:$0xff]
        %v4415 = vld [vmem:[#allocation2 + $0x48] sm:$0xff]
        %v4416 = vld [vmem:[#allocation2 + $0x50] sm:$0xff]
        %v4417 = vld [vmem:[#allocation2 + $0x58] sm:$0xff]
        %v4418 = vld [vmem:[#allocation2 + $0x90] sm:$0xff]
        %v4419 = vld [vmem:[#allocation2 + $0x98] sm:$0xff]
        %v4420 = vld [vmem:[#allocation2 + $0xa0] sm:$0xff]
        %v4421 = vld [vmem:[#allocation2 + $0xa8] sm:$0xff]
        %v4422 = vld [vmem:[#allocation2 + $0xb0] sm:$0xff]
        %v4423 = vld [vmem:[#allocation2 + $0xb8] sm:$0xff]
        %4436 = vrot.lane.b32.xlu0 %v4412, 55
        %v4437 = vpop.permute.xlu0 %4436
        %4438 = vrot.lane.b32.xlu0 %v4413, 55
        %v4439 = vpop.permute.xlu0 %4438
        %4440 = vrot.lane.b32.xlu0 %v4414, 55
        %v4441 = vpop.permute.xlu0 %4440
        %4442 = vrot.lane.b32.xlu0 %v4415, 55
        %v4443 = vpop.permute.xlu0 %4442
        %4444 = vrot.lane.b32.xlu0 %v4416, 55
        %v4445 = vpop.permute.xlu0 %4444
        %4446 = vrot.lane.b32.xlu0 %v4417, 55
        %v4447 = vpop.permute.xlu0 %4446
        %4448 = vrot.lane.b32.xlu0 %v4418, 55
        %v4449 = vpop.permute.xlu0 %4448
        %4450 = vrot.lane.b32.xlu0 %v4419, 55
        %v4451 = vpop.permute.xlu0 %4450
        %4452 = vrot.lane.b32.xlu0 %v4420, 55
        %v4453 = vpop.permute.xlu0 %4452
        %4454 = vrot.lane.b32.xlu0 %v4421, 55
        %v4455 = vpop.permute.xlu0 %4454
        %4456 = vrot.lane.b32.xlu0 %v4422, 55
        %v4457 = vpop.permute.xlu0 %4456
        %4458 = vrot.lane.b32.xlu0 %v4423, 55
        %v4459 = vpop.permute.xlu0 %4458
        %vm4460 = vcmask 449536
        %v4461 = vsel %vm4460, %v4437, %v4439
        %v4462 = vsel %vm4460, %v4439, %v4441
        %v4463 = vsel %vm4460, %v4441, %v4443
        %v4464 = vsel %vm4460, %v4443, %v4445
        %v4465 = vsel %vm4460, %v4445, %v4447
        %v4466 = vsel %vm4460, %v4449, %v4451
        %v4467 = vsel %vm4460, %v4451, %v4453
        %v4468 = vsel %vm4460, %v4453, %v4455
        %v4469 = vsel %vm4460, %v4455, %v4457
        %v4470 = vsel %vm4460, %v4457, %v4459
        %4481 = vst [vmem:[#allocation3 + $0x1e0] sm:$0xff] %v4461
        %4482 = vst [vmem:[#allocation3 + $0x1e8] sm:$0xff] %v4462
        %4483 = vst [vmem:[#allocation3 + $0x1f0] sm:$0xff] %v4463
        %4484 = vst [vmem:[#allocation3 + $0x1f8] sm:$0xff] %v4464
        %4485 = vst [vmem:[#allocation3 + $0x200] sm:$0xff] %v4465
        %4486 = vst [vmem:[#allocation3 + $0x208] sm:$0xff] %v4466
        %4487 = vst [vmem:[#allocation3 + $0x210] sm:$0xff] %v4467
        %4488 = vst [vmem:[#allocation3 + $0x218] sm:$0xff] %v4468
        %4489 = vst [vmem:[#allocation3 + $0x220] sm:$0xff] %v4469
        %4490 = vst [vmem:[#allocation3 + $0x228] sm:$0xff] %v4470
        %v4491 = vld [vmem:[#allocation2 + $0x30] sm:$0xff]
        %v4492 = vld [vmem:[#allocation2 + $0x38] sm:$0xff]
        %v4493 = vld [vmem:[#allocation2 + $0x40] sm:$0xff]
        %v4494 = vld [vmem:[#allocation2 + $0x48] sm:$0xff]
        %v4495 = vld [vmem:[#allocation2 + $0x50] sm:$0xff]
        %v4496 = vld [vmem:[#allocation2 + $0x58] sm:$0xff]
        %v4497 = vld [vmem:[#allocation2 + $0x90] sm:$0xff]
        %v4498 = vld [vmem:[#allocation2 + $0x98] sm:$0xff]
        %v4499 = vld [vmem:[#allocation2 + $0xa0] sm:$0xff]
        %v4500 = vld [vmem:[#allocation2 + $0xa8] sm:$0xff]
        %v4501 = vld [vmem:[#allocation2 + $0xb0] sm:$0xff]
        %v4502 = vld [vmem:[#allocation2 + $0xb8] sm:$0xff]
        %4515 = vrot.lane.b32.xlu0 %v4491, 44
        %v4516 = vpop.permute.xlu0 %4515
        %4517 = vrot.lane.b32.xlu0 %v4492, 44
        %v4518 = vpop.permute.xlu0 %4517
        %4519 = vrot.lane.b32.xlu0 %v4493, 44
        %v4520 = vpop.permute.xlu0 %4519
        %4521 = vrot.lane.b32.xlu0 %v4494, 44
        %v4522 = vpop.permute.xlu0 %4521
        %4523 = vrot.lane.b32.xlu0 %v4495, 44
        %v4524 = vpop.permute.xlu0 %4523
        %4525 = vrot.lane.b32.xlu0 %v4496, 44
        %v4526 = vpop.permute.xlu0 %4525
        %4527 = vrot.lane.b32.xlu0 %v4497, 44
        %v4528 = vpop.permute.xlu0 %4527
        %4529 = vrot.lane.b32.xlu0 %v4498, 44
        %v4530 = vpop.permute.xlu0 %4529
        %4531 = vrot.lane.b32.xlu0 %v4499, 44
        %v4532 = vpop.permute.xlu0 %4531
        %4533 = vrot.lane.b32.xlu0 %v4500, 44
        %v4534 = vpop.permute.xlu0 %4533
        %4535 = vrot.lane.b32.xlu0 %v4501, 44
        %v4536 = vpop.permute.xlu0 %4535
        %4537 = vrot.lane.b32.xlu0 %v4502, 44
        %v4538 = vpop.permute.xlu0 %4537
        %vm4539 = vcmask 359424
        %v4540 = vsel %vm4539, %v4516, %v4518
        %v4541 = vsel %vm4539, %v4518, %v4520
        %v4542 = vsel %vm4539, %v4520, %v4522
        %v4543 = vsel %vm4539, %v4522, %v4524
        %v4544 = vsel %vm4539, %v4524, %v4526
        %v4545 = vsel %vm4539, %v4528, %v4530
        %v4546 = vsel %vm4539, %v4530, %v4532
        %v4547 = vsel %vm4539, %v4532, %v4534
        %v4548 = vsel %vm4539, %v4534, %v4536
        %v4549 = vsel %vm4539, %v4536, %v4538
        %4560 = vst [vmem:[#allocation3 + $0x230] sm:$0xff] %v4540
        %4561 = vst [vmem:[#allocation3 + $0x238] sm:$0xff] %v4541
        %4562 = vst [vmem:[#allocation3 + $0x240] sm:$0xff] %v4542
        %4563 = vst [vmem:[#allocation3 + $0x248] sm:$0xff] %v4543
        %4564 = vst [vmem:[#allocation3 + $0x250] sm:$0xff] %v4544
        %4565 = vst [vmem:[#allocation3 + $0x258] sm:$0xff] %v4545
        %4566 = vst [vmem:[#allocation3 + $0x260] sm:$0xff] %v4546
        %4567 = vst [vmem:[#allocation3 + $0x268] sm:$0xff] %v4547
        %4568 = vst [vmem:[#allocation3 + $0x270] sm:$0xff] %v4548
        %4569 = vst [vmem:[#allocation3 + $0x278] sm:$0xff] %v4549
        %v4570 = vld [vmem:[#allocation2 + $0x30] sm:$0xff]
        %v4571 = vld [vmem:[#allocation2 + $0x38] sm:$0xff]
        %v4572 = vld [vmem:[#allocation2 + $0x40] sm:$0xff]
        %v4573 = vld [vmem:[#allocation2 + $0x48] sm:$0xff]
        %v4574 = vld [vmem:[#allocation2 + $0x50] sm:$0xff]
        %v4575 = vld [vmem:[#allocation2 + $0x58] sm:$0xff]
        %v4576 = vld [vmem:[#allocation2 + $0x90] sm:$0xff]
        %v4577 = vld [vmem:[#allocation2 + $0x98] sm:$0xff]
        %v4578 = vld [vmem:[#allocation2 + $0xa0] sm:$0xff]
        %v4579 = vld [vmem:[#allocation2 + $0xa8] sm:$0xff]
        %v4580 = vld [vmem:[#allocation2 + $0xb0] sm:$0xff]
        %v4581 = vld [vmem:[#allocation2 + $0xb8] sm:$0xff]
        %4594 = vrot.lane.b32.xlu0 %v4570, 33
        %v4595 = vpop.permute.xlu0 %4594
        %4596 = vrot.lane.b32.xlu0 %v4571, 33
        %v4597 = vpop.permute.xlu0 %4596
        %4598 = vrot.lane.b32.xlu0 %v4572, 33
        %v4599 = vpop.permute.xlu0 %4598
        %4600 = vrot.lane.b32.xlu0 %v4573, 33
        %v4601 = vpop.permute.xlu0 %4600
        %4602 = vrot.lane.b32.xlu0 %v4574, 33
        %v4603 = vpop.permute.xlu0 %4602
        %4604 = vrot.lane.b32.xlu0 %v4575, 33
        %v4605 = vpop.permute.xlu0 %4604
        %4606 = vrot.lane.b32.xlu0 %v4576, 33
        %v4607 = vpop.permute.xlu0 %4606
        %4608 = vrot.lane.b32.xlu0 %v4577, 33
        %v4609 = vpop.permute.xlu0 %4608
        %4610 = vrot.lane.b32.xlu0 %v4578, 33
        %v4611 = vpop.permute.xlu0 %4610
        %4612 = vrot.lane.b32.xlu0 %v4579, 33
        %v4613 = vpop.permute.xlu0 %4612
        %4614 = vrot.lane.b32.xlu0 %v4580, 33
        %v4615 = vpop.permute.xlu0 %4614
        %4616 = vrot.lane.b32.xlu0 %v4581, 33
        %v4617 = vpop.permute.xlu0 %4616
        %vm4618 = vcmask 269312
        %v4619 = vsel %vm4618, %v4595, %v4597
        %v4620 = vsel %vm4618, %v4597, %v4599
        %v4621 = vsel %vm4618, %v4599, %v4601
        %v4622 = vsel %vm4618, %v4601, %v4603
        %v4623 = vsel %vm4618, %v4603, %v4605
        %v4624 = vsel %vm4618, %v4607, %v4609
        %v4625 = vsel %vm4618, %v4609, %v4611
        %v4626 = vsel %vm4618, %v4611, %v4613
        %v4627 = vsel %vm4618, %v4613, %v4615
        %v4628 = vsel %vm4618, %v4615, %v4617
        %4639 = vst [vmem:[#allocation3 + $0x280] sm:$0xff] %v4619
        %4640 = vst [vmem:[#allocation3 + $0x288] sm:$0xff] %v4620
        %4641 = vst [vmem:[#allocation3 + $0x290] sm:$0xff] %v4621
        %4642 = vst [vmem:[#allocation3 + $0x298] sm:$0xff] %v4622
        %4643 = vst [vmem:[#allocation3 + $0x2a0] sm:$0xff] %v4623
        %4644 = vst [vmem:[#allocation3 + $0x2a8] sm:$0xff] %v4624
        %4645 = vst [vmem:[#allocation3 + $0x2b0] sm:$0xff] %v4625
        %4646 = vst [vmem:[#allocation3 + $0x2b8] sm:$0xff] %v4626
        %4647 = vst [vmem:[#allocation3 + $0x2c0] sm:$0xff] %v4627
        %4648 = vst [vmem:[#allocation3 + $0x2c8] sm:$0xff] %v4628
        %s4649 = scalar_lea.vmem %s2, 96
        %v4650 = vld [vmem:[%s4649] sm:$0xff]
        %v4651 = vld [vmem:[%s4649 + $0x8] sm:$0xff]
        %v4652 = vld [vmem:[%s4649 + $0x10] sm:$0xff]
        %v4653 = vld [vmem:[%s4649 + $0x18] sm:$0xff]
        %v4654 = vld [vmem:[#allocation3] sm:$0xff]
        %v4655 = vld [vmem:[#allocation3 + $0x8] sm:$0xff]
        %v4656 = vld [vmem:[#allocation3 + $0x10] sm:$0xff]
        %v4657 = vld [vmem:[#allocation3 + $0x18] sm:$0xff]
        %v4658 = vld [vmem:[#allocation3 + $0x20] sm:$0xff]
        %v4659 = vld [vmem:[#allocation3 + $0x28] sm:$0xff]
        %v4660 = vld [vmem:[#allocation3 + $0x30] sm:$0xff]
        %v4661 = vld [vmem:[#allocation3 + $0x38] sm:$0xff]
        %v4662 = vld [vmem:[#allocation3 + $0x40] sm:$0xff]
        %v4663 = vld [vmem:[#allocation3 + $0x48] sm:$0xff]
        %v4664 = vld [vmem:[#allocation3 + $0x50] sm:$0xff]
        %v4665 = vld [vmem:[#allocation3 + $0x58] sm:$0xff]
        %v4666 = vld [vmem:[#allocation3 + $0x60] sm:$0xff]
        %v4667 = vld [vmem:[#allocation3 + $0x68] sm:$0xff]
        %v4668 = vld [vmem:[#allocation3 + $0x70] sm:$0xff]
        %v4669 = vld [vmem:[#allocation3 + $0x78] sm:$0xff]
        %v4670 = vld [vmem:[#allocation3 + $0x80] sm:$0xff]
        %v4671 = vld [vmem:[#allocation3 + $0x88] sm:$0xff]
        %v4672 = vld [vmem:[#allocation3 + $0x90] sm:$0xff]
        %v4673 = vld [vmem:[#allocation3 + $0x98] sm:$0xff]
        %v4674 = vld [vmem:[#allocation3 + $0xa0] sm:$0xff]
        %v4675 = vld [vmem:[#allocation3 + $0xa8] sm:$0xff]
        %v4676 = vld [vmem:[#allocation3 + $0xb0] sm:$0xff]
        %v4677 = vld [vmem:[#allocation3 + $0xb8] sm:$0xff]
        %v4678 = vld [vmem:[#allocation3 + $0xc0] sm:$0xff]
        %v4679 = vld [vmem:[#allocation3 + $0xc8] sm:$0xff]
        %v4680 = vld [vmem:[#allocation3 + $0xd0] sm:$0xff]
        %v4681 = vld [vmem:[#allocation3 + $0xd8] sm:$0xff]
        %v4682 = vld [vmem:[#allocation3 + $0xe0] sm:$0xff]
        %v4683 = vld [vmem:[#allocation3 + $0xe8] sm:$0xff]
        %v4684 = vld [vmem:[#allocation3 + $0xf0] sm:$0xff]
        %v4685 = vld [vmem:[#allocation3 + $0xf8] sm:$0xff]
        %v4686 = vld [vmem:[#allocation3 + $0x100] sm:$0xff]
        %v4687 = vld [vmem:[#allocation3 + $0x108] sm:$0xff]
        %v4688 = vld [vmem:[#allocation3 + $0x110] sm:$0xff]
        %v4689 = vld [vmem:[#allocation3 + $0x118] sm:$0xff]
        %v4690 = vld [vmem:[#allocation3 + $0x120] sm:$0xff]
        %v4691 = vld [vmem:[#allocation3 + $0x128] sm:$0xff]
        %v4692 = vld [vmem:[#allocation3 + $0x130] sm:$0xff]
        %v4693 = vld [vmem:[#allocation3 + $0x138] sm:$0xff]
        %v4694 = vld [vmem:[#allocation3 + $0x140] sm:$0xff]
        %v4695 = vld [vmem:[#allocation3 + $0x148] sm:$0xff]
        %v4696 = vld [vmem:[#allocation3 + $0x150] sm:$0xff]
        %v4697 = vld [vmem:[#allocation3 + $0x158] sm:$0xff]
        %v4698 = vld [vmem:[#allocation3 + $0x160] sm:$0xff]
        %v4699 = vld [vmem:[#allocation3 + $0x168] sm:$0xff]
        %v4700 = vld [vmem:[#allocation3 + $0x170] sm:$0xff]
        %v4701 = vld [vmem:[#allocation3 + $0x178] sm:$0xff]
        %v4702 = vld [vmem:[#allocation3 + $0x180] sm:$0xff]
        %v4703 = vld [vmem:[#allocation3 + $0x188] sm:$0xff]
        %v4704 = vld [vmem:[#allocation3 + $0x190] sm:$0xff]
        %v4705 = vld [vmem:[#allocation3 + $0x198] sm:$0xff]
        %v4706 = vld [vmem:[#allocation3 + $0x1a0] sm:$0xff]
        %v4707 = vld [vmem:[#allocation3 + $0x1a8] sm:$0xff]
        %v4708 = vld [vmem:[#allocation3 + $0x1b0] sm:$0xff]
        %v4709 = vld [vmem:[#allocation3 + $0x1b8] sm:$0xff]
        %v4710 = vld [vmem:[#allocation3 + $0x1c0] sm:$0xff]
        %v4711 = vld [vmem:[#allocation3 + $0x1c8] sm:$0xff]
        %v4712 = vld [vmem:[#allocation3 + $0x1d0] sm:$0xff]
        %v4713 = vld [vmem:[#allocation3 + $0x1d8] sm:$0xff]
        %v4714 = vld [vmem:[#allocation3 + $0x1e0] sm:$0xff]
        %v4715 = vld [vmem:[#allocation3 + $0x1e8] sm:$0xff]
        %v4716 = vld [vmem:[#allocation3 + $0x1f0] sm:$0xff]
        %v4717 = vld [vmem:[#allocation3 + $0x1f8] sm:$0xff]
        %v4718 = vld [vmem:[#allocation3 + $0x200] sm:$0xff]
        %v4719 = vld [vmem:[#allocation3 + $0x208] sm:$0xff]
        %v4720 = vld [vmem:[#allocation3 + $0x210] sm:$0xff]
        %v4721 = vld [vmem:[#allocation3 + $0x218] sm:$0xff]
        %v4722 = vld [vmem:[#allocation3 + $0x220] sm:$0xff]
        %v4723 = vld [vmem:[#allocation3 + $0x228] sm:$0xff]
        %v4724 = vld [vmem:[#allocation3 + $0x230] sm:$0xff]
        %v4725 = vld [vmem:[#allocation3 + $0x238] sm:$0xff]
        %v4726 = vld [vmem:[#allocation3 + $0x240] sm:$0xff]
        %v4727 = vld [vmem:[#allocation3 + $0x248] sm:$0xff]
        %v4728 = vld [vmem:[#allocation3 + $0x250] sm:$0xff]
        %v4729 = vld [vmem:[#allocation3 + $0x258] sm:$0xff]
        %v4730 = vld [vmem:[#allocation3 + $0x260] sm:$0xff]
        %v4731 = vld [vmem:[#allocation3 + $0x268] sm:$0xff]
        %v4732 = vld [vmem:[#allocation3 + $0x270] sm:$0xff]
        %v4733 = vld [vmem:[#allocation3 + $0x278] sm:$0xff]
        %v4734 = vld [vmem:[#allocation3 + $0x280] sm:$0xff]
        %v4735 = vld [vmem:[#allocation3 + $0x288] sm:$0xff]
        %v4736 = vld [vmem:[#allocation3 + $0x290] sm:$0xff]
        %v4737 = vld [vmem:[#allocation3 + $0x298] sm:$0xff]
        %v4738 = vld [vmem:[#allocation3 + $0x2a0] sm:$0xff]
        %v4739 = vld [vmem:[#allocation3 + $0x2a8] sm:$0xff]
        %v4740 = vld [vmem:[#allocation3 + $0x2b0] sm:$0xff]
        %v4741 = vld [vmem:[#allocation3 + $0x2b8] sm:$0xff]
        %v4742 = vld [vmem:[#allocation3 + $0x2c0] sm:$0xff]
        %v4743 = vld [vmem:[#allocation3 + $0x2c8] sm:$0xff]
        %v4745 = vsel %vm1350, %v4651, 0
        %v4748 = vsel %vm1350, %v4653, 0
        %4750 = vmatprep.subr.mxu0 %v4655
        %4751 = vmatpush1.msra.mxu0 %v4654
        %4752 = vmatprep.subr.mxu0 %v4660
        %4753 = vmatpush1.msra.mxu0 %v4659
        %4754 = vmatprep.subr.mxu0 %v4665
        %4755 = vmatpush1.msra.mxu0 %v4664
        %4756 = vmatprep.subr.mxu0 %v4670
        %4757 = vmatpush1.msra.mxu0 %v4669
        %4758 = vmatprep.subr.mxu0 %v4675
        %4759 = vmatpush1.msra.mxu0 %v4674
        %4760 = vmatprep.subr.mxu0 %v4680
        %4761 = vmatpush1.msra.mxu0 %v4679
        %4762 = vmatprep.subr.mxu0 %v4685
        %4763 = vmatpush1.msra.mxu0 %v4684
        %4764 = vmatprep.subr.mxu0 %v4690
        %4765 = vmatpush1.msra.mxu0 %v4689
        %4766 = vmatprep.subr.mxu0 %v4695
        %4767 = vmatpush1.msra.mxu0 %v4694
        %4768 = vmatprep.subr.mxu0 %v4700
        %4769 = vmatpush1.msra.mxu0 %v4699
        %4770 = vmatprep.subr.mxu0 %v4705
        %4771 = vmatpush1.msra.mxu0 %v4704
        %4772 = vmatprep.subr.mxu0 %v4710
        %4773 = vmatpush1.msra.mxu0 %v4709
        %4774 = vmatprep.subr.mxu0 %v4715
        %4775 = vmatpush1.msra.mxu0 %v4714
        %4776 = vmatprep.subr.mxu0 %v4720
        %4777 = vmatpush1.msra.mxu0 %v4719
        %4778 = vmatprep.subr.mxu0 %v4725
        %4779 = vmatpush1.msra.mxu0 %v4724
        %4780 = vmatprep.subr.mxu0 %v4730
        %4781 = vmatpush1.msra.mxu0 %v4729
        %4782 = vmatprep.subr.mxu0 %v4735
        %4783 = vmatpush1.msra.mxu0 %v4734
        %4784 = vmatprep.subr.mxu0 %v4740
        %4785 = vmatpush1.msra.mxu0 %v4739
        %4786 = vmatprep.subr.mxu0 0.0
        %4787 = vmatpush1.msra.mxu0 0.0
        %4788 = vmatprep.subr.mxu0 0.0
        %4789 = vmatpush1.msra.mxu0 0.0
        %4790 = vmatprep.subr.mxu0 0.0
        %4791 = vmatpush1.msra.mxu0 0.0
        %4792 = vmatprep.subr.mxu0 0.0
        %4793 = vmatpush1.msra.mxu0 0.0
        %4794 = vmatprep.subr.mxu0 0.0
        %4795 = vmatpush1.msra.mxu0 0.0
        %4796 = vmatprep.subr.mxu0 0.0
        %4797 = vmatpush1.msra.mxu0 0.0
        %4798 = vmatprep.subr.mxu0 0.0
        %4799 = vmatpush1.msra.mxu0 0.0
        %4800 = vmatprep.subr.mxu0 0.0
        %4801 = vmatpush1.msra.mxu0 0.0
        %4802 = vmatprep.subr.mxu0 0.0
        %4803 = vmatpush1.msra.mxu0 0.0
        %4804 = vmatprep.subr.mxu0 0.0
        %4805 = vmatpush1.msra.mxu0 0.0
        %4806 = vmatprep.subr.mxu0 0.0
        %4807 = vmatpush1.msra.mxu0 0.0
        %4808 = vmatprep.subr.mxu0 0.0
        %4809 = vmatpush1.msra.mxu0 0.0
        %4810 = vmatprep.subr.mxu0 0.0
        %4811 = vmatpush1.msra.mxu0 0.0
        %4812 = vmatprep.subr.mxu0 0.0
        %4813 = vmatpush1.msra.mxu0 0.0
        %4814 = vmatprep.mubr.f32.mxu0 %v4745
        %4815 = vmatmul.mubr.f32.gmra.mrb[0].mxu0 %v4650
        %v4816 = vpop.f32.mrb[0].mxu0
        %v4817 = vadd.f32 0.0, %v4816
        %v4818 = vpop.f32.mrb[0].mxu0
        %v4819 = vadd.f32 0.0, %v4818
        %4820 = vmatprep.mubr.f32.mxu0 %v4748
        %4821 = vmatmul.mubr.f32.gmra.mrb[0].mxu0 %v4652
        %v4822 = vpop.f32.mrb[0].mxu0
        %v4823 = vadd.f32 0.0, %v4822
        %v4824 = vpop.f32.mrb[0].mxu0
        %v4825 = vadd.f32 0.0, %v4824
        %4826 = vdwg.mxu0
        %4827 = vmatprep.subr.mxu0 %v4657
        %4828 = vmatpush1.msra.mxu0 %v4656
        %4829 = vmatprep.subr.mxu0 %v4662
        %4830 = vmatpush1.msra.mxu0 %v4661
        %4831 = vmatprep.subr.mxu0 %v4667
        %4832 = vmatpush1.msra.mxu0 %v4666
        %4833 = vmatprep.subr.mxu0 %v4672
        %4834 = vmatpush1.msra.mxu0 %v4671
        %4835 = vmatprep.subr.mxu0 %v4677
        %4836 = vmatpush1.msra.mxu0 %v4676
        %4837 = vmatprep.subr.mxu0 %v4682
        %4838 = vmatpush1.msra.mxu0 %v4681
        %4839 = vmatprep.subr.mxu0 %v4687
        %4840 = vmatpush1.msra.mxu0 %v4686
        %4841 = vmatprep.subr.mxu0 %v4692
        %4842 = vmatpush1.msra.mxu0 %v4691
        %4843 = vmatprep.subr.mxu0 %v4697
        %4844 = vmatpush1.msra.mxu0 %v4696
        %4845 = vmatprep.subr.mxu0 %v4702
        %4846 = vmatpush1.msra.mxu0 %v4701
        %4847 = vmatprep.subr.mxu0 %v4707
        %4848 = vmatpush1.msra.mxu0 %v4706
        %4849 = vmatprep.subr.mxu0 %v4712
        %4850 = vmatpush1.msra.mxu0 %v4711
        %4851 = vmatprep.subr.mxu0 %v4717
        %4852 = vmatpush1.msra.mxu0 %v4716
        %4853 = vmatprep.subr.mxu0 %v4722
        %4854 = vmatpush1.msra.mxu0 %v4721
        %4855 = vmatprep.subr.mxu0 %v4727
        %4856 = vmatpush1.msra.mxu0 %v4726
        %4857 = vmatprep.subr.mxu0 %v4732
        %4858 = vmatpush1.msra.mxu0 %v4731
        %4859 = vmatprep.subr.mxu0 %v4737
        %4860 = vmatpush1.msra.mxu0 %v4736
        %4861 = vmatprep.subr.mxu0 %v4742
        %4862 = vmatpush1.msra.mxu0 %v4741
        %4863 = vmatprep.subr.mxu0 0.0
        %4864 = vmatpush1.msra.mxu0 0.0
        %4865 = vmatprep.subr.mxu0 0.0
        %4866 = vmatpush1.msra.mxu0 0.0
        %4867 = vmatprep.subr.mxu0 0.0
        %4868 = vmatpush1.msra.mxu0 0.0
        %4869 = vmatprep.subr.mxu0 0.0
        %4870 = vmatpush1.msra.mxu0 0.0
        %4871 = vmatprep.subr.mxu0 0.0
        %4872 = vmatpush1.msra.mxu0 0.0
        %4873 = vmatprep.subr.mxu0 0.0
        %4874 = vmatpush1.msra.mxu0 0.0
        %4875 = vmatprep.subr.mxu0 0.0
        %4876 = vmatpush1.msra.mxu0 0.0
        %4877 = vmatprep.subr.mxu0 0.0
        %4878 = vmatpush1.msra.mxu0 0.0
        %4879 = vmatprep.subr.mxu0 0.0
        %4880 = vmatpush1.msra.mxu0 0.0
        %4881 = vmatprep.subr.mxu0 0.0
        %4882 = vmatpush1.msra.mxu0 0.0
        %4883 = vmatprep.subr.mxu0 0.0
        %4884 = vmatpush1.msra.mxu0 0.0
        %4885 = vmatprep.subr.mxu0 0.0
        %4886 = vmatpush1.msra.mxu0 0.0
        %4887 = vmatprep.subr.mxu0 0.0
        %4888 = vmatpush1.msra.mxu0 0.0
        %4889 = vmatprep.subr.mxu0 0.0
        %4890 = vmatpush1.msra.mxu0 0.0
        %4891 = vmatprep.mubr.f32.mxu0 %v4745
        %4892 = vmatmul.mubr.f32.gmra.mrb[0].mxu0 %v4650
        %v4893 = vpop.f32.mrb[0].mxu0
        %v4894 = vadd.f32 0.0, %v4893
        %v4895 = vpop.f32.mrb[0].mxu0
        %v4896 = vadd.f32 0.0, %v4895
        %4897 = vmatprep.mubr.f32.mxu0 %v4748
        %4898 = vmatmul.mubr.f32.gmra.mrb[0].mxu0 %v4652
        %v4899 = vpop.f32.mrb[0].mxu0
        %v4900 = vadd.f32 0.0, %v4899
        %v4901 = vpop.f32.mrb[0].mxu0
        %v4902 = vadd.f32 0.0, %v4901
        %4903 = vdwg.mxu0
        %4904 = vmatprep.subr.mxu0 0.0
        %4905 = vmatpush1.msra.mxu0 %v4658
        %4906 = vmatprep.subr.mxu0 0.0
        %4907 = vmatpush1.msra.mxu0 %v4663
        %4908 = vmatprep.subr.mxu0 0.0
        %4909 = vmatpush1.msra.mxu0 %v4668
        %4910 = vmatprep.subr.mxu0 0.0
        %4911 = vmatpush1.msra.mxu0 %v4673
        %4912 = vmatprep.subr.mxu0 0.0
        %4913 = vmatpush1.msra.mxu0 %v4678
        %4914 = vmatprep.subr.mxu0 0.0
        %4915 = vmatpush1.msra.mxu0 %v4683
        %4916 = vmatprep.subr.mxu0 0.0
        %4917 = vmatpush1.msra.mxu0 %v4688
        %4918 = vmatprep.subr.mxu0 0.0
        %4919 = vmatpush1.msra.mxu0 %v4693
        %4920 = vmatprep.subr.mxu0 0.0
        %4921 = vmatpush1.msra.mxu0 %v4698
        %4922 = vmatprep.subr.mxu0 0.0
        %4923 = vmatpush1.msra.mxu0 %v4703
        %4924 = vmatprep.subr.mxu0 0.0
        %4925 = vmatpush1.msra.mxu0 %v4708
        %4926 = vmatprep.subr.mxu0 0.0
        %4927 = vmatpush1.msra.mxu0 %v4713
        %4928 = vmatprep.subr.mxu0 0.0
        %4929 = vmatpush1.msra.mxu0 %v4718
        %4930 = vmatprep.subr.mxu0 0.0
        %4931 = vmatpush1.msra.mxu0 %v4723
        %4932 = vmatprep.subr.mxu0 0.0
        %4933 = vmatpush1.msra.mxu0 %v4728
        %4934 = vmatprep.subr.mxu0 0.0
        %4935 = vmatpush1.msra.mxu0 %v4733
        %4936 = vmatprep.subr.mxu0 0.0
        %4937 = vmatpush1.msra.mxu0 %v4738
        %4938 = vmatprep.subr.mxu0 0.0
        %4939 = vmatpush1.msra.mxu0 %v4743
        %4940 = vmatprep.subr.mxu0 0.0
        %4941 = vmatpush1.msra.mxu0 0.0
        %4942 = vmatprep.subr.mxu0 0.0
        %4943 = vmatpush1.msra.mxu0 0.0
        %4944 = vmatprep.subr.mxu0 0.0
        %4945 = vmatpush1.msra.mxu0 0.0
        %4946 = vmatprep.subr.mxu0 0.0
        %4947 = vmatpush1.msra.mxu0 0.0
        %4948 = vmatprep.subr.mxu0 0.0
        %4949 = vmatpush1.msra.mxu0 0.0
        %4950 = vmatprep.subr.mxu0 0.0
        %4951 = vmatpush1.msra.mxu0 0.0
        %4952 = vmatprep.subr.mxu0 0.0
        %4953 = vmatpush1.msra.mxu0 0.0
        %4954 = vmatprep.subr.mxu0 0.0
        %4955 = vmatpush1.msra.mxu0 0.0
        %4956 = vmatprep.subr.mxu0 0.0
        %4957 = vmatpush1.msra.mxu0 0.0
        %4958 = vmatprep.subr.mxu0 0.0
        %4959 = vmatpush1.msra.mxu0 0.0
        %4960 = vmatprep.subr.mxu0 0.0
        %4961 = vmatpush1.msra.mxu0 0.0
        %4962 = vmatprep.subr.mxu0 0.0
        %4963 = vmatpush1.msra.mxu0 0.0
        %4964 = vmatprep.subr.mxu0 0.0
        %4965 = vmatpush1.msra.mxu0 0.0
        %4966 = vmatprep.subr.mxu0 0.0
        %4967 = vmatpush1.msra.mxu0 0.0
        %4968 = vmatprep.mubr.f32.mxu0 %v4745
        %4969 = vmatmul.mubr.f32.gmra.mrb[0].mxu0 %v4650
        %v4970 = vpop.f32.mrb[0].mxu0
        %v4971 = vadd.f32 0.0, %v4970
        %v4972 = vpop.f32.mrb[0].mxu0
        %4973 = vmatprep.mubr.f32.mxu0 %v4748
        %4974 = vmatmul.mubr.f32.gmra.mrb[0].mxu0 %v4652
        %v4975 = vpop.f32.mrb[0].mxu0
        %v4976 = vadd.f32 0.0, %v4975
        %v4977 = vpop.f32.mrb[0].mxu0
        %4978 = vdwg.mxu0
        %v4979 = vld [vmem:[%s163] sm:$0xff]
        %v4980 = vld [vmem:[%s163 + $0x8] sm:$0xff]
        %v4981 = vld [vmem:[%s163 + $0x10] sm:$0xff]
        %v4982 = vld [vmem:[%s163 + $0x18] sm:$0xff]
        %v4983 = vld [vmem:[%s163 + $0x20] sm:$0xff]
        %v4984 = vld [vmem:[%s163 + $0x28] sm:$0xff]
        %v4985 = vld [vmem:[%s163 + $0x30] sm:$0xff]
        %v4986 = vld [vmem:[%s163 + $0x38] sm:$0xff]
        %v4987 = vld [vmem:[%s163 + $0x40] sm:$0xff]
        %v4988 = vld [vmem:[%s163 + $0x48] sm:$0xff]
        %v4989 = vadd.f32 %v4979, %v4817
        %v4990 = vadd.f32 %v4980, %v4819
        %v4991 = vadd.f32 %v4981, %v4894
        %v4992 = vadd.f32 %v4982, %v4896
        %v4993 = vadd.f32 %v4983, %v4971
        %v4994 = vadd.f32 %v4984, %v4823
        %v4995 = vadd.f32 %v4985, %v4825
        %v4996 = vadd.f32 %v4986, %v4900
        %v4997 = vadd.f32 %v4987, %v4902
        %v4998 = vadd.f32 %v4988, %v4976
        %4999 = vst [vmem:[%s163] sm:$0xff] %v4989
        %5000 = vst [vmem:[%s163 + $0x8] sm:$0xff] %v4990
        %5001 = vst [vmem:[%s163 + $0x10] sm:$0xff] %v4991
        %5002 = vst [vmem:[%s163 + $0x18] sm:$0xff] %v4992
        %5003 = vst [vmem:[%s163 + $0x20] sm:$0xff] %v4993
        %5004 = vst [vmem:[%s163 + $0x28] sm:$0xff] %v4994
        %5005 = vst [vmem:[%s163 + $0x30] sm:$0xff] %v4995
        %5006 = vst [vmem:[%s163 + $0x38] sm:$0xff] %v4996
        %5007 = vst [vmem:[%s163 + $0x40] sm:$0xff] %v4997
        %5008 = vst [vmem:[%s163 + $0x48] sm:$0xff] %v4998
        %s5009 = sand.u32 %s93, 1
        %s5010 = scalar_lea.sflag [#allocation5], %s5009
        %s5011 = sand.u32 %s93, 1
        %s5012 = smul.addr %s5011, 80
        %s5013 = scalar_lea.vmem [#allocation4], %s5012
        // Predicated region
        $region33: #{tpu_custom_call.1} parent=31 // pred_check
          %p5014 = pneg %p103
        $region34: #{tpu_custom_call.1} parent=31 // pred_check_branch
          %5016 = sbr.rel (%p5014) target = $region36
        $region35: #{tpu_custom_call.1} parent=31 // pred_region
          %s5018 = ssub.s32 1280, 1280
          %5019 = vsyncadd %s5010, %s5018
          %s5020 = smul.addr %s17, 10
          %s5021 = smul.addr %s5020, 128
          %s5022 = scalar_lea.hbm %s3, %s5021
          %s5023 = sshll.u32 %s5013, 4
          %s5024 = int_to_ptr.vmem [resolvable:$true] %s5023
          %5029 = dma.vmem_to_hbm [thread:$0]  %s5024, 1280, %s5022, %s5010, 640, 640, 40
        $region36: #{tpu_custom_call.1} parent=31 // pred_fallthru
          _
      $region32: #{tpu_custom_call.1} parent=5 // pred_fallthru
        _
      %p5030 = scmp.le.s32.totalorder 2, %s12
      // Predicated region
      $region37: #{tpu_custom_call.1} parent=5 // pred_check
        %p5031 = pneg %p5030
      $region38: #{tpu_custom_call.1} parent=5 // pred_check_branch
        %5033 = sbr.rel (%p5031) target = $region40
      $region39: #{tpu_custom_call.1} parent=5 // pred_region
        %s5034 = ssub.s32 %s12, 2
        // Predicated region
        $region41: #{tpu_custom_call.1} parent=39 // pred_check
          %p5035 = pneg %p109
        $region42: #{tpu_custom_call.1} parent=39 // pred_check_branch
          %5037 = sbr.rel (%p5035) target = $region44
        $region43: #{tpu_custom_call.1} parent=39 // pred_region
          %s5038 = sand.u32 %s94, 1
          %s5039 = scalar_lea.sflag [#allocation5], %s5038
          %s5040 = sand.u32 %s94, 1
          %s5041 = smul.addr %s5040, 80
          %s5042 = scalar_lea.vmem [#allocation4], %s5041
          %5043 = dma.done %s5039, 1280
        $region44: #{tpu_custom_call.1} parent=39 // pred_fallthru
          _
      $region40: #{tpu_custom_call.1} parent=5 // pred_fallthru
        _
    $region6: #{tpu_custom_call.1} parent=1 // loop_footer
      %s16 = sadd.s32 1, %s12
    $region7: #{tpu_custom_call.1} parent=1 // loop_footer_branch
      %11 = sbr.rel target = $region3
    $region8: #{tpu_custom_call.1} parent=1 // loop_exit
      _
    %5044 = vsyncpa [#allocation5], 1
    %s5045 = scalar_lea.sflag [#allocation5], 1
    %5046 = vsyncpa %s5045, 1

</llo_original>
